<compile_context>
chip_gen: v6e
topology: v6e:2x2x1
jax: 0.10.0
libtpu: 0.0.40
codegen_flags: <defaults>
</compile_context>

<pallas_src>
import functools

import jax
import jax.numpy as jnp
from jax import lax
from jax.experimental import pallas as pl
from jax.experimental.pallas import tpu as pltpu

EPS = 1e-5  # nn.InstanceNorm2d default


def resnet_block_kernel(xpad_ref, w1_ref, w2_ref, o_ref, op_buf, ypad_buf, *,
                        compute_dtype):
    # xpad_ref block: (1, H+2, W+2, C) f32; w refs: (3, 3C, C) compute_dtype.
    # op_buf:   (H*W, 3C) compute_dtype — deep-K operand, reused across ky / both convs.
    # ypad_buf: (H+2, W+2, C) compute_dtype — reflect-padded intermediate activation.
    _, Hp, Wp, C = xpad_ref.shape
    H, W = Hp - 2, Wp - 2
    HW = H * W
    inv_hw = 1.0 / HW

    def conv3x3(read_patch, w_ref):
        """3x3 valid conv -> f32 (HW, C) via 3 deep-K (K=3C) MXU matmuls.

        Per ky, the three kx-shifted patches are written into sub-ranges of the
        persistent op_buf scratch (no concatenate temporaries), then one matmul
        against w_ref[ky] (3C, C).  Accumulator starts from the first matmul.
        """
        acc = None
        for ky in range(3):
            for kx in range(3):
                op_buf[:, pl.ds(kx * C, C)] = read_patch(ky, kx)
            z = jnp.dot(op_buf[...], w_ref[ky],
                        preferred_element_type=jnp.float32)
            acc = z if acc is None else acc + z
        return acc

    def instance_norm(y):
        """InstanceNorm2d(affine=False); y: f32 (HW, C); clamped one-pass f32 stats."""
        s1 = jnp.sum(y, axis=0, keepdims=True)
        s2 = jnp.sum(y * y, axis=0, keepdims=True)
        mean = s1 * inv_hw
        var = jnp.maximum(s2 * inv_hw - mean * mean, 0.0)
        return (y - mean) * lax.rsqrt(var + EPS)

    # ---- conv1: patches read straight from the padded input block, cast fused ----
    # (Conv bias omitted: it is exactly cancelled by the affine-free InstanceNorm.)
    def read_x_patch(ky, kx):
        p = xpad_ref[0, pl.ds(ky, H), pl.ds(kx, W), :]
        return p.astype(compute_dtype).reshape(HW, C)

    y = jnp.maximum(instance_norm(conv3x3(read_x_patch, w1_ref)), 0.0)

    # ---- reflect-pad the intermediate into persistent scratch (no concats) ----
    ypad_buf[pl.ds(1, H), pl.ds(1, W), :] = y.astype(compute_dtype).reshape(H, W, C)
    # reflected top/bottom rows: padded row 0 <- y[1] (= buf row 2); padded row Hp-1 <- y[H-2]
    ypad_buf[pl.ds(0, 1), pl.ds(1, W), :] = ypad_buf[pl.ds(2, 1), pl.ds(1, W), :]
    ypad_buf[pl.ds(Hp - 1, 1), pl.ds(1, W), :] = ypad_buf[pl.ds(Hp - 3, 1), pl.ds(1, W), :]
    # reflected left/right columns (reads already-padded rows, so corners come out right)
    ypad_buf[:, pl.ds(0, 1), :] = ypad_buf[:, pl.ds(2, 1), :]
    ypad_buf[:, pl.ds(Wp - 1, 1), :] = ypad_buf[:, pl.ds(Wp - 3, 1), :]

    # ---- conv2 + IN ----
    def read_y_patch(ky, kx):
        return ypad_buf[pl.ds(ky, H), pl.ds(kx, W), :].reshape(HW, C)

    y2 = instance_norm(conv3x3(read_y_patch, w2_ref))

    # ---- residual add: re-read interior of the padded input (no long-lived x copy) ----
    x_in = xpad_ref[0, pl.ds(1, H), pl.ds(1, W), :].astype(jnp.float32)
    o_ref[0] = (x_in + y2.reshape(H, W, C)).astype(o_ref.dtype)


def _physical_vmem_bytes():
    # Narrow best-effort hardware query; conservative v7x per-TC default on failure.
    try:
        return int(pltpu.get_tpu_info().vmem_capacity_bytes)
    except Exception:
        return 64 << 20


def _vmem_limit_bytes(C, H, W, compute_dtype):
    cds = jnp.dtype(compute_dtype).itemsize
    f32 = 4
    Hp, Wp = H + 2, W + 2
    HW = H * W
    pipeline = 2 * Hp * Wp * C * f32 + 2 * HW * C * f32     # dbl-buffered in / out blocks
    consts = 2 * 2 * 9 * C * C * cds                        # weight blocks (assume dbl-buffered)
    scratch = HW * 3 * C * cds + Hp * Wp * C * cds          # op_buf + ypad_buf
    temps = 4 * HW * C * f32                                # acc / z / normalized / residual f32
    est = pipeline + consts + scratch + temps
    cap = max(_physical_vmem_bytes() - (8 << 20), 16 << 20)  # never exceed physical VMEM
    # 1.5x headroom over the estimate, floor at the 32 MiB default scoped limit.
    return int(min(max(est * 3 // 2 + (2 << 20), 32 << 20), cap))


def resnet_block(x_nchw, w1, b1, w2, b2, *, compute_dtype=jnp.bfloat16):
    """x_nchw: (B, C, H, W) f32; w*: (3, 3, C_in, C_out) HWIO; b*: (C,).

    b1/b2 are accepted for interface fidelity but deliberately not applied: a conv bias
    followed by InstanceNorm2d(affine=False) is exactly cancelled by the mean subtract.
    """
    del b1, b2
    B, C, H, W = x_nchw.shape
    Hp, Wp = H + 2, W + 2

    # Glue (XLA side): NCHW -> NHWC, reflect pad of the input, weight repack + cast.
    x_nhwc = jnp.transpose(x_nchw, (0, 2, 3, 1))
    x_pad = jnp.pad(x_nhwc, ((0, 0), (1, 1), (1, 1), (0, 0)), mode="reflect")
    # (ky, kx, cin, cout) -> (ky, kx*C + cin, cout): matches the [kx=0 | kx=1 | kx=2]
    # channel order of the deep-K operand built in op_buf.
    w1r = w1.reshape(3, 3 * C, C).astype(compute_dtype)
    w2r = w2.reshape(3, 3 * C, C).astype(compute_dtype)

    grid_spec = pltpu.PrefetchScalarGridSpec(
        num_scalar_prefetch=0,
        grid=(B,),
        in_specs=[
            pl.BlockSpec((1, Hp, Wp, C), lambda b: (b, 0, 0, 0)),
            pl.BlockSpec((3, 3 * C, C), lambda b: (0, 0, 0)),
            pl.BlockSpec((3, 3 * C, C), lambda b: (0, 0, 0)),
        ],
        out_specs=pl.BlockSpec((1, H, W, C), lambda b: (b, 0, 0, 0)),
        scratch_shapes=[
            pltpu.VMEM((H * W, 3 * C), compute_dtype),   # deep-K operand buffer
            pltpu.VMEM((Hp, Wp, C), compute_dtype),      # reflect-padded intermediate
        ],
    )
    out_nhwc = pl.pallas_call(
        functools.partial(resnet_block_kernel, compute_dtype=compute_dtype),
        out_shape=jax.ShapeDtypeStruct((B, H, W, C), x_nhwc.dtype),
        grid_spec=grid_spec,
        compiler_params=pltpu.CompilerParams(
            dimension_semantics=("parallel",),
            vmem_limit_bytes=_vmem_limit_bytes(C, H, W, compute_dtype)),
    )(x_pad, w1r, w2r)
    return jnp.transpose(out_nhwc, (0, 3, 1, 2))          # NHWC -> NCHW


# ----------------------------- pure-JAX reference -----------------------------
def _ref_conv3x3(x_nhwc, w_hwio, b):
    xp = jnp.pad(x_nhwc, ((0, 0), (1, 1), (1, 1), (0, 0)), mode="reflect")
    y = lax.conv_general_dilated(
        xp, w_hwio, window_strides=(1, 1), padding="VALID",
        dimension_numbers=("NHWC", "HWIO", "NHWC"))
    return y + b[None, None, None, :]


def _ref_instance_norm(y_nhwc):
    mean = jnp.mean(y_nhwc, axis=(1, 2), keepdims=True)
    var = jnp.mean((y_nhwc - mean) ** 2, axis=(1, 2), keepdims=True)
    return (y_nhwc - mean) / jnp.sqrt(var + EPS)


def resnet_block_ref(x_nchw, w1, b1, w2, b2):
    x = jnp.transpose(x_nchw, (0, 2, 3, 1))
    y = jnp.maximum(_ref_instance_norm(_ref_conv3x3(x, w1, b1)), 0.0)
    y = _ref_instance_norm(_ref_conv3x3(y, w2, b2))
    return jnp.transpose(x + y, (0, 3, 1, 2))


if __name__ == "__main__":
    B, C, H, W = 2, 4, 16, 16  # dim = 4
    key = jax.random.PRNGKey(0)
    kx_, kw1, kb1, kw2, kb2 = jax.random.split(key, 5)

    x = jax.random.normal(kx_, (B, C, H, W), dtype=jnp.float32)
    # Deterministic synthetic parameters (Conv2d(dim, dim, 3, bias=True) shapes),
    # stored HWIO for the NHWC kernel.
    scale = 1.0 / jnp.sqrt(9.0 * C)
    w1 = jax.random.normal(kw1, (3, 3, C, C), dtype=jnp.float32) * scale
    b1 = jax.random.normal(kb1, (C,), dtype=jnp.float32) * scale
    w2 = jax.random.normal(kw2, (3, 3, C, C), dtype=jnp.float32) * scale
    b2 = jax.random.normal(kb2, (C,), dtype=jnp.float32) * scale

    ref = resnet_block_ref(x, w1, b1, w2, b2)

    # f32 correctness check.  The kernel folds the conv bias out (exactly cancelled by
    # the affine-free InstanceNorm), so allow a small extra fp-roundoff margin.
    out_f32 = resnet_block(x, w1, b1, w2, b2, compute_dtype=jnp.float32)
    jax.block_until_ready(out_f32)
    assert out_f32.shape == (B, C, H, W)
    assert jnp.allclose(out_f32, ref, atol=2e-4, rtol=2e-4), float(
        jnp.max(jnp.abs(out_f32 - ref)))

    # Default fast path: bf16 conv operands, f32 MXU accumulation / stats / residual.
    out_bf16 = resnet_block(x, w1, b1, w2, b2)
    jax.block_until_ready(out_bf16)
    assert out_bf16.shape == (B, C, H, W)
    assert jnp.allclose(out_bf16, ref, atol=5e-2, rtol=5e-2), float(
        jnp.max(jnp.abs(out_bf16 - ref)))

    print("KERNEL_OK")
</pallas_src>

<mosaic_0001>
module attributes {stable_mosaic.version = 11 : i64} {
  func.func @resnet_block_kernel(%arg0: i32, %arg1: memref<1x18x18x4xf32, #tpu.memory_space<vmem>>, %arg2: memref<3x12x4xf32, #tpu.memory_space<vmem>>, %arg3: memref<3x12x4xf32, #tpu.memory_space<vmem>>, %arg4: memref<1x16x16x4xf32, #tpu.memory_space<vmem>>, %arg5: memref<256x12xf32, #tpu.memory_space<vmem>>, %arg6: memref<18x18x4xf32, #tpu.memory_space<vmem>>) attributes {dimension_semantics = [#tpu.dimension_semantics<parallel>], iteration_bounds = array<i64: 2>, scalar_prefetch = 0 : i64, scratch_operands = 2 : i64, tpu.core_type = #tpu.core_type<tc>, window_params = [{transform_indices = @transform_0, window_bounds = array<i64: 1, 18, 18, 4>}, {pipeline_mode = #tpu.pipeline_mode<synchronous>, transform_indices = @transform_1, window_bounds = array<i64: 3, 12, 4>}, {pipeline_mode = #tpu.pipeline_mode<synchronous>, transform_indices = @transform_2, window_bounds = array<i64: 3, 12, 4>}, {transform_indices = @transform_3, window_bounds = array<i64: 1, 16, 16, 4>}]} {
    %c0 = arith.constant 0 : index
    %c0_0 = arith.constant 0 : index
    %c0_1 = arith.constant 0 : index
    %c0_2 = arith.constant 0 : index
    %0 = vector.load %arg1[%c0, %c0_0, %c0_1, %c0_2] : memref<1x18x18x4xf32, #tpu.memory_space<vmem>>, vector<1x16x16x4xf32>
    %1 = vector.shape_cast %0 : vector<1x16x16x4xf32> to vector<16x16x4xf32>
    %2 = vector.shape_cast %1 : vector<16x16x4xf32> to vector<256x4xf32>
    %c0_3 = arith.constant 0 : index
    %c0_4 = arith.constant 0 : index
    %3 = vector.load %arg5[%c0_3, %c0_4] : memref<256x12xf32, #tpu.memory_space<vmem>>, vector<256x4xf32>
    tpu.vector_store %arg5[%c0_3, %c0_4], %2 {strides = array<i32>} : memref<256x12xf32, #tpu.memory_space<vmem>>, vector<256x4xf32>,
    %c0_5 = arith.constant 0 : index
    %c0_6 = arith.constant 0 : index
    %c1 = arith.constant 1 : index
    %c0_7 = arith.constant 0 : index
    %4 = vector.load %arg1[%c0_5, %c0_6, %c1, %c0_7] : memref<1x18x18x4xf32, #tpu.memory_space<vmem>>, vector<1x16x16x4xf32>
    %5 = vector.shape_cast %4 : vector<1x16x16x4xf32> to vector<16x16x4xf32>
    %6 = vector.shape_cast %5 : vector<16x16x4xf32> to vector<256x4xf32>
    %c0_8 = arith.constant 0 : index
    %c4 = arith.constant 4 : index
    %7 = vector.load %arg5[%c0_8, %c4] : memref<256x12xf32, #tpu.memory_space<vmem>>, vector<256x4xf32>
    tpu.vector_store %arg5[%c0_8, %c4], %6 {strides = array<i32>} : memref<256x12xf32, #tpu.memory_space<vmem>>, vector<256x4xf32>,
    %c0_9 = arith.constant 0 : index
    %c0_10 = arith.constant 0 : index
    %c2 = arith.constant 2 : index
    %c0_11 = arith.constant 0 : index
    %8 = vector.load %arg1[%c0_9, %c0_10, %c2, %c0_11] : memref<1x18x18x4xf32, #tpu.memory_space<vmem>>, vector<1x16x16x4xf32>
    %9 = vector.shape_cast %8 : vector<1x16x16x4xf32> to vector<16x16x4xf32>
    %10 = vector.shape_cast %9 : vector<16x16x4xf32> to vector<256x4xf32>
    %c0_12 = arith.constant 0 : index
    %c8 = arith.constant 8 : index
    %11 = vector.load %arg5[%c0_12, %c8] : memref<256x12xf32, #tpu.memory_space<vmem>>, vector<256x4xf32>
    tpu.vector_store %arg5[%c0_12, %c8], %10 {strides = array<i32>} : memref<256x12xf32, #tpu.memory_space<vmem>>, vector<256x4xf32>,
    %c0_13 = arith.constant 0 : index
    %c0_14 = arith.constant 0 : index
    %12 = vector.load %arg5[%c0_13, %c0_14] : memref<256x12xf32, #tpu.memory_space<vmem>>, vector<256x12xf32>
    %c0_15 = arith.constant 0 : index
    %c0_16 = arith.constant 0 : index
    %c0_17 = arith.constant 0 : index
    %13 = vector.load %arg2[%c0_15, %c0_16, %c0_17] : memref<3x12x4xf32, #tpu.memory_space<vmem>>, vector<1x12x4xf32>
    %14 = vector.shape_cast %13 : vector<1x12x4xf32> to vector<12x4xf32>
    %cst = arith.constant dense<0.000000e+00> : vector<256x4xf32>
    %15 = tpu.matmul %12, %14, %cst {dimension_numbers = #tpu.dot_dimension_numbers<[1], [0], [0], [1], [0, 0, 1, 1], [], []>} : vector<256x12xf32>, vector<12x4xf32>, vector<256x4xf32> -> vector<256x4xf32>
    %c0_18 = arith.constant 0 : index
    %c1_19 = arith.constant 1 : index
    %c0_20 = arith.constant 0 : index
    %c0_21 = arith.constant 0 : index
    %16 = vector.load %arg1[%c0_18, %c1_19, %c0_20, %c0_21] : memref<1x18x18x4xf32, #tpu.memory_space<vmem>>, vector<1x16x16x4xf32>
    %17 = vector.shape_cast %16 : vector<1x16x16x4xf32> to vector<16x16x4xf32>
    %18 = vector.shape_cast %17 : vector<16x16x4xf32> to vector<256x4xf32>
    %c0_22 = arith.constant 0 : index
    %c0_23 = arith.constant 0 : index
    %19 = vector.load %arg5[%c0_22, %c0_23] : memref<256x12xf32, #tpu.memory_space<vmem>>, vector<256x4xf32>
    tpu.vector_store %arg5[%c0_22, %c0_23], %18 {strides = array<i32>} : memref<256x12xf32, #tpu.memory_space<vmem>>, vector<256x4xf32>,
    %c0_24 = arith.constant 0 : index
    %c1_25 = arith.constant 1 : index
    %c1_26 = arith.constant 1 : index
    %c0_27 = arith.constant 0 : index
    %20 = vector.load %arg1[%c0_24, %c1_25, %c1_26, %c0_27] : memref<1x18x18x4xf32, #tpu.memory_space<vmem>>, vector<1x16x16x4xf32>
    %21 = vector.shape_cast %20 : vector<1x16x16x4xf32> to vector<16x16x4xf32>
    %22 = vector.shape_cast %21 : vector<16x16x4xf32> to vector<256x4xf32>
    %c0_28 = arith.constant 0 : index
    %c4_29 = arith.constant 4 : index
    %23 = vector.load %arg5[%c0_28, %c4_29] : memref<256x12xf32, #tpu.memory_space<vmem>>, vector<256x4xf32>
    tpu.vector_store %arg5[%c0_28, %c4_29], %22 {strides = array<i32>} : memref<256x12xf32, #tpu.memory_space<vmem>>, vector<256x4xf32>,
    %c0_30 = arith.constant 0 : index
    %c1_31 = arith.constant 1 : index
    %c2_32 = arith.constant 2 : index
    %c0_33 = arith.constant 0 : index
    %24 = vector.load %arg1[%c0_30, %c1_31, %c2_32, %c0_33] : memref<1x18x18x4xf32, #tpu.memory_space<vmem>>, vector<1x16x16x4xf32>
    %25 = vector.shape_cast %24 : vector<1x16x16x4xf32> to vector<16x16x4xf32>
    %26 = vector.shape_cast %25 : vector<16x16x4xf32> to vector<256x4xf32>
    %c0_34 = arith.constant 0 : index
    %c8_35 = arith.constant 8 : index
    %27 = vector.load %arg5[%c0_34, %c8_35] : memref<256x12xf32, #tpu.memory_space<vmem>>, vector<256x4xf32>
    tpu.vector_store %arg5[%c0_34, %c8_35], %26 {strides = array<i32>} : memref<256x12xf32, #tpu.memory_space<vmem>>, vector<256x4xf32>,
    %c0_36 = arith.constant 0 : index
    %c0_37 = arith.constant 0 : index
    %28 = vector.load %arg5[%c0_36, %c0_37] : memref<256x12xf32, #tpu.memory_space<vmem>>, vector<256x12xf32>
    %c1_38 = arith.constant 1 : index
    %c0_39 = arith.constant 0 : index
    %c0_40 = arith.constant 0 : index
    %29 = vector.load %arg2[%c1_38, %c0_39, %c0_40] : memref<3x12x4xf32, #tpu.memory_space<vmem>>, vector<1x12x4xf32>
    %30 = vector.shape_cast %29 : vector<1x12x4xf32> to vector<12x4xf32>
    %cst_41 = arith.constant dense<0.000000e+00> : vector<256x4xf32>
    %31 = tpu.matmul %28, %30, %cst_41 {dimension_numbers = #tpu.dot_dimension_numbers<[1], [0], [0], [1], [0, 0, 1, 1], [], []>} : vector<256x12xf32>, vector<12x4xf32>, vector<256x4xf32> -> vector<256x4xf32>
    %32 = arith.addf %15, %31 : vector<256x4xf32>
    %c0_42 = arith.constant 0 : index
    %c2_43 = arith.constant 2 : index
    %c0_44 = arith.constant 0 : index
    %c0_45 = arith.constant 0 : index
    %33 = vector.load %arg1[%c0_42, %c2_43, %c0_44, %c0_45] : memref<1x18x18x4xf32, #tpu.memory_space<vmem>>, vector<1x16x16x4xf32>
    %34 = vector.shape_cast %33 : vector<1x16x16x4xf32> to vector<16x16x4xf32>
    %35 = vector.shape_cast %34 : vector<16x16x4xf32> to vector<256x4xf32>
    %c0_46 = arith.constant 0 : index
    %c0_47 = arith.constant 0 : index
    %36 = vector.load %arg5[%c0_46, %c0_47] : memref<256x12xf32, #tpu.memory_space<vmem>>, vector<256x4xf32>
    tpu.vector_store %arg5[%c0_46, %c0_47], %35 {strides = array<i32>} : memref<256x12xf32, #tpu.memory_space<vmem>>, vector<256x4xf32>,
    %c0_48 = arith.constant 0 : index
    %c2_49 = arith.constant 2 : index
    %c1_50 = arith.constant 1 : index
    %c0_51 = arith.constant 0 : index
    %37 = vector.load %arg1[%c0_48, %c2_49, %c1_50, %c0_51] : memref<1x18x18x4xf32, #tpu.memory_space<vmem>>, vector<1x16x16x4xf32>
    %38 = vector.shape_cast %37 : vector<1x16x16x4xf32> to vector<16x16x4xf32>
    %39 = vector.shape_cast %38 : vector<16x16x4xf32> to vector<256x4xf32>
    %c0_52 = arith.constant 0 : index
    %c4_53 = arith.constant 4 : index
    %40 = vector.load %arg5[%c0_52, %c4_53] : memref<256x12xf32, #tpu.memory_space<vmem>>, vector<256x4xf32>
    tpu.vector_store %arg5[%c0_52, %c4_53], %39 {strides = array<i32>} : memref<256x12xf32, #tpu.memory_space<vmem>>, vector<256x4xf32>,
    %c0_54 = arith.constant 0 : index
    %c2_55 = arith.constant 2 : index
    %c2_56 = arith.constant 2 : index
    %c0_57 = arith.constant 0 : index
    %41 = vector.load %arg1[%c0_54, %c2_55, %c2_56, %c0_57] : memref<1x18x18x4xf32, #tpu.memory_space<vmem>>, vector<1x16x16x4xf32>
    %42 = vector.shape_cast %41 : vector<1x16x16x4xf32> to vector<16x16x4xf32>
    %43 = vector.shape_cast %42 : vector<16x16x4xf32> to vector<256x4xf32>
    %c0_58 = arith.constant 0 : index
    %c8_59 = arith.constant 8 : index
    %44 = vector.load %arg5[%c0_58, %c8_59] : memref<256x12xf32, #tpu.memory_space<vmem>>, vector<256x4xf32>
    tpu.vector_store %arg5[%c0_58, %c8_59], %43 {strides = array<i32>} : memref<256x12xf32, #tpu.memory_space<vmem>>, vector<256x4xf32>,
    %c0_60 = arith.constant 0 : index
    %c0_61 = arith.constant 0 : index
    %45 = vector.load %arg5[%c0_60, %c0_61] : memref<256x12xf32, #tpu.memory_space<vmem>>, vector<256x12xf32>
    %c2_62 = arith.constant 2 : index
    %c0_63 = arith.constant 0 : index
    %c0_64 = arith.constant 0 : index
    %46 = vector.load %arg2[%c2_62, %c0_63, %c0_64] : memref<3x12x4xf32, #tpu.memory_space<vmem>>, vector<1x12x4xf32>
    %47 = vector.shape_cast %46 : vector<1x12x4xf32> to vector<12x4xf32>
    %cst_65 = arith.constant dense<0.000000e+00> : vector<256x4xf32>
    %48 = tpu.matmul %45, %47, %cst_65 {dimension_numbers = #tpu.dot_dimension_numbers<[1], [0], [0], [1], [0, 0, 1, 1], [], []>} : vector<256x12xf32>, vector<12x4xf32>, vector<256x4xf32> -> vector<256x4xf32>
    %49 = arith.addf %32, %48 : vector<256x4xf32>
    %cst_66 = arith.constant dense<0.000000e+00> : vector<4xf32>
    %50 = vector.multi_reduction <add>, %49, %cst_66 [0] : vector<256x4xf32> to vector<4xf32>
    %51 = vector.shape_cast %50 : vector<4xf32> to vector<1x4xf32>
    %52 = arith.mulf %49, %49 : vector<256x4xf32>
    %cst_67 = arith.constant dense<0.000000e+00> : vector<4xf32>
    %53 = vector.multi_reduction <add>, %52, %cst_67 [0] : vector<256x4xf32> to vector<4xf32>
    %54 = vector.shape_cast %53 : vector<4xf32> to vector<1x4xf32>
    %cst_68 = arith.constant 3.906250e-03 : f32
    %55 = vector.broadcast %cst_68 : f32 to vector<1x4xf32>
    %56 = arith.mulf %51, %55 : vector<1x4xf32>
    %cst_69 = arith.constant 3.906250e-03 : f32
    %57 = vector.broadcast %cst_69 : f32 to vector<1x4xf32>
    %58 = arith.mulf %54, %57 : vector<1x4xf32>
    %59 = arith.mulf %56, %56 : vector<1x4xf32>
    %60 = arith.subf %58, %59 : vector<1x4xf32>
    %cst_70 = arith.constant 0.000000e+00 : f32
    %61 = vector.broadcast %cst_70 : f32 to vector<1x4xf32>
    %62 = arith.maximumf %60, %61 : vector<1x4xf32>
    %63 = vector.broadcast %56 : vector<1x4xf32> to vector<256x4xf32>
    %64 = arith.subf %49, %63 : vector<256x4xf32>
    %cst_71 = arith.constant 9.99999974E-6 : f32
    %65 = vector.broadcast %cst_71 : f32 to vector<1x4xf32>
    %66 = arith.addf %62, %65 : vector<1x4xf32>
    %67 = math.rsqrt %66 : vector<1x4xf32>
    %68 = vector.broadcast %67 : vector<1x4xf32> to vector<256x4xf32>
    %69 = arith.mulf %64, %68 : vector<256x4xf32>
    %cst_72 = arith.constant 0.000000e+00 : f32
    %70 = vector.broadcast %cst_72 : f32 to vector<256x4xf32>
    %71 = arith.maximumf %69, %70 : vector<256x4xf32>
    %72 = vector.shape_cast %71 : vector<256x4xf32> to vector<16x16x4xf32>
    %c1_73 = arith.constant 1 : index
    %c1_74 = arith.constant 1 : index
    %c0_75 = arith.constant 0 : index
    %73 = vector.load %arg6[%c1_73, %c1_74, %c0_75] : memref<18x18x4xf32, #tpu.memory_space<vmem>>, vector<16x16x4xf32>
    tpu.vector_store %arg6[%c1_73, %c1_74, %c0_75], %72 {strides = array<i32>} : memref<18x18x4xf32, #tpu.memory_space<vmem>>, vector<16x16x4xf32>,
    %c2_76 = arith.constant 2 : index
    %c1_77 = arith.constant 1 : index
    %c0_78 = arith.constant 0 : index
    %74 = vector.load %arg6[%c2_76, %c1_77, %c0_78] : memref<18x18x4xf32, #tpu.memory_space<vmem>>, vector<1x16x4xf32>
    %c0_79 = arith.constant 0 : index
    %c1_80 = arith.constant 1 : index
    %c0_81 = arith.constant 0 : index
    %75 = vector.load %arg6[%c0_79, %c1_80, %c0_81] : memref<18x18x4xf32, #tpu.memory_space<vmem>>, vector<1x16x4xf32>
    tpu.vector_store %arg6[%c0_79, %c1_80, %c0_81], %74 {strides = array<i32>} : memref<18x18x4xf32, #tpu.memory_space<vmem>>, vector<1x16x4xf32>,
    %c15 = arith.constant 15 : index
    %c1_82 = arith.constant 1 : index
    %c0_83 = arith.constant 0 : index
    %76 = vector.load %arg6[%c15, %c1_82, %c0_83] : memref<18x18x4xf32, #tpu.memory_space<vmem>>, vector<1x16x4xf32>
    %c17 = arith.constant 17 : index
    %c1_84 = arith.constant 1 : index
    %c0_85 = arith.constant 0 : index
    %77 = vector.load %arg6[%c17, %c1_84, %c0_85] : memref<18x18x4xf32, #tpu.memory_space<vmem>>, vector<1x16x4xf32>
    tpu.vector_store %arg6[%c17, %c1_84, %c0_85], %76 {strides = array<i32>} : memref<18x18x4xf32, #tpu.memory_space<vmem>>, vector<1x16x4xf32>,
    %c0_86 = arith.constant 0 : index
    %c2_87 = arith.constant 2 : index
    %c0_88 = arith.constant 0 : index
    %78 = vector.load %arg6[%c0_86, %c2_87, %c0_88] : memref<18x18x4xf32, #tpu.memory_space<vmem>>, vector<18x1x4xf32>
    %c0_89 = arith.constant 0 : index
    %c0_90 = arith.constant 0 : index
    %c0_91 = arith.constant 0 : index
    %79 = vector.load %arg6[%c0_89, %c0_90, %c0_91] : memref<18x18x4xf32, #tpu.memory_space<vmem>>, vector<18x1x4xf32>
    tpu.vector_store %arg6[%c0_89, %c0_90, %c0_91], %78 {strides = array<i32>} : memref<18x18x4xf32, #tpu.memory_space<vmem>>, vector<18x1x4xf32>,
    %c0_92 = arith.constant 0 : index
    %c15_93 = arith.constant 15 : index
    %c0_94 = arith.constant 0 : index
    %80 = vector.load %arg6[%c0_92, %c15_93, %c0_94] : memref<18x18x4xf32, #tpu.memory_space<vmem>>, vector<18x1x4xf32>
    %c0_95 = arith.constant 0 : index
    %c17_96 = arith.constant 17 : index
    %c0_97 = arith.constant 0 : index
    %81 = vector.load %arg6[%c0_95, %c17_96, %c0_97] : memref<18x18x4xf32, #tpu.memory_space<vmem>>, vector<18x1x4xf32>
    tpu.vector_store %arg6[%c0_95, %c17_96, %c0_97], %80 {strides = array<i32>} : memref<18x18x4xf32, #tpu.memory_space<vmem>>, vector<18x1x4xf32>,
    %c0_98 = arith.constant 0 : index
    %c0_99 = arith.constant 0 : index
    %c0_100 = arith.constant 0 : index
    %82 = vector.load %arg6[%c0_98, %c0_99, %c0_100] : memref<18x18x4xf32, #tpu.memory_space<vmem>>, vector<16x16x4xf32>
    %83 = vector.shape_cast %82 : vector<16x16x4xf32> to vector<256x4xf32>
    %c0_101 = arith.constant 0 : index
    %c0_102 = arith.constant 0 : index
    %84 = vector.load %arg5[%c0_101, %c0_102] : memref<256x12xf32, #tpu.memory_space<vmem>>, vector<256x4xf32>
    tpu.vector_store %arg5[%c0_101, %c0_102], %83 {strides = array<i32>} : memref<256x12xf32, #tpu.memory_space<vmem>>, vector<256x4xf32>,
    %c0_103 = arith.constant 0 : index
    %c1_104 = arith.constant 1 : index
    %c0_105 = arith.constant 0 : index
    %85 = vector.load %arg6[%c0_103, %c1_104, %c0_105] : memref<18x18x4xf32, #tpu.memory_space<vmem>>, vector<16x16x4xf32>
    %86 = vector.shape_cast %85 : vector<16x16x4xf32> to vector<256x4xf32>
    %c0_106 = arith.constant 0 : index
    %c4_107 = arith.constant 4 : index
    %87 = vector.load %arg5[%c0_106, %c4_107] : memref<256x12xf32, #tpu.memory_space<vmem>>, vector<256x4xf32>
    tpu.vector_store %arg5[%c0_106, %c4_107], %86 {strides = array<i32>} : memref<256x12xf32, #tpu.memory_space<vmem>>, vector<256x4xf32>,
    %c0_108 = arith.constant 0 : index
    %c2_109 = arith.constant 2 : index
    %c0_110 = arith.constant 0 : index
    %88 = vector.load %arg6[%c0_108, %c2_109, %c0_110] : memref<18x18x4xf32, #tpu.memory_space<vmem>>, vector<16x16x4xf32>
    %89 = vector.shape_cast %88 : vector<16x16x4xf32> to vector<256x4xf32>
    %c0_111 = arith.constant 0 : index
    %c8_112 = arith.constant 8 : index
    %90 = vector.load %arg5[%c0_111, %c8_112] : memref<256x12xf32, #tpu.memory_space<vmem>>, vector<256x4xf32>
    tpu.vector_store %arg5[%c0_111, %c8_112], %89 {strides = array<i32>} : memref<256x12xf32, #tpu.memory_space<vmem>>, vector<256x4xf32>,
    %c0_113 = arith.constant 0 : index
    %c0_114 = arith.constant 0 : index
    %91 = vector.load %arg5[%c0_113, %c0_114] : memref<256x12xf32, #tpu.memory_space<vmem>>, vector<256x12xf32>
    %c0_115 = arith.constant 0 : index
    %c0_116 = arith.constant 0 : index
    %c0_117 = arith.constant 0 : index
    %92 = vector.load %arg3[%c0_115, %c0_116, %c0_117] : memref<3x12x4xf32, #tpu.memory_space<vmem>>, vector<1x12x4xf32>
    %93 = vector.shape_cast %92 : vector<1x12x4xf32> to vector<12x4xf32>
    %cst_118 = arith.constant dense<0.000000e+00> : vector<256x4xf32>
    %94 = tpu.matmul %91, %93, %cst_118 {dimension_numbers = #tpu.dot_dimension_numbers<[1], [0], [0], [1], [0, 0, 1, 1], [], []>} : vector<256x12xf32>, vector<12x4xf32>, vector<256x4xf32> -> vector<256x4xf32>
    %c1_119 = arith.constant 1 : index
    %c0_120 = arith.constant 0 : index
    %c0_121 = arith.constant 0 : index
    %95 = vector.load %arg6[%c1_119, %c0_120, %c0_121] : memref<18x18x4xf32, #tpu.memory_space<vmem>>, vector<16x16x4xf32>
    %96 = vector.shape_cast %95 : vector<16x16x4xf32> to vector<256x4xf32>
    %c0_122 = arith.constant 0 : index
    %c0_123 = arith.constant 0 : index
    %97 = vector.load %arg5[%c0_122, %c0_123] : memref<256x12xf32, #tpu.memory_space<vmem>>, vector<256x4xf32>
    tpu.vector_store %arg5[%c0_122, %c0_123], %96 {strides = array<i32>} : memref<256x12xf32, #tpu.memory_space<vmem>>, vector<256x4xf32>,
    %c1_124 = arith.constant 1 : index
    %c1_125 = arith.constant 1 : index
    %c0_126 = arith.constant 0 : index
    %98 = vector.load %arg6[%c1_124, %c1_125, %c0_126] : memref<18x18x4xf32, #tpu.memory_space<vmem>>, vector<16x16x4xf32>
    %99 = vector.shape_cast %98 : vector<16x16x4xf32> to vector<256x4xf32>
    %c0_127 = arith.constant 0 : index
    %c4_128 = arith.constant 4 : index
    %100 = vector.load %arg5[%c0_127, %c4_128] : memref<256x12xf32, #tpu.memory_space<vmem>>, vector<256x4xf32>
    tpu.vector_store %arg5[%c0_127, %c4_128], %99 {strides = array<i32>} : memref<256x12xf32, #tpu.memory_space<vmem>>, vector<256x4xf32>,
    %c1_129 = arith.constant 1 : index
    %c2_130 = arith.constant 2 : index
    %c0_131 = arith.constant 0 : index
    %101 = vector.load %arg6[%c1_129, %c2_130, %c0_131] : memref<18x18x4xf32, #tpu.memory_space<vmem>>, vector<16x16x4xf32>
    %102 = vector.shape_cast %101 : vector<16x16x4xf32> to vector<256x4xf32>
    %c0_132 = arith.constant 0 : index
    %c8_133 = arith.constant 8 : index
    %103 = vector.load %arg5[%c0_132, %c8_133] : memref<256x12xf32, #tpu.memory_space<vmem>>, vector<256x4xf32>
    tpu.vector_store %arg5[%c0_132, %c8_133], %102 {strides = array<i32>} : memref<256x12xf32, #tpu.memory_space<vmem>>, vector<256x4xf32>,
    %c0_134 = arith.constant 0 : index
    %c0_135 = arith.constant 0 : index
    %104 = vector.load %arg5[%c0_134, %c0_135] : memref<256x12xf32, #tpu.memory_space<vmem>>, vector<256x12xf32>
    %c1_136 = arith.constant 1 : index
    %c0_137 = arith.constant 0 : index
    %c0_138 = arith.constant 0 : index
    %105 = vector.load %arg3[%c1_136, %c0_137, %c0_138] : memref<3x12x4xf32, #tpu.memory_space<vmem>>, vector<1x12x4xf32>
    %106 = vector.shape_cast %105 : vector<1x12x4xf32> to vector<12x4xf32>
    %cst_139 = arith.constant dense<0.000000e+00> : vector<256x4xf32>
    %107 = tpu.matmul %104, %106, %cst_139 {dimension_numbers = #tpu.dot_dimension_numbers<[1], [0], [0], [1], [0, 0, 1, 1], [], []>} : vector<256x12xf32>, vector<12x4xf32>, vector<256x4xf32> -> vector<256x4xf32>
    %108 = arith.addf %94, %107 : vector<256x4xf32>
    %c2_140 = arith.constant 2 : index
    %c0_141 = arith.constant 0 : index
    %c0_142 = arith.constant 0 : index
    %109 = vector.load %arg6[%c2_140, %c0_141, %c0_142] : memref<18x18x4xf32, #tpu.memory_space<vmem>>, vector<16x16x4xf32>
    %110 = vector.shape_cast %109 : vector<16x16x4xf32> to vector<256x4xf32>
    %c0_143 = arith.constant 0 : index
    %c0_144 = arith.constant 0 : index
    %111 = vector.load %arg5[%c0_143, %c0_144] : memref<256x12xf32, #tpu.memory_space<vmem>>, vector<256x4xf32>
    tpu.vector_store %arg5[%c0_143, %c0_144], %110 {strides = array<i32>} : memref<256x12xf32, #tpu.memory_space<vmem>>, vector<256x4xf32>,
    %c2_145 = arith.constant 2 : index
    %c1_146 = arith.constant 1 : index
    %c0_147 = arith.constant 0 : index
    %112 = vector.load %arg6[%c2_145, %c1_146, %c0_147] : memref<18x18x4xf32, #tpu.memory_space<vmem>>, vector<16x16x4xf32>
    %113 = vector.shape_cast %112 : vector<16x16x4xf32> to vector<256x4xf32>
    %c0_148 = arith.constant 0 : index
    %c4_149 = arith.constant 4 : index
    %114 = vector.load %arg5[%c0_148, %c4_149] : memref<256x12xf32, #tpu.memory_space<vmem>>, vector<256x4xf32>
    tpu.vector_store %arg5[%c0_148, %c4_149], %113 {strides = array<i32>} : memref<256x12xf32, #tpu.memory_space<vmem>>, vector<256x4xf32>,
    %c2_150 = arith.constant 2 : index
    %c2_151 = arith.constant 2 : index
    %c0_152 = arith.constant 0 : index
    %115 = vector.load %arg6[%c2_150, %c2_151, %c0_152] : memref<18x18x4xf32, #tpu.memory_space<vmem>>, vector<16x16x4xf32>
    %116 = vector.shape_cast %115 : vector<16x16x4xf32> to vector<256x4xf32>
    %c0_153 = arith.constant 0 : index
    %c8_154 = arith.constant 8 : index
    %117 = vector.load %arg5[%c0_153, %c8_154] : memref<256x12xf32, #tpu.memory_space<vmem>>, vector<256x4xf32>
    tpu.vector_store %arg5[%c0_153, %c8_154], %116 {strides = array<i32>} : memref<256x12xf32, #tpu.memory_space<vmem>>, vector<256x4xf32>,
    %c0_155 = arith.constant 0 : index
    %c0_156 = arith.constant 0 : index
    %118 = vector.load %arg5[%c0_155, %c0_156] : memref<256x12xf32, #tpu.memory_space<vmem>>, vector<256x12xf32>
    %c2_157 = arith.constant 2 : index
    %c0_158 = arith.constant 0 : index
    %c0_159 = arith.constant 0 : index
    %119 = vector.load %arg3[%c2_157, %c0_158, %c0_159] : memref<3x12x4xf32, #tpu.memory_space<vmem>>, vector<1x12x4xf32>
    %120 = vector.shape_cast %119 : vector<1x12x4xf32> to vector<12x4xf32>
    %cst_160 = arith.constant dense<0.000000e+00> : vector<256x4xf32>
    %121 = tpu.matmul %118, %120, %cst_160 {dimension_numbers = #tpu.dot_dimension_numbers<[1], [0], [0], [1], [0, 0, 1, 1], [], []>} : vector<256x12xf32>, vector<12x4xf32>, vector<256x4xf32> -> vector<256x4xf32>
    %122 = arith.addf %108, %121 : vector<256x4xf32>
    %cst_161 = arith.constant dense<0.000000e+00> : vector<4xf32>
    %123 = vector.multi_reduction <add>, %122, %cst_161 [0] : vector<256x4xf32> to vector<4xf32>
    %124 = vector.shape_cast %123 : vector<4xf32> to vector<1x4xf32>
    %125 = arith.mulf %122, %122 : vector<256x4xf32>
    %cst_162 = arith.constant dense<0.000000e+00> : vector<4xf32>
    %126 = vector.multi_reduction <add>, %125, %cst_162 [0] : vector<256x4xf32> to vector<4xf32>
    %127 = vector.shape_cast %126 : vector<4xf32> to vector<1x4xf32>
    %cst_163 = arith.constant 3.906250e-03 : f32
    %128 = vector.broadcast %cst_163 : f32 to vector<1x4xf32>
    %129 = arith.mulf %124, %128 : vector<1x4xf32>
    %cst_164 = arith.constant 3.906250e-03 : f32
    %130 = vector.broadcast %cst_164 : f32 to vector<1x4xf32>
    %131 = arith.mulf %127, %130 : vector<1x4xf32>
    %132 = arith.mulf %129, %129 : vector<1x4xf32>
    %133 = arith.subf %131, %132 : vector<1x4xf32>
    %cst_165 = arith.constant 0.000000e+00 : f32
    %134 = vector.broadcast %cst_165 : f32 to vector<1x4xf32>
    %135 = arith.maximumf %133, %134 : vector<1x4xf32>
    %136 = vector.broadcast %129 : vector<1x4xf32> to vector<256x4xf32>
    %137 = arith.subf %122, %136 : vector<256x4xf32>
    %cst_166 = arith.constant 9.99999974E-6 : f32
    %138 = vector.broadcast %cst_166 : f32 to vector<1x4xf32>
    %139 = arith.addf %135, %138 : vector<1x4xf32>
    %140 = math.rsqrt %139 : vector<1x4xf32>
    %141 = vector.broadcast %140 : vector<1x4xf32> to vector<256x4xf32>
    %142 = arith.mulf %137, %141 : vector<256x4xf32>
    %c0_167 = arith.constant 0 : index
    %c1_168 = arith.constant 1 : index
    %c1_169 = arith.constant 1 : index
    %c0_170 = arith.constant 0 : index
    %143 = vector.load %arg1[%c0_167, %c1_168, %c1_169, %c0_170] : memref<1x18x18x4xf32, #tpu.memory_space<vmem>>, vector<1x16x16x4xf32>
    %144 = vector.shape_cast %143 : vector<1x16x16x4xf32> to vector<16x16x4xf32>
    %145 = vector.shape_cast %142 : vector<256x4xf32> to vector<16x16x4xf32>
    %146 = arith.addf %144, %145 : vector<16x16x4xf32>
    %c0_171 = arith.constant 0 : index
    %c0_172 = arith.constant 0 : index
    %c0_173 = arith.constant 0 : index
    %c0_174 = arith.constant 0 : index
    %147 = vector.load %arg4[%c0_171, %c0_172, %c0_173, %c0_174] : memref<1x16x16x4xf32, #tpu.memory_space<vmem>>, vector<1x16x16x4xf32>
    %148 = vector.shape_cast %147 : vector<1x16x16x4xf32> to vector<16x16x4xf32>
    %149 = vector.shape_cast %146 : vector<16x16x4xf32> to vector<1x16x16x4xf32>
    tpu.vector_store %arg4[%c0_171, %c0_172, %c0_173, %c0_174], %149 {strides = array<i32>} : memref<1x16x16x4xf32, #tpu.memory_space<vmem>>, vector<1x16x16x4xf32>,
    return
  }
  func.func @transform_0(%arg0: i32) -> (i32, i32, i32, i32) {
    %c0_i32 = arith.constant 0 : i32
    %c0_i32_0 = arith.constant 0 : i32
    %c0_i32_1 = arith.constant 0 : i32
    %c0_i32_2 = arith.constant 0 : i32
    return %arg0, %c0_i32, %c0_i32_0, %c0_i32_1 : i32, i32, i32, i32
  }
  func.func @transform_1(%arg0: i32) -> (i32, i32, i32) {
    %c0_i32 = arith.constant 0 : i32
    %c0_i32_0 = arith.constant 0 : i32
    %c0_i32_1 = arith.constant 0 : i32
    %c0_i32_2 = arith.constant 0 : i32
    return %c0_i32, %c0_i32_0, %c0_i32_1 : i32, i32, i32
  }
  func.func @transform_2(%arg0: i32) -> (i32, i32, i32) {
    %c0_i32 = arith.constant 0 : i32
    %c0_i32_0 = arith.constant 0 : i32
    %c0_i32_1 = arith.constant 0 : i32
    %c0_i32_2 = arith.constant 0 : i32
    return %c0_i32, %c0_i32_0, %c0_i32_1 : i32, i32, i32
  }
  func.func @transform_3(%arg0: i32) -> (i32, i32, i32, i32) {
    %c0_i32 = arith.constant 0 : i32
    %c0_i32_0 = arith.constant 0 : i32
    %c0_i32_1 = arith.constant 0 : i32
    %c0_i32_2 = arith.constant 0 : i32
    return %arg0, %c0_i32, %c0_i32_0, %c0_i32_1 : i32, i32, i32, i32
  }
}

</mosaic_0001>

<llo_original>
// kernel: tpu_custom_call.1
$region0: #{tpu_custom_call.1}
  #allocation0 [shape = 'u32[]', space=smem, size = 0x4, offset = 0x4, fixed_abs, tag = 'smem constant byte address 0x4 - core index']
  #allocation1 [shape = 'u32[144,128]{1,0:T(1,128)}', space=vmem, size = 0x12000, scoped, tag = 'internal scratch']
  #allocation2 [shape = 'f32[256,12]{1,0:T(8,128)}', space=vmem, size = 0x20000, scoped, tag = 'scratch operand']
  #allocation3 [shape = 'f32[18,18,4]{2,1,0:T(8,128)}', space=vmem, size = 0x36000, scoped, tag = 'scratch operand']
  %s0 = inlined_call_operand.vmem [shape: f32[2,18,18,4], index: 0, kind: input, shape index: {}]
  %s1 = inlined_call_operand.vmem [shape: f32[3,12,4], index: 1, kind: input, shape index: {}]
  %s2 = inlined_call_operand.vmem [shape: f32[3,12,4], index: 2, kind: input, shape index: {}]
  %s3 = inlined_call_operand.vmem [shape: f32[2,16,16,4], index: 3, kind: output, shape index: {}]
  %s4 = sld [smem:[#allocation0]]
  $region45: #{tpu_custom_call.1} parent=0
    _
  %s6 = ssub.s32 1, %s4
  %s7 = scalar_select 0, %s6, %s4
  loop: start=0, step=1, limit=4
  $region2: #{tpu_custom_call.1} parent=0 // loop_pre_header
    _
  $region3: #{tpu_custom_call.1} parent=0 // loop_header
    %s9 = sphi 0, %s13
    %p10 = scmp.ge.s32.totalorder %s9, 4
    %s19 = sphi 0, %s21
    %s22 = sphi 0, %s19
    %s23 = sphi 0, %s22
    %s39 = sphi 0, %s23
    %s43 = sphi 0, %s43
    %s45 = sphi 0, %s43
    %s46 = sphi 0, %s45
    %s60 = sphi 0, %s46
    %s64 = sphi 0, %s64
    %s66 = sphi 0, %s64
    %s67 = sphi 0, %s66
    %s81 = sphi 0, %s67
    %s87 = sphi 0, %s89
    %s90 = sphi 0, %s87
    %s91 = sphi 0, %s90
    %s107 = sphi 0, %s91
  $region4: #{tpu_custom_call.1} parent=0 // loop_header_branch
    %12 = sbr.rel (%p10) target = $region8
  $region5: #{tpu_custom_call.1} parent=0 // loop_body
    %s14 = ssub.s32 %s9, 1
    %s15 = ssub.s32 %s9, 2
    %s16 = sadd.s32 %s9, 1
    %s17 = ssub.s32 %s9, %s16
    %p18 = scmp.eq.s32.totalorder %s17, 0
    %s20 = sadd.s32 %s19, 1
    %s21 = scalar_select %p18, %s19, %s20
    %p24 = pneg %p18
    %p25 = scmp.eq.s32.totalorder %s9, 1
    %p26 = por %p24, %p25
    %p27 = scmp.ne.s32.totalorder %s19, %s22
    %p28 = scmp.eq.s32.totalorder %s9, 0
    %p29 = por %p27, %p28
    %p30 = scmp.ne.s32.totalorder %s19, %s22
    %p31 = scmp.eq.s32.totalorder %s14, 1
    %p32 = por %p30, %p31
    %p33 = scmp.ne.s32.totalorder %s22, %s23
    %p34 = scmp.eq.s32.totalorder %s14, 0
    %p35 = por %p33, %p34
    %p36 = scmp.ne.s32.totalorder %s22, %s23
    %p37 = scmp.eq.s32.totalorder %s15, 1
    %p38 = por %p36, %p37
    %p40 = scmp.ne.s32.totalorder %s23, %s39
    %p41 = scmp.eq.s32.totalorder %s15, 0
    %p42 = por %p40, %p41
    %s44 = sadd.s32 %s43, 1
    %p47 = scmp.eq.s32.totalorder %s9, 1
    %p48 = scmp.ne.s32.totalorder %s43, %s45
    %p49 = scmp.eq.s32.totalorder %s9, 0
    %p50 = por %p48, %p49
    %p51 = scmp.ne.s32.totalorder %s43, %s45
    %p52 = scmp.eq.s32.totalorder %s14, 1
    %p53 = por %p51, %p52
    %p54 = scmp.ne.s32.totalorder %s45, %s46
    %p55 = scmp.eq.s32.totalorder %s14, 0
    %p56 = por %p54, %p55
    %p57 = scmp.ne.s32.totalorder %s45, %s46
    %p58 = scmp.eq.s32.totalorder %s15, 1
    %p59 = por %p57, %p58
    %p61 = scmp.ne.s32.totalorder %s46, %s60
    %p62 = scmp.eq.s32.totalorder %s15, 0
    %p63 = por %p61, %p62
    %s65 = sadd.s32 %s64, 1
    %p68 = scmp.eq.s32.totalorder %s9, 1
    %p69 = scmp.ne.s32.totalorder %s64, %s66
    %p70 = scmp.eq.s32.totalorder %s9, 0
    %p71 = por %p69, %p70
    %p72 = scmp.ne.s32.totalorder %s64, %s66
    %p73 = scmp.eq.s32.totalorder %s14, 1
    %p74 = por %p72, %p73
    %p75 = scmp.ne.s32.totalorder %s66, %s67
    %p76 = scmp.eq.s32.totalorder %s14, 0
    %p77 = por %p75, %p76
    %p78 = scmp.ne.s32.totalorder %s66, %s67
    %p79 = scmp.eq.s32.totalorder %s15, 1
    %p80 = por %p78, %p79
    %p82 = scmp.ne.s32.totalorder %s67, %s81
    %p83 = scmp.eq.s32.totalorder %s15, 0
    %p84 = por %p82, %p83
    %s85 = ssub.s32 %s9, %s16
    %p86 = scmp.eq.s32.totalorder %s85, 0
    %s88 = sadd.s32 %s87, 1
    %s89 = scalar_select %p86, %s87, %s88
    %p92 = pneg %p86
    %p93 = scmp.eq.s32.totalorder %s9, 1
    %p94 = por %p92, %p93
    %p95 = scmp.ne.s32.totalorder %s87, %s90
    %p96 = scmp.eq.s32.totalorder %s9, 0
    %p97 = por %p95, %p96
    %p98 = scmp.ne.s32.totalorder %s87, %s90
    %p99 = scmp.eq.s32.totalorder %s14, 1
    %p100 = por %p98, %p99
    %p101 = scmp.ne.s32.totalorder %s90, %s91
    %p102 = scmp.eq.s32.totalorder %s14, 0
    %p103 = por %p101, %p102
    %p104 = scmp.ne.s32.totalorder %s90, %s91
    %p105 = scmp.eq.s32.totalorder %s15, 1
    %p106 = por %p104, %p105
    %p108 = scmp.ne.s32.totalorder %s91, %s107
    %p109 = scmp.eq.s32.totalorder %s15, 0
    %p110 = por %p108, %p109
    %p111 = scmp.le.s32.totalorder 1, %s9
    %p112 = scmp.lt.s32.totalorder %s9, 3
    %p113 = pnand %p111, %p112
    %p114 = pneg %p113
    // Predicated region
    $region9: #{tpu_custom_call.1} parent=5 // pred_check
      _
    $region10: #{tpu_custom_call.1} parent=5 // pred_check_branch
      %116 = sbr.rel (%p113) target = $region12
    $region11: #{tpu_custom_call.1} parent=5 // pred_region
      %s117 = ssub.s32 %s9, 1
      // Predicated region
      $region13: #{tpu_custom_call.1} parent=11 // pred_check
        %p118 = pneg %p56
      $region14: #{tpu_custom_call.1} parent=11 // pred_check_branch
        %120 = sbr.rel (%p118) target = $region16
      $region15: #{tpu_custom_call.1} parent=11 // pred_region
        _
      $region16: #{tpu_custom_call.1} parent=11 // pred_fallthru
        _
      // Predicated region
      $region17: #{tpu_custom_call.1} parent=11 // pred_check
        %p121 = pneg %p77
      $region18: #{tpu_custom_call.1} parent=11 // pred_check_branch
        %123 = sbr.rel (%p121) target = $region20
      $region19: #{tpu_custom_call.1} parent=11 // pred_region
        _
      $region20: #{tpu_custom_call.1} parent=11 // pred_fallthru
        _
    $region12: #{tpu_custom_call.1} parent=5 // pred_fallthru
      _
    %p124 = scmp.lt.s32.totalorder %s9, 2
    // Predicated region
    $region21: #{tpu_custom_call.1} parent=5 // pred_check
      %p125 = pneg %p124
    $region22: #{tpu_custom_call.1} parent=5 // pred_check_branch
      %127 = sbr.rel (%p125) target = $region24
    $region23: #{tpu_custom_call.1} parent=5 // pred_region
      // Predicated region
      $region25: #{tpu_custom_call.1} parent=23 // pred_check
        %p128 = pneg %p29
      $region26: #{tpu_custom_call.1} parent=23 // pred_check_branch
        %130 = sbr.rel (%p128) target = $region28
      $region27: #{tpu_custom_call.1} parent=23 // pred_region
        %p131 = scmp.lt.s32.totalorder %s9, 1
        %s132 = scalar_select %p131, %s9, 1
        %s133 = smul.addr %s132, 54
        %s134 = smul.addr %s133, 8
        %s135 = scalar_lea.vmem %s0, %s134
      $region28: #{tpu_custom_call.1} parent=23 // pred_fallthru
        _
    $region24: #{tpu_custom_call.1} parent=5 // pred_fallthru
      _
    %p136 = scmp.le.s32.totalorder 1, %s9
    %p137 = scmp.lt.s32.totalorder %s9, 3
    %p138 = pnand %p136, %p137
    %p139 = pneg %p138
    // Predicated region
    $region29: #{tpu_custom_call.1} parent=5 // pred_check
      _
    $region30: #{tpu_custom_call.1} parent=5 // pred_check_branch
      %141 = sbr.rel (%p138) target = $region32
    $region31: #{tpu_custom_call.1} parent=5 // pred_region
      %s142 = ssub.s32 %s9, 1
      %p143 = scmp.lt.s32.totalorder %s14, 1
      %s144 = scalar_select %p143, %s14, 1
      %s145 = smul.addr %s144, 54
      %s146 = smul.addr %s145, 8
      %s147 = scalar_lea.vmem %s0, %s146
      %p148 = pneg %p35
      %p149 = pneg %p32
      %p150 = pneg %p56
      %p151 = pneg %p53
      %p152 = pneg %p77
      %p153 = pneg %p74
      %p154 = pneg %p103
      %p155 = pneg %p100
      %p156 = scmp.lt.s32.totalorder %s14, 1
      %s157 = scalar_select %p156, %s14, 1
      %s158 = smul.addr %s157, 32
      %s159 = smul.addr %s158, 8
      %s160 = scalar_lea.vmem %s3, %s159
      %p161 = scmp.lt.s32.totalorder %s14, 1
      %s162 = scalar_select %p161, %s14, 1
      %s163 = smul.addr %s162, 54
      %s164 = smul.addr %s163, 8
      %s165 = scalar_lea.vmem %s0, %s164
      %p166 = scmp.lt.s32.totalorder %s14, 1
      %s167 = scalar_select %p166, %s14, 1
      %s168 = smul.addr %s167, 32
      %s169 = smul.addr %s168, 8
      %s170 = scalar_lea.vmem %s3, %s169
      %v171 = vld [vmem:[%s165] sm:$0xff]
      %v172 = vld [vmem:[%s165 + $0x8] sm:$0xff]
      %v173 = vld [vmem:[%s165 + $0x18] sm:$0xff]
      %v174 = vld [vmem:[%s165 + $0x20] sm:$0xff]
      %v175 = vld [vmem:[%s165 + $0x30] sm:$0xff]
      %v176 = vld [vmem:[%s165 + $0x38] sm:$0xff]
      %v177 = vld [vmem:[%s165 + $0x48] sm:$0xff]
      %v178 = vld [vmem:[%s165 + $0x50] sm:$0xff]
      %v179 = vld [vmem:[%s165 + $0x60] sm:$0xff]
      %v180 = vld [vmem:[%s165 + $0x68] sm:$0xff]
      %v181 = vld [vmem:[%s165 + $0x78] sm:$0xff]
      %v182 = vld [vmem:[%s165 + $0x80] sm:$0xff]
      %v183 = vld [vmem:[%s165 + $0x90] sm:$0xff]
      %v184 = vld [vmem:[%s165 + $0x98] sm:$0xff]
      %v185 = vld [vmem:[%s165 + $0xa8] sm:$0xff]
      %v186 = vld [vmem:[%s165 + $0xb0] sm:$0xff]
      %v187 = vld [vmem:[%s165 + $0xc0] sm:$0xff]
      %v188 = vld [vmem:[%s165 + $0xc8] sm:$0xff]
      %v189 = vld [vmem:[%s165 + $0xd8] sm:$0xff]
      %v190 = vld [vmem:[%s165 + $0xe0] sm:$0xff]
      %v191 = vld [vmem:[%s165 + $0xf0] sm:$0xff]
      %v192 = vld [vmem:[%s165 + $0xf8] sm:$0xff]
      %v193 = vld [vmem:[%s165 + $0x108] sm:$0xff]
      %v194 = vld [vmem:[%s165 + $0x110] sm:$0xff]
      %v195 = vld [vmem:[%s165 + $0x120] sm:$0xff]
      %v196 = vld [vmem:[%s165 + $0x128] sm:$0xff]
      %v197 = vld [vmem:[%s165 + $0x138] sm:$0xff]
      %v198 = vld [vmem:[%s165 + $0x140] sm:$0xff]
      %v199 = vld [vmem:[%s165 + $0x150] sm:$0xff]
      %v200 = vld [vmem:[%s165 + $0x158] sm:$0xff]
      %v201 = vld [vmem:[%s165 + $0x168] sm:$0xff]
      %v202 = vld [vmem:[%s165 + $0x170] sm:$0xff]
      %vm203 = vcmask 31744
      %204 = vst.msk [vmem:[#allocation2] sm:$0xff] %vm203, %v171
      %205 = vst.msk [vmem:[#allocation2 + $0x8] sm:$0xff] %vm203, %v172
      %206 = vst.msk [vmem:[#allocation2 + $0x10] sm:$0xff] %vm203, %v173
      %207 = vst.msk [vmem:[#allocation2 + $0x18] sm:$0xff] %vm203, %v174
      %208 = vst.msk [vmem:[#allocation2 + $0x20] sm:$0xff] %vm203, %v175
      %209 = vst.msk [vmem:[#allocation2 + $0x28] sm:$0xff] %vm203, %v176
      %210 = vst.msk [vmem:[#allocation2 + $0x30] sm:$0xff] %vm203, %v177
      %211 = vst.msk [vmem:[#allocation2 + $0x38] sm:$0xff] %vm203, %v178
      %212 = vst.msk [vmem:[#allocation2 + $0x40] sm:$0xff] %vm203, %v179
      %213 = vst.msk [vmem:[#allocation2 + $0x48] sm:$0xff] %vm203, %v180
      %214 = vst.msk [vmem:[#allocation2 + $0x50] sm:$0xff] %vm203, %v181
      %215 = vst.msk [vmem:[#allocation2 + $0x58] sm:$0xff] %vm203, %v182
      %216 = vst.msk [vmem:[#allocation2 + $0x60] sm:$0xff] %vm203, %v183
      %217 = vst.msk [vmem:[#allocation2 + $0x68] sm:$0xff] %vm203, %v184
      %218 = vst.msk [vmem:[#allocation2 + $0x70] sm:$0xff] %vm203, %v185
      %219 = vst.msk [vmem:[#allocation2 + $0x78] sm:$0xff] %vm203, %v186
      %220 = vst.msk [vmem:[#allocation2 + $0x80] sm:$0xff] %vm203, %v187
      %221 = vst.msk [vmem:[#allocation2 + $0x88] sm:$0xff] %vm203, %v188
      %222 = vst.msk [vmem:[#allocation2 + $0x90] sm:$0xff] %vm203, %v189
      %223 = vst.msk [vmem:[#allocation2 + $0x98] sm:$0xff] %vm203, %v190
      %224 = vst.msk [vmem:[#allocation2 + $0xa0] sm:$0xff] %vm203, %v191
      %225 = vst.msk [vmem:[#allocation2 + $0xa8] sm:$0xff] %vm203, %v192
      %226 = vst.msk [vmem:[#allocation2 + $0xb0] sm:$0xff] %vm203, %v193
      %227 = vst.msk [vmem:[#allocation2 + $0xb8] sm:$0xff] %vm203, %v194
      %228 = vst.msk [vmem:[#allocation2 + $0xc0] sm:$0xff] %vm203, %v195
      %229 = vst.msk [vmem:[#allocation2 + $0xc8] sm:$0xff] %vm203, %v196
      %230 = vst.msk [vmem:[#allocation2 + $0xd0] sm:$0xff] %vm203, %v197
      %231 = vst.msk [vmem:[#allocation2 + $0xd8] sm:$0xff] %vm203, %v198
      %232 = vst.msk [vmem:[#allocation2 + $0xe0] sm:$0xff] %vm203, %v199
      %233 = vst.msk [vmem:[#allocation2 + $0xe8] sm:$0xff] %vm203, %v200
      %234 = vst.msk [vmem:[#allocation2 + $0xf0] sm:$0xff] %vm203, %v201
      %235 = vst.msk [vmem:[#allocation2 + $0xf8] sm:$0xff] %vm203, %v202
      %v236 = vld [vmem:[%s165 + $0x1] sm:$0xff]
      %v237 = vld [vmem:[%s165 + $0x9] sm:$0xff]
      %v238 = vld [vmem:[%s165 + $0x19] sm:$0xff]
      %v239 = vld [vmem:[%s165 + $0x21] sm:$0xff]
      %v240 = vld [vmem:[%s165 + $0x31] sm:$0xff]
      %v241 = vld [vmem:[%s165 + $0x39] sm:$0xff]
      %v242 = vld [vmem:[%s165 + $0x49] sm:$0xff]
      %v243 = vld [vmem:[%s165 + $0x51] sm:$0xff]
      %v244 = vld [vmem:[%s165 + $0x61] sm:$0xff]
      %v245 = vld [vmem:[%s165 + $0x69] sm:$0xff]
      %v246 = vld [vmem:[%s165 + $0x79] sm:$0xff]
      %v247 = vld [vmem:[%s165 + $0x81] sm:$0xff]
      %v248 = vld [vmem:[%s165 + $0x91] sm:$0xff]
      %v249 = vld [vmem:[%s165 + $0x99] sm:$0xff]
      %v250 = vld [vmem:[%s165 + $0xa9] sm:$0xff]
      %v251 = vld [vmem:[%s165 + $0xb1] sm:$0xff]
      %v252 = vld [vmem:[%s165 + $0xc1] sm:$0xff]
      %v253 = vld [vmem:[%s165 + $0xc9] sm:$0xff]
      %v254 = vld [vmem:[%s165 + $0xd9] sm:$0xff]
      %v255 = vld [vmem:[%s165 + $0xe1] sm:$0xff]
      %v256 = vld [vmem:[%s165 + $0xf1] sm:$0xff]
      %v257 = vld [vmem:[%s165 + $0xf9] sm:$0xff]
      %v258 = vld [vmem:[%s165 + $0x109] sm:$0xff]
      %v259 = vld [vmem:[%s165 + $0x111] sm:$0xff]
      %v260 = vld [vmem:[%s165 + $0x121] sm:$0xff]
      %v261 = vld [vmem:[%s165 + $0x129] sm:$0xff]
      %v262 = vld [vmem:[%s165 + $0x139] sm:$0xff]
      %v263 = vld [vmem:[%s165 + $0x141] sm:$0xff]
      %v264 = vld [vmem:[%s165 + $0x151] sm:$0xff]
      %v265 = vld [vmem:[%s165 + $0x159] sm:$0xff]
      %v266 = vld [vmem:[%s165 + $0x169] sm:$0xff]
      %v267 = vld [vmem:[%s165 + $0x171] sm:$0xff]
      %300 = vrot.lane.b32.xlu0 %v236, 4
      %v301 = vpop.permute.xlu0 %300
      %302 = vrot.lane.b32.xlu0 %v237, 4
      %v303 = vpop.permute.xlu0 %302
      %304 = vrot.lane.b32.xlu0 %v238, 4
      %v305 = vpop.permute.xlu0 %304
      %306 = vrot.lane.b32.xlu0 %v239, 4
      %v307 = vpop.permute.xlu0 %306
      %308 = vrot.lane.b32.xlu0 %v240, 4
      %v309 = vpop.permute.xlu0 %308
      %310 = vrot.lane.b32.xlu0 %v241, 4
      %v311 = vpop.permute.xlu0 %310
      %312 = vrot.lane.b32.xlu0 %v242, 4
      %v313 = vpop.permute.xlu0 %312
      %314 = vrot.lane.b32.xlu0 %v243, 4
      %v315 = vpop.permute.xlu0 %314
      %316 = vrot.lane.b32.xlu0 %v244, 4
      %v317 = vpop.permute.xlu0 %316
      %318 = vrot.lane.b32.xlu0 %v245, 4
      %v319 = vpop.permute.xlu0 %318
      %320 = vrot.lane.b32.xlu0 %v246, 4
      %v321 = vpop.permute.xlu0 %320
      %322 = vrot.lane.b32.xlu0 %v247, 4
      %v323 = vpop.permute.xlu0 %322
      %324 = vrot.lane.b32.xlu0 %v248, 4
      %v325 = vpop.permute.xlu0 %324
      %326 = vrot.lane.b32.xlu0 %v249, 4
      %v327 = vpop.permute.xlu0 %326
      %328 = vrot.lane.b32.xlu0 %v250, 4
      %v329 = vpop.permute.xlu0 %328
      %330 = vrot.lane.b32.xlu0 %v251, 4
      %v331 = vpop.permute.xlu0 %330
      %332 = vrot.lane.b32.xlu0 %v252, 4
      %v333 = vpop.permute.xlu0 %332
      %334 = vrot.lane.b32.xlu0 %v253, 4
      %v335 = vpop.permute.xlu0 %334
      %336 = vrot.lane.b32.xlu0 %v254, 4
      %v337 = vpop.permute.xlu0 %336
      %338 = vrot.lane.b32.xlu0 %v255, 4
      %v339 = vpop.permute.xlu0 %338
      %340 = vrot.lane.b32.xlu0 %v256, 4
      %v341 = vpop.permute.xlu0 %340
      %342 = vrot.lane.b32.xlu0 %v257, 4
      %v343 = vpop.permute.xlu0 %342
      %344 = vrot.lane.b32.xlu0 %v258, 4
      %v345 = vpop.permute.xlu0 %344
      %346 = vrot.lane.b32.xlu0 %v259, 4
      %v347 = vpop.permute.xlu0 %346
      %348 = vrot.lane.b32.xlu0 %v260, 4
      %v349 = vpop.permute.xlu0 %348
      %350 = vrot.lane.b32.xlu0 %v261, 4
      %v351 = vpop.permute.xlu0 %350
      %352 = vrot.lane.b32.xlu0 %v262, 4
      %v353 = vpop.permute.xlu0 %352
      %354 = vrot.lane.b32.xlu0 %v263, 4
      %v355 = vpop.permute.xlu0 %354
      %356 = vrot.lane.b32.xlu0 %v264, 4
      %v357 = vpop.permute.xlu0 %356
      %358 = vrot.lane.b32.xlu0 %v265, 4
      %v359 = vpop.permute.xlu0 %358
      %360 = vrot.lane.b32.xlu0 %v266, 4
      %v361 = vpop.permute.xlu0 %360
      %362 = vrot.lane.b32.xlu0 %v267, 4
      %v363 = vpop.permute.xlu0 %362
      %vm396 = vcmask 64544
      %397 = vst.msk [vmem:[#allocation2] sm:$0xff] %vm396, %v301
      %398 = vst.msk [vmem:[#allocation2 + $0x8] sm:$0xff] %vm396, %v303
      %399 = vst.msk [vmem:[#allocation2 + $0x10] sm:$0xff] %vm396, %v305
      %400 = vst.msk [vmem:[#allocation2 + $0x18] sm:$0xff] %vm396, %v307
      %401 = vst.msk [vmem:[#allocation2 + $0x20] sm:$0xff] %vm396, %v309
      %402 = vst.msk [vmem:[#allocation2 + $0x28] sm:$0xff] %vm396, %v311
      %403 = vst.msk [vmem:[#allocation2 + $0x30] sm:$0xff] %vm396, %v313
      %404 = vst.msk [vmem:[#allocation2 + $0x38] sm:$0xff] %vm396, %v315
      %405 = vst.msk [vmem:[#allocation2 + $0x40] sm:$0xff] %vm396, %v317
      %406 = vst.msk [vmem:[#allocation2 + $0x48] sm:$0xff] %vm396, %v319
      %407 = vst.msk [vmem:[#allocation2 + $0x50] sm:$0xff] %vm396, %v321
      %408 = vst.msk [vmem:[#allocation2 + $0x58] sm:$0xff] %vm396, %v323
      %409 = vst.msk [vmem:[#allocation2 + $0x60] sm:$0xff] %vm396, %v325
      %410 = vst.msk [vmem:[#allocation2 + $0x68] sm:$0xff] %vm396, %v327
      %411 = vst.msk [vmem:[#allocation2 + $0x70] sm:$0xff] %vm396, %v329
      %412 = vst.msk [vmem:[#allocation2 + $0x78] sm:$0xff] %vm396, %v331
      %413 = vst.msk [vmem:[#allocation2 + $0x80] sm:$0xff] %vm396, %v333
      %414 = vst.msk [vmem:[#allocation2 + $0x88] sm:$0xff] %vm396, %v335
      %415 = vst.msk [vmem:[#allocation2 + $0x90] sm:$0xff] %vm396, %v337
      %416 = vst.msk [vmem:[#allocation2 + $0x98] sm:$0xff] %vm396, %v339
      %417 = vst.msk [vmem:[#allocation2 + $0xa0] sm:$0xff] %vm396, %v341
      %418 = vst.msk [vmem:[#allocation2 + $0xa8] sm:$0xff] %vm396, %v343
      %419 = vst.msk [vmem:[#allocation2 + $0xb0] sm:$0xff] %vm396, %v345
      %420 = vst.msk [vmem:[#allocation2 + $0xb8] sm:$0xff] %vm396, %v347
      %421 = vst.msk [vmem:[#allocation2 + $0xc0] sm:$0xff] %vm396, %v349
      %422 = vst.msk [vmem:[#allocation2 + $0xc8] sm:$0xff] %vm396, %v351
      %423 = vst.msk [vmem:[#allocation2 + $0xd0] sm:$0xff] %vm396, %v353
      %424 = vst.msk [vmem:[#allocation2 + $0xd8] sm:$0xff] %vm396, %v355
      %425 = vst.msk [vmem:[#allocation2 + $0xe0] sm:$0xff] %vm396, %v357
      %426 = vst.msk [vmem:[#allocation2 + $0xe8] sm:$0xff] %vm396, %v359
      %427 = vst.msk [vmem:[#allocation2 + $0xf0] sm:$0xff] %vm396, %v361
      %428 = vst.msk [vmem:[#allocation2 + $0xf8] sm:$0xff] %vm396, %v363
      %v429 = vld [vmem:[%s165 + $0x2] sm:$0xff]
      %v430 = vld [vmem:[%s165 + $0xa] sm:$0xff]
      %v431 = vld [vmem:[%s165 + $0x1a] sm:$0xff]
      %v432 = vld [vmem:[%s165 + $0x22] sm:$0xff]
      %v433 = vld [vmem:[%s165 + $0x32] sm:$0xff]
      %v434 = vld [vmem:[%s165 + $0x3a] sm:$0xff]
      %v435 = vld [vmem:[%s165 + $0x4a] sm:$0xff]
      %v436 = vld [vmem:[%s165 + $0x52] sm:$0xff]
      %v437 = vld [vmem:[%s165 + $0x62] sm:$0xff]
      %v438 = vld [vmem:[%s165 + $0x6a] sm:$0xff]
      %v439 = vld [vmem:[%s165 + $0x7a] sm:$0xff]
      %v440 = vld [vmem:[%s165 + $0x82] sm:$0xff]
      %v441 = vld [vmem:[%s165 + $0x92] sm:$0xff]
      %v442 = vld [vmem:[%s165 + $0x9a] sm:$0xff]
      %v443 = vld [vmem:[%s165 + $0xaa] sm:$0xff]
      %v444 = vld [vmem:[%s165 + $0xb2] sm:$0xff]
      %v445 = vld [vmem:[%s165 + $0xc2] sm:$0xff]
      %v446 = vld [vmem:[%s165 + $0xca] sm:$0xff]
      %v447 = vld [vmem:[%s165 + $0xda] sm:$0xff]
      %v448 = vld [vmem:[%s165 + $0xe2] sm:$0xff]
      %v449 = vld [vmem:[%s165 + $0xf2] sm:$0xff]
      %v450 = vld [vmem:[%s165 + $0xfa] sm:$0xff]
      %v451 = vld [vmem:[%s165 + $0x10a] sm:$0xff]
      %v452 = vld [vmem:[%s165 + $0x112] sm:$0xff]
      %v453 = vld [vmem:[%s165 + $0x122] sm:$0xff]
      %v454 = vld [vmem:[%s165 + $0x12a] sm:$0xff]
      %v455 = vld [vmem:[%s165 + $0x13a] sm:$0xff]
      %v456 = vld [vmem:[%s165 + $0x142] sm:$0xff]
      %v457 = vld [vmem:[%s165 + $0x152] sm:$0xff]
      %v458 = vld [vmem:[%s165 + $0x15a] sm:$0xff]
      %v459 = vld [vmem:[%s165 + $0x16a] sm:$0xff]
      %v460 = vld [vmem:[%s165 + $0x172] sm:$0xff]
      %493 = vrot.lane.b32.xlu0 %v429, 8
      %v494 = vpop.permute.xlu0 %493
      %495 = vrot.lane.b32.xlu0 %v430, 8
      %v496 = vpop.permute.xlu0 %495
      %497 = vrot.lane.b32.xlu0 %v431, 8
      %v498 = vpop.permute.xlu0 %497
      %499 = vrot.lane.b32.xlu0 %v432, 8
      %v500 = vpop.permute.xlu0 %499
      %501 = vrot.lane.b32.xlu0 %v433, 8
      %v502 = vpop.permute.xlu0 %501
      %503 = vrot.lane.b32.xlu0 %v434, 8
      %v504 = vpop.permute.xlu0 %503
      %505 = vrot.lane.b32.xlu0 %v435, 8
      %v506 = vpop.permute.xlu0 %505
      %507 = vrot.lane.b32.xlu0 %v436, 8
      %v508 = vpop.permute.xlu0 %507
      %509 = vrot.lane.b32.xlu0 %v437, 8
      %v510 = vpop.permute.xlu0 %509
      %511 = vrot.lane.b32.xlu0 %v438, 8
      %v512 = vpop.permute.xlu0 %511
      %513 = vrot.lane.b32.xlu0 %v439, 8
      %v514 = vpop.permute.xlu0 %513
      %515 = vrot.lane.b32.xlu0 %v440, 8
      %v516 = vpop.permute.xlu0 %515
      %517 = vrot.lane.b32.xlu0 %v441, 8
      %v518 = vpop.permute.xlu0 %517
      %519 = vrot.lane.b32.xlu0 %v442, 8
      %v520 = vpop.permute.xlu0 %519
      %521 = vrot.lane.b32.xlu0 %v443, 8
      %v522 = vpop.permute.xlu0 %521
      %523 = vrot.lane.b32.xlu0 %v444, 8
      %v524 = vpop.permute.xlu0 %523
      %525 = vrot.lane.b32.xlu0 %v445, 8
      %v526 = vpop.permute.xlu0 %525
      %527 = vrot.lane.b32.xlu0 %v446, 8
      %v528 = vpop.permute.xlu0 %527
      %529 = vrot.lane.b32.xlu0 %v447, 8
      %v530 = vpop.permute.xlu0 %529
      %531 = vrot.lane.b32.xlu0 %v448, 8
      %v532 = vpop.permute.xlu0 %531
      %533 = vrot.lane.b32.xlu0 %v449, 8
      %v534 = vpop.permute.xlu0 %533
      %535 = vrot.lane.b32.xlu0 %v450, 8
      %v536 = vpop.permute.xlu0 %535
      %537 = vrot.lane.b32.xlu0 %v451, 8
      %v538 = vpop.permute.xlu0 %537
      %539 = vrot.lane.b32.xlu0 %v452, 8
      %v540 = vpop.permute.xlu0 %539
      %541 = vrot.lane.b32.xlu0 %v453, 8
      %v542 = vpop.permute.xlu0 %541
      %543 = vrot.lane.b32.xlu0 %v454, 8
      %v544 = vpop.permute.xlu0 %543
      %545 = vrot.lane.b32.xlu0 %v455, 8
      %v546 = vpop.permute.xlu0 %545
      %547 = vrot.lane.b32.xlu0 %v456, 8
      %v548 = vpop.permute.xlu0 %547
      %549 = vrot.lane.b32.xlu0 %v457, 8
      %v550 = vpop.permute.xlu0 %549
      %551 = vrot.lane.b32.xlu0 %v458, 8
      %v552 = vpop.permute.xlu0 %551
      %553 = vrot.lane.b32.xlu0 %v459, 8
      %v554 = vpop.permute.xlu0 %553
      %555 = vrot.lane.b32.xlu0 %v460, 8
      %v556 = vpop.permute.xlu0 %555
      %vm589 = vcmask 97344
      %590 = vst.msk [vmem:[#allocation2] sm:$0xff] %vm589, %v494
      %591 = vst.msk [vmem:[#allocation2 + $0x8] sm:$0xff] %vm589, %v496
      %592 = vst.msk [vmem:[#allocation2 + $0x10] sm:$0xff] %vm589, %v498
      %593 = vst.msk [vmem:[#allocation2 + $0x18] sm:$0xff] %vm589, %v500
      %594 = vst.msk [vmem:[#allocation2 + $0x20] sm:$0xff] %vm589, %v502
      %595 = vst.msk [vmem:[#allocation2 + $0x28] sm:$0xff] %vm589, %v504
      %596 = vst.msk [vmem:[#allocation2 + $0x30] sm:$0xff] %vm589, %v506
      %597 = vst.msk [vmem:[#allocation2 + $0x38] sm:$0xff] %vm589, %v508
      %598 = vst.msk [vmem:[#allocation2 + $0x40] sm:$0xff] %vm589, %v510
      %599 = vst.msk [vmem:[#allocation2 + $0x48] sm:$0xff] %vm589, %v512
      %600 = vst.msk [vmem:[#allocation2 + $0x50] sm:$0xff] %vm589, %v514
      %601 = vst.msk [vmem:[#allocation2 + $0x58] sm:$0xff] %vm589, %v516
      %602 = vst.msk [vmem:[#allocation2 + $0x60] sm:$0xff] %vm589, %v518
      %603 = vst.msk [vmem:[#allocation2 + $0x68] sm:$0xff] %vm589, %v520
      %604 = vst.msk [vmem:[#allocation2 + $0x70] sm:$0xff] %vm589, %v522
      %605 = vst.msk [vmem:[#allocation2 + $0x78] sm:$0xff] %vm589, %v524
      %606 = vst.msk [vmem:[#allocation2 + $0x80] sm:$0xff] %vm589, %v526
      %607 = vst.msk [vmem:[#allocation2 + $0x88] sm:$0xff] %vm589, %v528
      %608 = vst.msk [vmem:[#allocation2 + $0x90] sm:$0xff] %vm589, %v530
      %609 = vst.msk [vmem:[#allocation2 + $0x98] sm:$0xff] %vm589, %v532
      %610 = vst.msk [vmem:[#allocation2 + $0xa0] sm:$0xff] %vm589, %v534
      %611 = vst.msk [vmem:[#allocation2 + $0xa8] sm:$0xff] %vm589, %v536
      %612 = vst.msk [vmem:[#allocation2 + $0xb0] sm:$0xff] %vm589, %v538
      %613 = vst.msk [vmem:[#allocation2 + $0xb8] sm:$0xff] %vm589, %v540
      %614 = vst.msk [vmem:[#allocation2 + $0xc0] sm:$0xff] %vm589, %v542
      %615 = vst.msk [vmem:[#allocation2 + $0xc8] sm:$0xff] %vm589, %v544
      %616 = vst.msk [vmem:[#allocation2 + $0xd0] sm:$0xff] %vm589, %v546
      %617 = vst.msk [vmem:[#allocation2 + $0xd8] sm:$0xff] %vm589, %v548
      %618 = vst.msk [vmem:[#allocation2 + $0xe0] sm:$0xff] %vm589, %v550
      %619 = vst.msk [vmem:[#allocation2 + $0xe8] sm:$0xff] %vm589, %v552
      %620 = vst.msk [vmem:[#allocation2 + $0xf0] sm:$0xff] %vm589, %v554
      %621 = vst.msk [vmem:[#allocation2 + $0xf8] sm:$0xff] %vm589, %v556
      %v622 = vld [vmem:[#allocation2] sm:$0xff]
      %v623 = vld [vmem:[#allocation2 + $0x8] sm:$0xff]
      %v624 = vld [vmem:[#allocation2 + $0x10] sm:$0xff]
      %v625 = vld [vmem:[#allocation2 + $0x18] sm:$0xff]
      %v626 = vld [vmem:[#allocation2 + $0x20] sm:$0xff]
      %v627 = vld [vmem:[#allocation2 + $0x28] sm:$0xff]
      %v628 = vld [vmem:[#allocation2 + $0x30] sm:$0xff]
      %v629 = vld [vmem:[#allocation2 + $0x38] sm:$0xff]
      %v630 = vld [vmem:[#allocation2 + $0x40] sm:$0xff]
      %v631 = vld [vmem:[#allocation2 + $0x48] sm:$0xff]
      %v632 = vld [vmem:[#allocation2 + $0x50] sm:$0xff]
      %v633 = vld [vmem:[#allocation2 + $0x58] sm:$0xff]
      %v634 = vld [vmem:[#allocation2 + $0x60] sm:$0xff]
      %v635 = vld [vmem:[#allocation2 + $0x68] sm:$0xff]
      %v636 = vld [vmem:[#allocation2 + $0x70] sm:$0xff]
      %v637 = vld [vmem:[#allocation2 + $0x78] sm:$0xff]
      %v638 = vld [vmem:[#allocation2 + $0x80] sm:$0xff]
      %v639 = vld [vmem:[#allocation2 + $0x88] sm:$0xff]
      %v640 = vld [vmem:[#allocation2 + $0x90] sm:$0xff]
      %v641 = vld [vmem:[#allocation2 + $0x98] sm:$0xff]
      %v642 = vld [vmem:[#allocation2 + $0xa0] sm:$0xff]
      %v643 = vld [vmem:[#allocation2 + $0xa8] sm:$0xff]
      %v644 = vld [vmem:[#allocation2 + $0xb0] sm:$0xff]
      %v645 = vld [vmem:[#allocation2 + $0xb8] sm:$0xff]
      %v646 = vld [vmem:[#allocation2 + $0xc0] sm:$0xff]
      %v647 = vld [vmem:[#allocation2 + $0xc8] sm:$0xff]
      %v648 = vld [vmem:[#allocation2 + $0xd0] sm:$0xff]
      %v649 = vld [vmem:[#allocation2 + $0xd8] sm:$0xff]
      %v650 = vld [vmem:[#allocation2 + $0xe0] sm:$0xff]
      %v651 = vld [vmem:[#allocation2 + $0xe8] sm:$0xff]
      %v652 = vld [vmem:[#allocation2 + $0xf0] sm:$0xff]
      %v653 = vld [vmem:[#allocation2 + $0xf8] sm:$0xff]
      %v654 = vld [vmem:[%s1] sm:$0xff]
      %v655 = vld [vmem:[%s1 + $0x8] sm:$0xf]
      %s656 = scalar_lea.vmem %s165, 24
      %v657 = vld [vmem:[%s656] sm:$0xff]
      %v658 = vld [vmem:[%s656 + $0x8] sm:$0xff]
      %v659 = vld [vmem:[%s656 + $0x18] sm:$0xff]
      %v660 = vld [vmem:[%s656 + $0x20] sm:$0xff]
      %v661 = vld [vmem:[%s656 + $0x30] sm:$0xff]
      %v662 = vld [vmem:[%s656 + $0x38] sm:$0xff]
      %v663 = vld [vmem:[%s656 + $0x48] sm:$0xff]
      %v664 = vld [vmem:[%s656 + $0x50] sm:$0xff]
      %v665 = vld [vmem:[%s656 + $0x60] sm:$0xff]
      %v666 = vld [vmem:[%s656 + $0x68] sm:$0xff]
      %v667 = vld [vmem:[%s656 + $0x78] sm:$0xff]
      %v668 = vld [vmem:[%s656 + $0x80] sm:$0xff]
      %v669 = vld [vmem:[%s656 + $0x90] sm:$0xff]
      %v670 = vld [vmem:[%s656 + $0x98] sm:$0xff]
      %v671 = vld [vmem:[%s656 + $0xa8] sm:$0xff]
      %v672 = vld [vmem:[%s656 + $0xb0] sm:$0xff]
      %v673 = vld [vmem:[%s656 + $0xc0] sm:$0xff]
      %v674 = vld [vmem:[%s656 + $0xc8] sm:$0xff]
      %v675 = vld [vmem:[%s656 + $0xd8] sm:$0xff]
      %v676 = vld [vmem:[%s656 + $0xe0] sm:$0xff]
      %v677 = vld [vmem:[%s656 + $0xf0] sm:$0xff]
      %v678 = vld [vmem:[%s656 + $0xf8] sm:$0xff]
      %v679 = vld [vmem:[%s656 + $0x108] sm:$0xff]
      %v680 = vld [vmem:[%s656 + $0x110] sm:$0xff]
      %v681 = vld [vmem:[%s656 + $0x120] sm:$0xff]
      %v682 = vld [vmem:[%s656 + $0x128] sm:$0xff]
      %v683 = vld [vmem:[%s656 + $0x138] sm:$0xff]
      %v684 = vld [vmem:[%s656 + $0x140] sm:$0xff]
      %v685 = vld [vmem:[%s656 + $0x150] sm:$0xff]
      %v686 = vld [vmem:[%s656 + $0x158] sm:$0xff]
      %v687 = vld [vmem:[%s656 + $0x168] sm:$0xff]
      %v688 = vld [vmem:[%s656 + $0x170] sm:$0xff]
      %689 = vst.msk [vmem:[#allocation2] sm:$0xff] %vm203, %v657
      %690 = vst.msk [vmem:[#allocation2 + $0x8] sm:$0xff] %vm203, %v658
      %691 = vst.msk [vmem:[#allocation2 + $0x10] sm:$0xff] %vm203, %v659
      %692 = vst.msk [vmem:[#allocation2 + $0x18] sm:$0xff] %vm203, %v660
      %693 = vst.msk [vmem:[#allocation2 + $0x20] sm:$0xff] %vm203, %v661
      %694 = vst.msk [vmem:[#allocation2 + $0x28] sm:$0xff] %vm203, %v662
      %695 = vst.msk [vmem:[#allocation2 + $0x30] sm:$0xff] %vm203, %v663
      %696 = vst.msk [vmem:[#allocation2 + $0x38] sm:$0xff] %vm203, %v664
      %697 = vst.msk [vmem:[#allocation2 + $0x40] sm:$0xff] %vm203, %v665
      %698 = vst.msk [vmem:[#allocation2 + $0x48] sm:$0xff] %vm203, %v666
      %699 = vst.msk [vmem:[#allocation2 + $0x50] sm:$0xff] %vm203, %v667
      %700 = vst.msk [vmem:[#allocation2 + $0x58] sm:$0xff] %vm203, %v668
      %701 = vst.msk [vmem:[#allocation2 + $0x60] sm:$0xff] %vm203, %v669
      %702 = vst.msk [vmem:[#allocation2 + $0x68] sm:$0xff] %vm203, %v670
      %703 = vst.msk [vmem:[#allocation2 + $0x70] sm:$0xff] %vm203, %v671
      %704 = vst.msk [vmem:[#allocation2 + $0x78] sm:$0xff] %vm203, %v672
      %705 = vst.msk [vmem:[#allocation2 + $0x80] sm:$0xff] %vm203, %v673
      %706 = vst.msk [vmem:[#allocation2 + $0x88] sm:$0xff] %vm203, %v674
      %707 = vst.msk [vmem:[#allocation2 + $0x90] sm:$0xff] %vm203, %v675
      %708 = vst.msk [vmem:[#allocation2 + $0x98] sm:$0xff] %vm203, %v676
      %709 = vst.msk [vmem:[#allocation2 + $0xa0] sm:$0xff] %vm203, %v677
      %710 = vst.msk [vmem:[#allocation2 + $0xa8] sm:$0xff] %vm203, %v678
      %711 = vst.msk [vmem:[#allocation2 + $0xb0] sm:$0xff] %vm203, %v679
      %712 = vst.msk [vmem:[#allocation2 + $0xb8] sm:$0xff] %vm203, %v680
      %713 = vst.msk [vmem:[#allocation2 + $0xc0] sm:$0xff] %vm203, %v681
      %714 = vst.msk [vmem:[#allocation2 + $0xc8] sm:$0xff] %vm203, %v682
      %715 = vst.msk [vmem:[#allocation2 + $0xd0] sm:$0xff] %vm203, %v683
      %716 = vst.msk [vmem:[#allocation2 + $0xd8] sm:$0xff] %vm203, %v684
      %717 = vst.msk [vmem:[#allocation2 + $0xe0] sm:$0xff] %vm203, %v685
      %718 = vst.msk [vmem:[#allocation2 + $0xe8] sm:$0xff] %vm203, %v686
      %719 = vst.msk [vmem:[#allocation2 + $0xf0] sm:$0xff] %vm203, %v687
      %720 = vst.msk [vmem:[#allocation2 + $0xf8] sm:$0xff] %vm203, %v688
      %v721 = vld [vmem:[%s656 + $0x1] sm:$0xff]
      %v722 = vld [vmem:[%s656 + $0x9] sm:$0xff]
      %v723 = vld [vmem:[%s656 + $0x19] sm:$0xff]
      %v724 = vld [vmem:[%s656 + $0x21] sm:$0xff]
      %v725 = vld [vmem:[%s656 + $0x31] sm:$0xff]
      %v726 = vld [vmem:[%s656 + $0x39] sm:$0xff]
      %v727 = vld [vmem:[%s656 + $0x49] sm:$0xff]
      %v728 = vld [vmem:[%s656 + $0x51] sm:$0xff]
      %v729 = vld [vmem:[%s656 + $0x61] sm:$0xff]
      %v730 = vld [vmem:[%s656 + $0x69] sm:$0xff]
      %v731 = vld [vmem:[%s656 + $0x79] sm:$0xff]
      %v732 = vld [vmem:[%s656 + $0x81] sm:$0xff]
      %v733 = vld [vmem:[%s656 + $0x91] sm:$0xff]
      %v734 = vld [vmem:[%s656 + $0x99] sm:$0xff]
      %v735 = vld [vmem:[%s656 + $0xa9] sm:$0xff]
      %v736 = vld [vmem:[%s656 + $0xb1] sm:$0xff]
      %v737 = vld [vmem:[%s656 + $0xc1] sm:$0xff]
      %v738 = vld [vmem:[%s656 + $0xc9] sm:$0xff]
      %v739 = vld [vmem:[%s656 + $0xd9] sm:$0xff]
      %v740 = vld [vmem:[%s656 + $0xe1] sm:$0xff]
      %v741 = vld [vmem:[%s656 + $0xf1] sm:$0xff]
      %v742 = vld [vmem:[%s656 + $0xf9] sm:$0xff]
      %v743 = vld [vmem:[%s656 + $0x109] sm:$0xff]
      %v744 = vld [vmem:[%s656 + $0x111] sm:$0xff]
      %v745 = vld [vmem:[%s656 + $0x121] sm:$0xff]
      %v746 = vld [vmem:[%s656 + $0x129] sm:$0xff]
      %v747 = vld [vmem:[%s656 + $0x139] sm:$0xff]
      %v748 = vld [vmem:[%s656 + $0x141] sm:$0xff]
      %v749 = vld [vmem:[%s656 + $0x151] sm:$0xff]
      %v750 = vld [vmem:[%s656 + $0x159] sm:$0xff]
      %v751 = vld [vmem:[%s656 + $0x169] sm:$0xff]
      %v752 = vld [vmem:[%s656 + $0x171] sm:$0xff]
      %785 = vrot.lane.b32.xlu0 %v721, 4
      %v786 = vpop.permute.xlu0 %785
      %787 = vrot.lane.b32.xlu0 %v722, 4
      %v788 = vpop.permute.xlu0 %787
      %789 = vrot.lane.b32.xlu0 %v723, 4
      %v790 = vpop.permute.xlu0 %789
      %791 = vrot.lane.b32.xlu0 %v724, 4
      %v792 = vpop.permute.xlu0 %791
      %793 = vrot.lane.b32.xlu0 %v725, 4
      %v794 = vpop.permute.xlu0 %793
      %795 = vrot.lane.b32.xlu0 %v726, 4
      %v796 = vpop.permute.xlu0 %795
      %797 = vrot.lane.b32.xlu0 %v727, 4
      %v798 = vpop.permute.xlu0 %797
      %799 = vrot.lane.b32.xlu0 %v728, 4
      %v800 = vpop.permute.xlu0 %799
      %801 = vrot.lane.b32.xlu0 %v729, 4
      %v802 = vpop.permute.xlu0 %801
      %803 = vrot.lane.b32.xlu0 %v730, 4
      %v804 = vpop.permute.xlu0 %803
      %805 = vrot.lane.b32.xlu0 %v731, 4
      %v806 = vpop.permute.xlu0 %805
      %807 = vrot.lane.b32.xlu0 %v732, 4
      %v808 = vpop.permute.xlu0 %807
      %809 = vrot.lane.b32.xlu0 %v733, 4
      %v810 = vpop.permute.xlu0 %809
      %811 = vrot.lane.b32.xlu0 %v734, 4
      %v812 = vpop.permute.xlu0 %811
      %813 = vrot.lane.b32.xlu0 %v735, 4
      %v814 = vpop.permute.xlu0 %813
      %815 = vrot.lane.b32.xlu0 %v736, 4
      %v816 = vpop.permute.xlu0 %815
      %817 = vrot.lane.b32.xlu0 %v737, 4
      %v818 = vpop.permute.xlu0 %817
      %819 = vrot.lane.b32.xlu0 %v738, 4
      %v820 = vpop.permute.xlu0 %819
      %821 = vrot.lane.b32.xlu0 %v739, 4
      %v822 = vpop.permute.xlu0 %821
      %823 = vrot.lane.b32.xlu0 %v740, 4
      %v824 = vpop.permute.xlu0 %823
      %825 = vrot.lane.b32.xlu0 %v741, 4
      %v826 = vpop.permute.xlu0 %825
      %827 = vrot.lane.b32.xlu0 %v742, 4
      %v828 = vpop.permute.xlu0 %827
      %829 = vrot.lane.b32.xlu0 %v743, 4
      %v830 = vpop.permute.xlu0 %829
      %831 = vrot.lane.b32.xlu0 %v744, 4
      %v832 = vpop.permute.xlu0 %831
      %833 = vrot.lane.b32.xlu0 %v745, 4
      %v834 = vpop.permute.xlu0 %833
      %835 = vrot.lane.b32.xlu0 %v746, 4
      %v836 = vpop.permute.xlu0 %835
      %837 = vrot.lane.b32.xlu0 %v747, 4
      %v838 = vpop.permute.xlu0 %837
      %839 = vrot.lane.b32.xlu0 %v748, 4
      %v840 = vpop.permute.xlu0 %839
      %841 = vrot.lane.b32.xlu0 %v749, 4
      %v842 = vpop.permute.xlu0 %841
      %843 = vrot.lane.b32.xlu0 %v750, 4
      %v844 = vpop.permute.xlu0 %843
      %845 = vrot.lane.b32.xlu0 %v751, 4
      %v846 = vpop.permute.xlu0 %845
      %847 = vrot.lane.b32.xlu0 %v752, 4
      %v848 = vpop.permute.xlu0 %847
      %881 = vst.msk [vmem:[#allocation2] sm:$0xff] %vm396, %v786
      %882 = vst.msk [vmem:[#allocation2 + $0x8] sm:$0xff] %vm396, %v788
      %883 = vst.msk [vmem:[#allocation2 + $0x10] sm:$0xff] %vm396, %v790
      %884 = vst.msk [vmem:[#allocation2 + $0x18] sm:$0xff] %vm396, %v792
      %885 = vst.msk [vmem:[#allocation2 + $0x20] sm:$0xff] %vm396, %v794
      %886 = vst.msk [vmem:[#allocation2 + $0x28] sm:$0xff] %vm396, %v796
      %887 = vst.msk [vmem:[#allocation2 + $0x30] sm:$0xff] %vm396, %v798
      %888 = vst.msk [vmem:[#allocation2 + $0x38] sm:$0xff] %vm396, %v800
      %889 = vst.msk [vmem:[#allocation2 + $0x40] sm:$0xff] %vm396, %v802
      %890 = vst.msk [vmem:[#allocation2 + $0x48] sm:$0xff] %vm396, %v804
      %891 = vst.msk [vmem:[#allocation2 + $0x50] sm:$0xff] %vm396, %v806
      %892 = vst.msk [vmem:[#allocation2 + $0x58] sm:$0xff] %vm396, %v808
      %893 = vst.msk [vmem:[#allocation2 + $0x60] sm:$0xff] %vm396, %v810
      %894 = vst.msk [vmem:[#allocation2 + $0x68] sm:$0xff] %vm396, %v812
      %895 = vst.msk [vmem:[#allocation2 + $0x70] sm:$0xff] %vm396, %v814
      %896 = vst.msk [vmem:[#allocation2 + $0x78] sm:$0xff] %vm396, %v816
      %897 = vst.msk [vmem:[#allocation2 + $0x80] sm:$0xff] %vm396, %v818
      %898 = vst.msk [vmem:[#allocation2 + $0x88] sm:$0xff] %vm396, %v820
      %899 = vst.msk [vmem:[#allocation2 + $0x90] sm:$0xff] %vm396, %v822
      %900 = vst.msk [vmem:[#allocation2 + $0x98] sm:$0xff] %vm396, %v824
      %901 = vst.msk [vmem:[#allocation2 + $0xa0] sm:$0xff] %vm396, %v826
      %902 = vst.msk [vmem:[#allocation2 + $0xa8] sm:$0xff] %vm396, %v828
      %903 = vst.msk [vmem:[#allocation2 + $0xb0] sm:$0xff] %vm396, %v830
      %904 = vst.msk [vmem:[#allocation2 + $0xb8] sm:$0xff] %vm396, %v832
      %905 = vst.msk [vmem:[#allocation2 + $0xc0] sm:$0xff] %vm396, %v834
      %906 = vst.msk [vmem:[#allocation2 + $0xc8] sm:$0xff] %vm396, %v836
      %907 = vst.msk [vmem:[#allocation2 + $0xd0] sm:$0xff] %vm396, %v838
      %908 = vst.msk [vmem:[#allocation2 + $0xd8] sm:$0xff] %vm396, %v840
      %909 = vst.msk [vmem:[#allocation2 + $0xe0] sm:$0xff] %vm396, %v842
      %910 = vst.msk [vmem:[#allocation2 + $0xe8] sm:$0xff] %vm396, %v844
      %911 = vst.msk [vmem:[#allocation2 + $0xf0] sm:$0xff] %vm396, %v846
      %912 = vst.msk [vmem:[#allocation2 + $0xf8] sm:$0xff] %vm396, %v848
      %v913 = vld [vmem:[%s656 + $0x2] sm:$0xff]
      %v914 = vld [vmem:[%s656 + $0xa] sm:$0xff]
      %v915 = vld [vmem:[%s656 + $0x1a] sm:$0xff]
      %v916 = vld [vmem:[%s656 + $0x22] sm:$0xff]
      %v917 = vld [vmem:[%s656 + $0x32] sm:$0xff]
      %v918 = vld [vmem:[%s656 + $0x3a] sm:$0xff]
      %v919 = vld [vmem:[%s656 + $0x4a] sm:$0xff]
      %v920 = vld [vmem:[%s656 + $0x52] sm:$0xff]
      %v921 = vld [vmem:[%s656 + $0x62] sm:$0xff]
      %v922 = vld [vmem:[%s656 + $0x6a] sm:$0xff]
      %v923 = vld [vmem:[%s656 + $0x7a] sm:$0xff]
      %v924 = vld [vmem:[%s656 + $0x82] sm:$0xff]
      %v925 = vld [vmem:[%s656 + $0x92] sm:$0xff]
      %v926 = vld [vmem:[%s656 + $0x9a] sm:$0xff]
      %v927 = vld [vmem:[%s656 + $0xaa] sm:$0xff]
      %v928 = vld [vmem:[%s656 + $0xb2] sm:$0xff]
      %v929 = vld [vmem:[%s656 + $0xc2] sm:$0xff]
      %v930 = vld [vmem:[%s656 + $0xca] sm:$0xff]
      %v931 = vld [vmem:[%s656 + $0xda] sm:$0xff]
      %v932 = vld [vmem:[%s656 + $0xe2] sm:$0xff]
      %v933 = vld [vmem:[%s656 + $0xf2] sm:$0xff]
      %v934 = vld [vmem:[%s656 + $0xfa] sm:$0xff]
      %v935 = vld [vmem:[%s656 + $0x10a] sm:$0xff]
      %v936 = vld [vmem:[%s656 + $0x112] sm:$0xff]
      %v937 = vld [vmem:[%s656 + $0x122] sm:$0xff]
      %v938 = vld [vmem:[%s656 + $0x12a] sm:$0xff]
      %v939 = vld [vmem:[%s656 + $0x13a] sm:$0xff]
      %v940 = vld [vmem:[%s656 + $0x142] sm:$0xff]
      %v941 = vld [vmem:[%s656 + $0x152] sm:$0xff]
      %v942 = vld [vmem:[%s656 + $0x15a] sm:$0xff]
      %v943 = vld [vmem:[%s656 + $0x16a] sm:$0xff]
      %v944 = vld [vmem:[%s656 + $0x172] sm:$0xff]
      %977 = vrot.lane.b32.xlu0 %v913, 8
      %v978 = vpop.permute.xlu0 %977
      %979 = vrot.lane.b32.xlu0 %v914, 8
      %v980 = vpop.permute.xlu0 %979
      %981 = vrot.lane.b32.xlu0 %v915, 8
      %v982 = vpop.permute.xlu0 %981
      %983 = vrot.lane.b32.xlu0 %v916, 8
      %v984 = vpop.permute.xlu0 %983
      %985 = vrot.lane.b32.xlu0 %v917, 8
      %v986 = vpop.permute.xlu0 %985
      %987 = vrot.lane.b32.xlu0 %v918, 8
      %v988 = vpop.permute.xlu0 %987
      %989 = vrot.lane.b32.xlu0 %v919, 8
      %v990 = vpop.permute.xlu0 %989
      %991 = vrot.lane.b32.xlu0 %v920, 8
      %v992 = vpop.permute.xlu0 %991
      %993 = vrot.lane.b32.xlu0 %v921, 8
      %v994 = vpop.permute.xlu0 %993
      %995 = vrot.lane.b32.xlu0 %v922, 8
      %v996 = vpop.permute.xlu0 %995
      %997 = vrot.lane.b32.xlu0 %v923, 8
      %v998 = vpop.permute.xlu0 %997
      %999 = vrot.lane.b32.xlu0 %v924, 8
      %v1000 = vpop.permute.xlu0 %999
      %1001 = vrot.lane.b32.xlu0 %v925, 8
      %v1002 = vpop.permute.xlu0 %1001
      %1003 = vrot.lane.b32.xlu0 %v926, 8
      %v1004 = vpop.permute.xlu0 %1003
      %1005 = vrot.lane.b32.xlu0 %v927, 8
      %v1006 = vpop.permute.xlu0 %1005
      %1007 = vrot.lane.b32.xlu0 %v928, 8
      %v1008 = vpop.permute.xlu0 %1007
      %1009 = vrot.lane.b32.xlu0 %v929, 8
      %v1010 = vpop.permute.xlu0 %1009
      %1011 = vrot.lane.b32.xlu0 %v930, 8
      %v1012 = vpop.permute.xlu0 %1011
      %1013 = vrot.lane.b32.xlu0 %v931, 8
      %v1014 = vpop.permute.xlu0 %1013
      %1015 = vrot.lane.b32.xlu0 %v932, 8
      %v1016 = vpop.permute.xlu0 %1015
      %1017 = vrot.lane.b32.xlu0 %v933, 8
      %v1018 = vpop.permute.xlu0 %1017
      %1019 = vrot.lane.b32.xlu0 %v934, 8
      %v1020 = vpop.permute.xlu0 %1019
      %1021 = vrot.lane.b32.xlu0 %v935, 8
      %v1022 = vpop.permute.xlu0 %1021
      %1023 = vrot.lane.b32.xlu0 %v936, 8
      %v1024 = vpop.permute.xlu0 %1023
      %1025 = vrot.lane.b32.xlu0 %v937, 8
      %v1026 = vpop.permute.xlu0 %1025
      %1027 = vrot.lane.b32.xlu0 %v938, 8
      %v1028 = vpop.permute.xlu0 %1027
      %1029 = vrot.lane.b32.xlu0 %v939, 8
      %v1030 = vpop.permute.xlu0 %1029
      %1031 = vrot.lane.b32.xlu0 %v940, 8
      %v1032 = vpop.permute.xlu0 %1031
      %1033 = vrot.lane.b32.xlu0 %v941, 8
      %v1034 = vpop.permute.xlu0 %1033
      %1035 = vrot.lane.b32.xlu0 %v942, 8
      %v1036 = vpop.permute.xlu0 %1035
      %1037 = vrot.lane.b32.xlu0 %v943, 8
      %v1038 = vpop.permute.xlu0 %1037
      %1039 = vrot.lane.b32.xlu0 %v944, 8
      %v1040 = vpop.permute.xlu0 %1039
      %1073 = vst.msk [vmem:[#allocation2] sm:$0xff] %vm589, %v978
      %1074 = vst.msk [vmem:[#allocation2 + $0x8] sm:$0xff] %vm589, %v980
      %1075 = vst.msk [vmem:[#allocation2 + $0x10] sm:$0xff] %vm589, %v982
      %1076 = vst.msk [vmem:[#allocation2 + $0x18] sm:$0xff] %vm589, %v984
      %1077 = vst.msk [vmem:[#allocation2 + $0x20] sm:$0xff] %vm589, %v986
      %1078 = vst.msk [vmem:[#allocation2 + $0x28] sm:$0xff] %vm589, %v988
      %1079 = vst.msk [vmem:[#allocation2 + $0x30] sm:$0xff] %vm589, %v990
      %1080 = vst.msk [vmem:[#allocation2 + $0x38] sm:$0xff] %vm589, %v992
      %1081 = vst.msk [vmem:[#allocation2 + $0x40] sm:$0xff] %vm589, %v994
      %1082 = vst.msk [vmem:[#allocation2 + $0x48] sm:$0xff] %vm589, %v996
      %1083 = vst.msk [vmem:[#allocation2 + $0x50] sm:$0xff] %vm589, %v998
      %1084 = vst.msk [vmem:[#allocation2 + $0x58] sm:$0xff] %vm589, %v1000
      %1085 = vst.msk [vmem:[#allocation2 + $0x60] sm:$0xff] %vm589, %v1002
      %1086 = vst.msk [vmem:[#allocation2 + $0x68] sm:$0xff] %vm589, %v1004
      %1087 = vst.msk [vmem:[#allocation2 + $0x70] sm:$0xff] %vm589, %v1006
      %1088 = vst.msk [vmem:[#allocation2 + $0x78] sm:$0xff] %vm589, %v1008
      %1089 = vst.msk [vmem:[#allocation2 + $0x80] sm:$0xff] %vm589, %v1010
      %1090 = vst.msk [vmem:[#allocation2 + $0x88] sm:$0xff] %vm589, %v1012
      %1091 = vst.msk [vmem:[#allocation2 + $0x90] sm:$0xff] %vm589, %v1014
      %1092 = vst.msk [vmem:[#allocation2 + $0x98] sm:$0xff] %vm589, %v1016
      %1093 = vst.msk [vmem:[#allocation2 + $0xa0] sm:$0xff] %vm589, %v1018
      %1094 = vst.msk [vmem:[#allocation2 + $0xa8] sm:$0xff] %vm589, %v1020
      %1095 = vst.msk [vmem:[#allocation2 + $0xb0] sm:$0xff] %vm589, %v1022
      %1096 = vst.msk [vmem:[#allocation2 + $0xb8] sm:$0xff] %vm589, %v1024
      %1097 = vst.msk [vmem:[#allocation2 + $0xc0] sm:$0xff] %vm589, %v1026
      %1098 = vst.msk [vmem:[#allocation2 + $0xc8] sm:$0xff] %vm589, %v1028
      %1099 = vst.msk [vmem:[#allocation2 + $0xd0] sm:$0xff] %vm589, %v1030
      %1100 = vst.msk [vmem:[#allocation2 + $0xd8] sm:$0xff] %vm589, %v1032
      %1101 = vst.msk [vmem:[#allocation2 + $0xe0] sm:$0xff] %vm589, %v1034
      %1102 = vst.msk [vmem:[#allocation2 + $0xe8] sm:$0xff] %vm589, %v1036
      %1103 = vst.msk [vmem:[#allocation2 + $0xf0] sm:$0xff] %vm589, %v1038
      %1104 = vst.msk [vmem:[#allocation2 + $0xf8] sm:$0xff] %vm589, %v1040
      %v1105 = vld [vmem:[#allocation2] sm:$0xff]
      %v1106 = vld [vmem:[#allocation2 + $0x8] sm:$0xff]
      %v1107 = vld [vmem:[#allocation2 + $0x10] sm:$0xff]
      %v1108 = vld [vmem:[#allocation2 + $0x18] sm:$0xff]
      %v1109 = vld [vmem:[#allocation2 + $0x20] sm:$0xff]
      %v1110 = vld [vmem:[#allocation2 + $0x28] sm:$0xff]
      %v1111 = vld [vmem:[#allocation2 + $0x30] sm:$0xff]
      %v1112 = vld [vmem:[#allocation2 + $0x38] sm:$0xff]
      %v1113 = vld [vmem:[#allocation2 + $0x40] sm:$0xff]
      %v1114 = vld [vmem:[#allocation2 + $0x48] sm:$0xff]
      %v1115 = vld [vmem:[#allocation2 + $0x50] sm:$0xff]
      %v1116 = vld [vmem:[#allocation2 + $0x58] sm:$0xff]
      %v1117 = vld [vmem:[#allocation2 + $0x60] sm:$0xff]
      %v1118 = vld [vmem:[#allocation2 + $0x68] sm:$0xff]
      %v1119 = vld [vmem:[#allocation2 + $0x70] sm:$0xff]
      %v1120 = vld [vmem:[#allocation2 + $0x78] sm:$0xff]
      %v1121 = vld [vmem:[#allocation2 + $0x80] sm:$0xff]
      %v1122 = vld [vmem:[#allocation2 + $0x88] sm:$0xff]
      %v1123 = vld [vmem:[#allocation2 + $0x90] sm:$0xff]
      %v1124 = vld [vmem:[#allocation2 + $0x98] sm:$0xff]
      %v1125 = vld [vmem:[#allocation2 + $0xa0] sm:$0xff]
      %v1126 = vld [vmem:[#allocation2 + $0xa8] sm:$0xff]
      %v1127 = vld [vmem:[#allocation2 + $0xb0] sm:$0xff]
      %v1128 = vld [vmem:[#allocation2 + $0xb8] sm:$0xff]
      %v1129 = vld [vmem:[#allocation2 + $0xc0] sm:$0xff]
      %v1130 = vld [vmem:[#allocation2 + $0xc8] sm:$0xff]
      %v1131 = vld [vmem:[#allocation2 + $0xd0] sm:$0xff]
      %v1132 = vld [vmem:[#allocation2 + $0xd8] sm:$0xff]
      %v1133 = vld [vmem:[#allocation2 + $0xe0] sm:$0xff]
      %v1134 = vld [vmem:[#allocation2 + $0xe8] sm:$0xff]
      %v1135 = vld [vmem:[#allocation2 + $0xf0] sm:$0xff]
      %v1136 = vld [vmem:[#allocation2 + $0xf8] sm:$0xff]
      %s1137 = scalar_lea.vmem %s1, 16
      %v1138 = vld [vmem:[%s1137] sm:$0xff]
      %v1139 = vld [vmem:[%s1137 + $0x8] sm:$0xf]
      %vm1140 = vcmask 97280
      %v1142 = vsel %vm1140, %v1105, 0
      %v1145 = vsel %vm1140, %v1106, 0
      %v1148 = vsel %vm1140, %v1107, 0
      %v1151 = vsel %vm1140, %v1108, 0
      %v1154 = vsel %vm1140, %v1109, 0
      %v1157 = vsel %vm1140, %v1110, 0
      %v1160 = vsel %vm1140, %v1111, 0
      %v1163 = vsel %vm1140, %v1112, 0
      %v1166 = vsel %vm1140, %v1113, 0
      %v1169 = vsel %vm1140, %v1114, 0
      %v1172 = vsel %vm1140, %v1115, 0
      %v1175 = vsel %vm1140, %v1116, 0
      %v1178 = vsel %vm1140, %v1117, 0
      %v1181 = vsel %vm1140, %v1118, 0
      %v1184 = vsel %vm1140, %v1119, 0
      %v1187 = vsel %vm1140, %v1120, 0
      %v1190 = vsel %vm1140, %v1121, 0
      %v1193 = vsel %vm1140, %v1122, 0
      %v1196 = vsel %vm1140, %v1123, 0
      %v1199 = vsel %vm1140, %v1124, 0
      %v1202 = vsel %vm1140, %v1125, 0
      %v1205 = vsel %vm1140, %v1126, 0
      %v1208 = vsel %vm1140, %v1127, 0
      %v1211 = vsel %vm1140, %v1128, 0
      %v1214 = vsel %vm1140, %v1129, 0
      %v1217 = vsel %vm1140, %v1130, 0
      %v1220 = vsel %vm1140, %v1131, 0
      %v1223 = vsel %vm1140, %v1132, 0
      %v1226 = vsel %vm1140, %v1133, 0
      %v1229 = vsel %vm1140, %v1134, 0
      %v1232 = vsel %vm1140, %v1135, 0
      %v1235 = vsel %vm1140, %v1136, 0
      %vm1237 = vcmask 1043456
      %v1239 = vsel %vm1237, %v1139, 0
      %1241 = vmatprep.subr.mxu0 0.0
      %1242 = vmatpush1.msra.mxu0 0.0
      %1243 = vmatprep.subr.mxu0 0.0
      %1244 = vmatpush1.msra.mxu0 0.0
      %1245 = vmatprep.subr.mxu0 0.0
      %1246 = vmatpush1.msra.mxu0 0.0
      %1247 = vmatprep.subr.mxu0 0.0
      %1248 = vmatpush1.msra.mxu0 0.0
      %1249 = vmatprep.subr.mxu0 0.0
      %1250 = vmatpush1.msra.mxu0 0.0
      %1251 = vmatprep.subr.mxu0 0.0
      %1252 = vmatpush1.msra.mxu0 0.0
      %1253 = vmatprep.subr.mxu0 0.0
      %1254 = vmatpush1.msra.mxu0 0.0
      %1255 = vmatprep.subr.mxu0 0.0
      %1256 = vmatpush1.msra.mxu0 0.0
      %1257 = vmatprep.subr.mxu0 0.0
      %1258 = vmatpush1.msra.mxu0 0.0
      %1259 = vmatprep.subr.mxu0 0.0
      %1260 = vmatpush1.msra.mxu0 0.0
      %1261 = vmatprep.subr.mxu0 0.0
      %1262 = vmatpush1.msra.mxu0 0.0
      %1263 = vmatprep.subr.mxu0 0.0
      %1264 = vmatpush1.msra.mxu0 0.0
      %1265 = vmatprep.subr.mxu0 0.0
      %1266 = vmatpush1.msra.mxu0 0.0
      %1267 = vmatprep.subr.mxu0 0.0
      %1268 = vmatpush1.msra.mxu0 0.0
      %1269 = vmatprep.subr.mxu0 0.0
      %1270 = vmatpush1.msra.mxu0 %v1239
      %1271 = vmatprep.subr.mxu0 0.0
      %1272 = vmatpush1.msra.mxu0 %v1138
      %1273 = vmatprep.subr.mxu0 0.0
      %1274 = vmatpush2.msra.mxu0 0.0
      %1275 = vmatprep.subr.mxu0 0.0
      %1276 = vmatpush2.msra.mxu0 0.0
      %1277 = vmatprep.subr.mxu0 0.0
      %1278 = vmatpush2.msra.mxu0 0.0
      %1279 = vmatprep.subr.mxu0 0.0
      %1280 = vmatpush2.msra.mxu0 0.0
      %1281 = vmatprep.subr.mxu0 0.0
      %1282 = vmatpush2.msra.mxu0 0.0
      %1283 = vmatprep.subr.mxu0 0.0
      %1284 = vmatpush2.msra.mxu0 0.0
      %1285 = vmatprep.subr.mxu0 0.0
      %1286 = vmatpush2.msra.mxu0 0.0
      %1287 = vmatprep.subr.mxu0 0.0
      %1288 = vmatpush2.msra.mxu0 0.0
      %1289 = vmatprep.subr.mxu0 0.0
      %1290 = vmatpush2.msra.mxu0 0.0
      %1291 = vmatprep.subr.mxu0 0.0
      %1292 = vmatpush2.msra.mxu0 0.0
      %1293 = vmatprep.subr.mxu0 0.0
      %1294 = vmatpush2.msra.mxu0 0.0
      %1295 = vmatprep.subr.mxu0 0.0
      %1296 = vmatpush2.msra.mxu0 0.0
      %1297 = vmatprep.subr.mxu0 0.0
      %1298 = vmatpush2.msra.mxu0 0.0
      %1299 = vmatprep.subr.mxu0 0.0
      %1300 = vmatpush2.msra.mxu0 0.0
      %1301 = vmatprep.subr.mxu0 0.0
      %1302 = vmatpush2.msra.mxu0 0.0
      %1303 = vmatprep.subr.mxu0 0.0
      %1304 = vmatpush2.msra.mxu0 0.0
      %1305 = vmatprep.mubr.f32.mxu0 0.0
      %1306 = vmatmul.mubr.f32.gmra.mxu0 %v1142
      %v1307 = vpop.f32.mrf.mxu0
      %v1308 = vadd.f32 0.0, %v1307
      %v1309 = vpop.f32.mrf.mxu0
      %1310 = vmatprep.mubr.f32.mxu0 0.0
      %1311 = vmatmul.mubr.f32.gmra.mxu0 %v1145
      %v1312 = vpop.f32.mrf.mxu0
      %v1313 = vadd.f32 0.0, %v1312
      %v1314 = vpop.f32.mrf.mxu0
      %1315 = vmatprep.mubr.f32.mxu0 0.0
      %1316 = vmatmul.mubr.f32.gmra.mxu0 %v1148
      %v1317 = vpop.f32.mrf.mxu0
      %v1318 = vadd.f32 0.0, %v1317
      %v1319 = vpop.f32.mrf.mxu0
      %1320 = vmatprep.mubr.f32.mxu0 0.0
      %1321 = vmatmul.mubr.f32.gmra.mxu0 %v1151
      %v1322 = vpop.f32.mrf.mxu0
      %v1323 = vadd.f32 0.0, %v1322
      %v1324 = vpop.f32.mrf.mxu0
      %1325 = vmatprep.mubr.f32.mxu0 0.0
      %1326 = vmatmul.mubr.f32.gmra.mxu0 %v1154
      %v1327 = vpop.f32.mrf.mxu0
      %v1328 = vadd.f32 0.0, %v1327
      %v1329 = vpop.f32.mrf.mxu0
      %1330 = vmatprep.mubr.f32.mxu0 0.0
      %1331 = vmatmul.mubr.f32.gmra.mxu0 %v1157
      %v1332 = vpop.f32.mrf.mxu0
      %v1333 = vadd.f32 0.0, %v1332
      %v1334 = vpop.f32.mrf.mxu0
      %1335 = vmatprep.mubr.f32.mxu0 0.0
      %1336 = vmatmul.mubr.f32.gmra.mxu0 %v1160
      %v1337 = vpop.f32.mrf.mxu0
      %v1338 = vadd.f32 0.0, %v1337
      %v1339 = vpop.f32.mrf.mxu0
      %1340 = vmatprep.mubr.f32.mxu0 0.0
      %1341 = vmatmul.mubr.f32.gmra.mxu0 %v1163
      %v1342 = vpop.f32.mrf.mxu0
      %v1343 = vadd.f32 0.0, %v1342
      %v1344 = vpop.f32.mrf.mxu0
      %1345 = vmatprep.mubr.f32.mxu0 0.0
      %1346 = vmatmul.mubr.f32.gmra.mxu0 %v1166
      %v1347 = vpop.f32.mrf.mxu0
      %v1348 = vadd.f32 0.0, %v1347
      %v1349 = vpop.f32.mrf.mxu0
      %1350 = vmatprep.mubr.f32.mxu0 0.0
      %1351 = vmatmul.mubr.f32.gmra.mxu0 %v1169
      %v1352 = vpop.f32.mrf.mxu0
      %v1353 = vadd.f32 0.0, %v1352
      %v1354 = vpop.f32.mrf.mxu0
      %1355 = vmatprep.mubr.f32.mxu0 0.0
      %1356 = vmatmul.mubr.f32.gmra.mxu0 %v1172
      %v1357 = vpop.f32.mrf.mxu0
      %v1358 = vadd.f32 0.0, %v1357
      %v1359 = vpop.f32.mrf.mxu0
      %1360 = vmatprep.mubr.f32.mxu0 0.0
      %1361 = vmatmul.mubr.f32.gmra.mxu0 %v1175
      %v1362 = vpop.f32.mrf.mxu0
      %v1363 = vadd.f32 0.0, %v1362
      %v1364 = vpop.f32.mrf.mxu0
      %1365 = vmatprep.mubr.f32.mxu0 0.0
      %1366 = vmatmul.mubr.f32.gmra.mxu0 %v1178
      %v1367 = vpop.f32.mrf.mxu0
      %v1368 = vadd.f32 0.0, %v1367
      %v1369 = vpop.f32.mrf.mxu0
      %1370 = vmatprep.mubr.f32.mxu0 0.0
      %1371 = vmatmul.mubr.f32.gmra.mxu0 %v1181
      %v1372 = vpop.f32.mrf.mxu0
      %v1373 = vadd.f32 0.0, %v1372
      %v1374 = vpop.f32.mrf.mxu0
      %1375 = vmatprep.mubr.f32.mxu0 0.0
      %1376 = vmatmul.mubr.f32.gmra.mxu0 %v1184
      %v1377 = vpop.f32.mrf.mxu0
      %v1378 = vadd.f32 0.0, %v1377
      %v1379 = vpop.f32.mrf.mxu0
      %1380 = vmatprep.mubr.f32.mxu0 0.0
      %1381 = vmatmul.mubr.f32.gmra.mxu0 %v1187
      %v1382 = vpop.f32.mrf.mxu0
      %v1383 = vadd.f32 0.0, %v1382
      %v1384 = vpop.f32.mrf.mxu0
      %1385 = vmatprep.mubr.f32.mxu0 0.0
      %1386 = vmatmul.mubr.f32.gmra.mxu0 %v1190
      %v1387 = vpop.f32.mrf.mxu0
      %v1388 = vadd.f32 0.0, %v1387
      %v1389 = vpop.f32.mrf.mxu0
      %1390 = vmatprep.mubr.f32.mxu0 0.0
      %1391 = vmatmul.mubr.f32.gmra.mxu0 %v1193
      %v1392 = vpop.f32.mrf.mxu0
      %v1393 = vadd.f32 0.0, %v1392
      %v1394 = vpop.f32.mrf.mxu0
      %1395 = vmatprep.mubr.f32.mxu0 0.0
      %1396 = vmatmul.mubr.f32.gmra.mxu0 %v1196
      %v1397 = vpop.f32.mrf.mxu0
      %v1398 = vadd.f32 0.0, %v1397
      %v1399 = vpop.f32.mrf.mxu0
      %1400 = vmatprep.mubr.f32.mxu0 0.0
      %1401 = vmatmul.mubr.f32.gmra.mxu0 %v1199
      %v1402 = vpop.f32.mrf.mxu0
      %v1403 = vadd.f32 0.0, %v1402
      %v1404 = vpop.f32.mrf.mxu0
      %1405 = vmatprep.mubr.f32.mxu0 0.0
      %1406 = vmatmul.mubr.f32.gmra.mxu0 %v1202
      %v1407 = vpop.f32.mrf.mxu0
      %v1408 = vadd.f32 0.0, %v1407
      %v1409 = vpop.f32.mrf.mxu0
      %1410 = vmatprep.mubr.f32.mxu0 0.0
      %1411 = vmatmul.mubr.f32.gmra.mxu0 %v1205
      %v1412 = vpop.f32.mrf.mxu0
      %v1413 = vadd.f32 0.0, %v1412
      %v1414 = vpop.f32.mrf.mxu0
      %1415 = vmatprep.mubr.f32.mxu0 0.0
      %1416 = vmatmul.mubr.f32.gmra.mxu0 %v1208
      %v1417 = vpop.f32.mrf.mxu0
      %v1418 = vadd.f32 0.0, %v1417
      %v1419 = vpop.f32.mrf.mxu0
      %1420 = vmatprep.mubr.f32.mxu0 0.0
      %1421 = vmatmul.mubr.f32.gmra.mxu0 %v1211
      %v1422 = vpop.f32.mrf.mxu0
      %v1423 = vadd.f32 0.0, %v1422
      %v1424 = vpop.f32.mrf.mxu0
      %1425 = vmatprep.mubr.f32.mxu0 0.0
      %1426 = vmatmul.mubr.f32.gmra.mxu0 %v1214
      %v1427 = vpop.f32.mrf.mxu0
      %v1428 = vadd.f32 0.0, %v1427
      %v1429 = vpop.f32.mrf.mxu0
      %1430 = vmatprep.mubr.f32.mxu0 0.0
      %1431 = vmatmul.mubr.f32.gmra.mxu0 %v1217
      %v1432 = vpop.f32.mrf.mxu0
      %v1433 = vadd.f32 0.0, %v1432
      %v1434 = vpop.f32.mrf.mxu0
      %1435 = vmatprep.mubr.f32.mxu0 0.0
      %1436 = vmatmul.mubr.f32.gmra.mxu0 %v1220
      %v1437 = vpop.f32.mrf.mxu0
      %v1438 = vadd.f32 0.0, %v1437
      %v1439 = vpop.f32.mrf.mxu0
      %1440 = vmatprep.mubr.f32.mxu0 0.0
      %1441 = vmatmul.mubr.f32.gmra.mxu0 %v1223
      %v1442 = vpop.f32.mrf.mxu0
      %v1443 = vadd.f32 0.0, %v1442
      %v1444 = vpop.f32.mrf.mxu0
      %1445 = vmatprep.mubr.f32.mxu0 0.0
      %1446 = vmatmul.mubr.f32.gmra.mxu0 %v1226
      %v1447 = vpop.f32.mrf.mxu0
      %v1448 = vadd.f32 0.0, %v1447
      %v1449 = vpop.f32.mrf.mxu0
      %1450 = vmatprep.mubr.f32.mxu0 0.0
      %1451 = vmatmul.mubr.f32.gmra.mxu0 %v1229
      %v1452 = vpop.f32.mrf.mxu0
      %v1453 = vadd.f32 0.0, %v1452
      %v1454 = vpop.f32.mrf.mxu0
      %1455 = vmatprep.mubr.f32.mxu0 0.0
      %1456 = vmatmul.mubr.f32.gmra.mxu0 %v1232
      %v1457 = vpop.f32.mrf.mxu0
      %v1458 = vadd.f32 0.0, %v1457
      %v1459 = vpop.f32.mrf.mxu0
      %1460 = vmatprep.mubr.f32.mxu0 0.0
      %1461 = vmatmul.mubr.f32.gmra.mxu0 %v1235
      %v1462 = vpop.f32.mrf.mxu0
      %v1463 = vadd.f32 0.0, %v1462
      %v1464 = vpop.f32.mrf.mxu0
      %1465 = vdwg.mxu0
      %v1467 = vsel %vm1140, %v622, 0
      %v1470 = vsel %vm1140, %v623, 0
      %v1473 = vsel %vm1140, %v624, 0
      %v1476 = vsel %vm1140, %v625, 0
      %v1479 = vsel %vm1140, %v626, 0
      %v1482 = vsel %vm1140, %v627, 0
      %v1485 = vsel %vm1140, %v628, 0
      %v1488 = vsel %vm1140, %v629, 0
      %v1491 = vsel %vm1140, %v630, 0
      %v1494 = vsel %vm1140, %v631, 0
      %v1497 = vsel %vm1140, %v632, 0
      %v1500 = vsel %vm1140, %v633, 0
      %v1503 = vsel %vm1140, %v634, 0
      %v1506 = vsel %vm1140, %v635, 0
      %v1509 = vsel %vm1140, %v636, 0
      %v1512 = vsel %vm1140, %v637, 0
      %v1515 = vsel %vm1140, %v638, 0
      %v1518 = vsel %vm1140, %v639, 0
      %v1521 = vsel %vm1140, %v640, 0
      %v1524 = vsel %vm1140, %v641, 0
      %v1527 = vsel %vm1140, %v642, 0
      %v1530 = vsel %vm1140, %v643, 0
      %v1533 = vsel %vm1140, %v644, 0
      %v1536 = vsel %vm1140, %v645, 0
      %v1539 = vsel %vm1140, %v646, 0
      %v1542 = vsel %vm1140, %v647, 0
      %v1545 = vsel %vm1140, %v648, 0
      %v1548 = vsel %vm1140, %v649, 0
      %v1551 = vsel %vm1140, %v650, 0
      %v1554 = vsel %vm1140, %v651, 0
      %v1557 = vsel %vm1140, %v652, 0
      %v1560 = vsel %vm1140, %v653, 0
      %v1563 = vsel %vm1237, %v655, 0
      %1565 = vmatprep.subr.mxu0 0.0
      %1566 = vmatpush1.msra.mxu0 0.0
      %1567 = vmatprep.subr.mxu0 0.0
      %1568 = vmatpush1.msra.mxu0 0.0
      %1569 = vmatprep.subr.mxu0 0.0
      %1570 = vmatpush1.msra.mxu0 0.0
      %1571 = vmatprep.subr.mxu0 0.0
      %1572 = vmatpush1.msra.mxu0 0.0
      %1573 = vmatprep.subr.mxu0 0.0
      %1574 = vmatpush1.msra.mxu0 0.0
      %1575 = vmatprep.subr.mxu0 0.0
      %1576 = vmatpush1.msra.mxu0 0.0
      %1577 = vmatprep.subr.mxu0 0.0
      %1578 = vmatpush1.msra.mxu0 0.0
      %1579 = vmatprep.subr.mxu0 0.0
      %1580 = vmatpush1.msra.mxu0 0.0
      %1581 = vmatprep.subr.mxu0 0.0
      %1582 = vmatpush1.msra.mxu0 0.0
      %1583 = vmatprep.subr.mxu0 0.0
      %1584 = vmatpush1.msra.mxu0 0.0
      %1585 = vmatprep.subr.mxu0 0.0
      %1586 = vmatpush1.msra.mxu0 0.0
      %1587 = vmatprep.subr.mxu0 0.0
      %1588 = vmatpush1.msra.mxu0 0.0
      %1589 = vmatprep.subr.mxu0 0.0
      %1590 = vmatpush1.msra.mxu0 0.0
      %1591 = vmatprep.subr.mxu0 0.0
      %1592 = vmatpush1.msra.mxu0 0.0
      %1593 = vmatprep.subr.mxu0 0.0
      %1594 = vmatpush1.msra.mxu0 %v1563
      %1595 = vmatprep.subr.mxu0 0.0
      %1596 = vmatpush1.msra.mxu0 %v654
      %1597 = vmatprep.subr.mxu0 0.0
      %1598 = vmatpush2.msra.mxu0 0.0
      %1599 = vmatprep.subr.mxu0 0.0
      %1600 = vmatpush2.msra.mxu0 0.0
      %1601 = vmatprep.subr.mxu0 0.0
      %1602 = vmatpush2.msra.mxu0 0.0
      %1603 = vmatprep.subr.mxu0 0.0
      %1604 = vmatpush2.msra.mxu0 0.0
      %1605 = vmatprep.subr.mxu0 0.0
      %1606 = vmatpush2.msra.mxu0 0.0
      %1607 = vmatprep.subr.mxu0 0.0
      %1608 = vmatpush2.msra.mxu0 0.0
      %1609 = vmatprep.subr.mxu0 0.0
      %1610 = vmatpush2.msra.mxu0 0.0
      %1611 = vmatprep.subr.mxu0 0.0
      %1612 = vmatpush2.msra.mxu0 0.0
      %1613 = vmatprep.subr.mxu0 0.0
      %1614 = vmatpush2.msra.mxu0 0.0
      %1615 = vmatprep.subr.mxu0 0.0
      %1616 = vmatpush2.msra.mxu0 0.0
      %1617 = vmatprep.subr.mxu0 0.0
      %1618 = vmatpush2.msra.mxu0 0.0
      %1619 = vmatprep.subr.mxu0 0.0
      %1620 = vmatpush2.msra.mxu0 0.0
      %1621 = vmatprep.subr.mxu0 0.0
      %1622 = vmatpush2.msra.mxu0 0.0
      %1623 = vmatprep.subr.mxu0 0.0
      %1624 = vmatpush2.msra.mxu0 0.0
      %1625 = vmatprep.subr.mxu0 0.0
      %1626 = vmatpush2.msra.mxu0 0.0
      %1627 = vmatprep.subr.mxu0 0.0
      %1628 = vmatpush2.msra.mxu0 0.0
      %1629 = vmatprep.mubr.f32.mxu0 0.0
      %1630 = vmatmul.mubr.f32.gmra.mxu0 %v1467
      %v1631 = vpop.f32.mrf.mxu0
      %v1632 = vadd.f32 %v1308, %v1631
      %v1633 = vpop.f32.mrf.mxu0
      %1634 = vmatprep.mubr.f32.mxu0 0.0
      %1635 = vmatmul.mubr.f32.gmra.mxu0 %v1470
      %v1636 = vpop.f32.mrf.mxu0
      %v1637 = vadd.f32 %v1313, %v1636
      %v1638 = vpop.f32.mrf.mxu0
      %1639 = vmatprep.mubr.f32.mxu0 0.0
      %1640 = vmatmul.mubr.f32.gmra.mxu0 %v1473
      %v1641 = vpop.f32.mrf.mxu0
      %v1642 = vadd.f32 %v1318, %v1641
      %v1643 = vpop.f32.mrf.mxu0
      %1644 = vmatprep.mubr.f32.mxu0 0.0
      %1645 = vmatmul.mubr.f32.gmra.mxu0 %v1476
      %v1646 = vpop.f32.mrf.mxu0
      %v1647 = vadd.f32 %v1323, %v1646
      %v1648 = vpop.f32.mrf.mxu0
      %1649 = vmatprep.mubr.f32.mxu0 0.0
      %1650 = vmatmul.mubr.f32.gmra.mxu0 %v1479
      %v1651 = vpop.f32.mrf.mxu0
      %v1652 = vadd.f32 %v1328, %v1651
      %v1653 = vpop.f32.mrf.mxu0
      %1654 = vmatprep.mubr.f32.mxu0 0.0
      %1655 = vmatmul.mubr.f32.gmra.mxu0 %v1482
      %v1656 = vpop.f32.mrf.mxu0
      %v1657 = vadd.f32 %v1333, %v1656
      %v1658 = vpop.f32.mrf.mxu0
      %1659 = vmatprep.mubr.f32.mxu0 0.0
      %1660 = vmatmul.mubr.f32.gmra.mxu0 %v1485
      %v1661 = vpop.f32.mrf.mxu0
      %v1662 = vadd.f32 %v1338, %v1661
      %v1663 = vpop.f32.mrf.mxu0
      %1664 = vmatprep.mubr.f32.mxu0 0.0
      %1665 = vmatmul.mubr.f32.gmra.mxu0 %v1488
      %v1666 = vpop.f32.mrf.mxu0
      %v1667 = vadd.f32 %v1343, %v1666
      %v1668 = vpop.f32.mrf.mxu0
      %1669 = vmatprep.mubr.f32.mxu0 0.0
      %1670 = vmatmul.mubr.f32.gmra.mxu0 %v1491
      %v1671 = vpop.f32.mrf.mxu0
      %v1672 = vadd.f32 %v1348, %v1671
      %v1673 = vpop.f32.mrf.mxu0
      %1674 = vmatprep.mubr.f32.mxu0 0.0
      %1675 = vmatmul.mubr.f32.gmra.mxu0 %v1494
      %v1676 = vpop.f32.mrf.mxu0
      %v1677 = vadd.f32 %v1353, %v1676
      %v1678 = vpop.f32.mrf.mxu0
      %1679 = vmatprep.mubr.f32.mxu0 0.0
      %1680 = vmatmul.mubr.f32.gmra.mxu0 %v1497
      %v1681 = vpop.f32.mrf.mxu0
      %v1682 = vadd.f32 %v1358, %v1681
      %v1683 = vpop.f32.mrf.mxu0
      %1684 = vmatprep.mubr.f32.mxu0 0.0
      %1685 = vmatmul.mubr.f32.gmra.mxu0 %v1500
      %v1686 = vpop.f32.mrf.mxu0
      %v1687 = vadd.f32 %v1363, %v1686
      %v1688 = vpop.f32.mrf.mxu0
      %1689 = vmatprep.mubr.f32.mxu0 0.0
      %1690 = vmatmul.mubr.f32.gmra.mxu0 %v1503
      %v1691 = vpop.f32.mrf.mxu0
      %v1692 = vadd.f32 %v1368, %v1691
      %v1693 = vpop.f32.mrf.mxu0
      %1694 = vmatprep.mubr.f32.mxu0 0.0
      %1695 = vmatmul.mubr.f32.gmra.mxu0 %v1506
      %v1696 = vpop.f32.mrf.mxu0
      %v1697 = vadd.f32 %v1373, %v1696
      %v1698 = vpop.f32.mrf.mxu0
      %1699 = vmatprep.mubr.f32.mxu0 0.0
      %1700 = vmatmul.mubr.f32.gmra.mxu0 %v1509
      %v1701 = vpop.f32.mrf.mxu0
      %v1702 = vadd.f32 %v1378, %v1701
      %v1703 = vpop.f32.mrf.mxu0
      %1704 = vmatprep.mubr.f32.mxu0 0.0
      %1705 = vmatmul.mubr.f32.gmra.mxu0 %v1512
      %v1706 = vpop.f32.mrf.mxu0
      %v1707 = vadd.f32 %v1383, %v1706
      %v1708 = vpop.f32.mrf.mxu0
      %1709 = vmatprep.mubr.f32.mxu0 0.0
      %1710 = vmatmul.mubr.f32.gmra.mxu0 %v1515
      %v1711 = vpop.f32.mrf.mxu0
      %v1712 = vadd.f32 %v1388, %v1711
      %v1713 = vpop.f32.mrf.mxu0
      %1714 = vmatprep.mubr.f32.mxu0 0.0
      %1715 = vmatmul.mubr.f32.gmra.mxu0 %v1518
      %v1716 = vpop.f32.mrf.mxu0
      %v1717 = vadd.f32 %v1393, %v1716
      %v1718 = vpop.f32.mrf.mxu0
      %1719 = vmatprep.mubr.f32.mxu0 0.0
      %1720 = vmatmul.mubr.f32.gmra.mxu0 %v1521
      %v1721 = vpop.f32.mrf.mxu0
      %v1722 = vadd.f32 %v1398, %v1721
      %v1723 = vpop.f32.mrf.mxu0
      %1724 = vmatprep.mubr.f32.mxu0 0.0
      %1725 = vmatmul.mubr.f32.gmra.mxu0 %v1524
      %v1726 = vpop.f32.mrf.mxu0
      %v1727 = vadd.f32 %v1403, %v1726
      %v1728 = vpop.f32.mrf.mxu0
      %1729 = vmatprep.mubr.f32.mxu0 0.0
      %1730 = vmatmul.mubr.f32.gmra.mxu0 %v1527
      %v1731 = vpop.f32.mrf.mxu0
      %v1732 = vadd.f32 %v1408, %v1731
      %v1733 = vpop.f32.mrf.mxu0
      %1734 = vmatprep.mubr.f32.mxu0 0.0
      %1735 = vmatmul.mubr.f32.gmra.mxu0 %v1530
      %v1736 = vpop.f32.mrf.mxu0
      %v1737 = vadd.f32 %v1413, %v1736
      %v1738 = vpop.f32.mrf.mxu0
      %1739 = vmatprep.mubr.f32.mxu0 0.0
      %1740 = vmatmul.mubr.f32.gmra.mxu0 %v1533
      %v1741 = vpop.f32.mrf.mxu0
      %v1742 = vadd.f32 %v1418, %v1741
      %v1743 = vpop.f32.mrf.mxu0
      %1744 = vmatprep.mubr.f32.mxu0 0.0
      %1745 = vmatmul.mubr.f32.gmra.mxu0 %v1536
      %v1746 = vpop.f32.mrf.mxu0
      %v1747 = vadd.f32 %v1423, %v1746
      %v1748 = vpop.f32.mrf.mxu0
      %1749 = vmatprep.mubr.f32.mxu0 0.0
      %1750 = vmatmul.mubr.f32.gmra.mxu0 %v1539
      %v1751 = vpop.f32.mrf.mxu0
      %v1752 = vadd.f32 %v1428, %v1751
      %v1753 = vpop.f32.mrf.mxu0
      %1754 = vmatprep.mubr.f32.mxu0 0.0
      %1755 = vmatmul.mubr.f32.gmra.mxu0 %v1542
      %v1756 = vpop.f32.mrf.mxu0
      %v1757 = vadd.f32 %v1433, %v1756
      %v1758 = vpop.f32.mrf.mxu0
      %1759 = vmatprep.mubr.f32.mxu0 0.0
      %1760 = vmatmul.mubr.f32.gmra.mxu0 %v1545
      %v1761 = vpop.f32.mrf.mxu0
      %v1762 = vadd.f32 %v1438, %v1761
      %v1763 = vpop.f32.mrf.mxu0
      %1764 = vmatprep.mubr.f32.mxu0 0.0
      %1765 = vmatmul.mubr.f32.gmra.mxu0 %v1548
      %v1766 = vpop.f32.mrf.mxu0
      %v1767 = vadd.f32 %v1443, %v1766
      %v1768 = vpop.f32.mrf.mxu0
      %1769 = vmatprep.mubr.f32.mxu0 0.0
      %1770 = vmatmul.mubr.f32.gmra.mxu0 %v1551
      %v1771 = vpop.f32.mrf.mxu0
      %v1772 = vadd.f32 %v1448, %v1771
      %v1773 = vpop.f32.mrf.mxu0
      %1774 = vmatprep.mubr.f32.mxu0 0.0
      %1775 = vmatmul.mubr.f32.gmra.mxu0 %v1554
      %v1776 = vpop.f32.mrf.mxu0
      %v1777 = vadd.f32 %v1453, %v1776
      %v1778 = vpop.f32.mrf.mxu0
      %1779 = vmatprep.mubr.f32.mxu0 0.0
      %1780 = vmatmul.mubr.f32.gmra.mxu0 %v1557
      %v1781 = vpop.f32.mrf.mxu0
      %v1782 = vadd.f32 %v1458, %v1781
      %v1783 = vpop.f32.mrf.mxu0
      %1784 = vmatprep.mubr.f32.mxu0 0.0
      %1785 = vmatmul.mubr.f32.gmra.mxu0 %v1560
      %v1786 = vpop.f32.mrf.mxu0
      %v1787 = vadd.f32 %v1463, %v1786
      %v1788 = vpop.f32.mrf.mxu0
      %1789 = vdwg.mxu0
      %s1790 = scalar_lea.vmem %s165, 48
      %v1791 = vld [vmem:[%s1790] sm:$0xff]
      %v1792 = vld [vmem:[%s1790 + $0x8] sm:$0xff]
      %v1793 = vld [vmem:[%s1790 + $0x18] sm:$0xff]
      %v1794 = vld [vmem:[%s1790 + $0x20] sm:$0xff]
      %v1795 = vld [vmem:[%s1790 + $0x30] sm:$0xff]
      %v1796 = vld [vmem:[%s1790 + $0x38] sm:$0xff]
      %v1797 = vld [vmem:[%s1790 + $0x48] sm:$0xff]
      %v1798 = vld [vmem:[%s1790 + $0x50] sm:$0xff]
      %v1799 = vld [vmem:[%s1790 + $0x60] sm:$0xff]
      %v1800 = vld [vmem:[%s1790 + $0x68] sm:$0xff]
      %v1801 = vld [vmem:[%s1790 + $0x78] sm:$0xff]
      %v1802 = vld [vmem:[%s1790 + $0x80] sm:$0xff]
      %v1803 = vld [vmem:[%s1790 + $0x90] sm:$0xff]
      %v1804 = vld [vmem:[%s1790 + $0x98] sm:$0xff]
      %v1805 = vld [vmem:[%s1790 + $0xa8] sm:$0xff]
      %v1806 = vld [vmem:[%s1790 + $0xb0] sm:$0xff]
      %v1807 = vld [vmem:[%s1790 + $0xc0] sm:$0xff]
      %v1808 = vld [vmem:[%s1790 + $0xc8] sm:$0xff]
      %v1809 = vld [vmem:[%s1790 + $0xd8] sm:$0xff]
      %v1810 = vld [vmem:[%s1790 + $0xe0] sm:$0xff]
      %v1811 = vld [vmem:[%s1790 + $0xf0] sm:$0xff]
      %v1812 = vld [vmem:[%s1790 + $0xf8] sm:$0xff]
      %v1813 = vld [vmem:[%s1790 + $0x108] sm:$0xff]
      %v1814 = vld [vmem:[%s1790 + $0x110] sm:$0xff]
      %v1815 = vld [vmem:[%s1790 + $0x120] sm:$0xff]
      %v1816 = vld [vmem:[%s1790 + $0x128] sm:$0xff]
      %v1817 = vld [vmem:[%s1790 + $0x138] sm:$0xff]
      %v1818 = vld [vmem:[%s1790 + $0x140] sm:$0xff]
      %v1819 = vld [vmem:[%s1790 + $0x150] sm:$0xff]
      %v1820 = vld [vmem:[%s1790 + $0x158] sm:$0xff]
      %v1821 = vld [vmem:[%s1790 + $0x168] sm:$0xff]
      %v1822 = vld [vmem:[%s1790 + $0x170] sm:$0xff]
      %1823 = vst.msk [vmem:[#allocation2] sm:$0xff] %vm203, %v1791
      %1824 = vst.msk [vmem:[#allocation2 + $0x8] sm:$0xff] %vm203, %v1792
      %1825 = vst.msk [vmem:[#allocation2 + $0x10] sm:$0xff] %vm203, %v1793
      %1826 = vst.msk [vmem:[#allocation2 + $0x18] sm:$0xff] %vm203, %v1794
      %1827 = vst.msk [vmem:[#allocation2 + $0x20] sm:$0xff] %vm203, %v1795
      %1828 = vst.msk [vmem:[#allocation2 + $0x28] sm:$0xff] %vm203, %v1796
      %1829 = vst.msk [vmem:[#allocation2 + $0x30] sm:$0xff] %vm203, %v1797
      %1830 = vst.msk [vmem:[#allocation2 + $0x38] sm:$0xff] %vm203, %v1798
      %1831 = vst.msk [vmem:[#allocation2 + $0x40] sm:$0xff] %vm203, %v1799
      %1832 = vst.msk [vmem:[#allocation2 + $0x48] sm:$0xff] %vm203, %v1800
      %1833 = vst.msk [vmem:[#allocation2 + $0x50] sm:$0xff] %vm203, %v1801
      %1834 = vst.msk [vmem:[#allocation2 + $0x58] sm:$0xff] %vm203, %v1802
      %1835 = vst.msk [vmem:[#allocation2 + $0x60] sm:$0xff] %vm203, %v1803
      %1836 = vst.msk [vmem:[#allocation2 + $0x68] sm:$0xff] %vm203, %v1804
      %1837 = vst.msk [vmem:[#allocation2 + $0x70] sm:$0xff] %vm203, %v1805
      %1838 = vst.msk [vmem:[#allocation2 + $0x78] sm:$0xff] %vm203, %v1806
      %1839 = vst.msk [vmem:[#allocation2 + $0x80] sm:$0xff] %vm203, %v1807
      %1840 = vst.msk [vmem:[#allocation2 + $0x88] sm:$0xff] %vm203, %v1808
      %1841 = vst.msk [vmem:[#allocation2 + $0x90] sm:$0xff] %vm203, %v1809
      %1842 = vst.msk [vmem:[#allocation2 + $0x98] sm:$0xff] %vm203, %v1810
      %1843 = vst.msk [vmem:[#allocation2 + $0xa0] sm:$0xff] %vm203, %v1811
      %1844 = vst.msk [vmem:[#allocation2 + $0xa8] sm:$0xff] %vm203, %v1812
      %1845 = vst.msk [vmem:[#allocation2 + $0xb0] sm:$0xff] %vm203, %v1813
      %1846 = vst.msk [vmem:[#allocation2 + $0xb8] sm:$0xff] %vm203, %v1814
      %1847 = vst.msk [vmem:[#allocation2 + $0xc0] sm:$0xff] %vm203, %v1815
      %1848 = vst.msk [vmem:[#allocation2 + $0xc8] sm:$0xff] %vm203, %v1816
      %1849 = vst.msk [vmem:[#allocation2 + $0xd0] sm:$0xff] %vm203, %v1817
      %1850 = vst.msk [vmem:[#allocation2 + $0xd8] sm:$0xff] %vm203, %v1818
      %1851 = vst.msk [vmem:[#allocation2 + $0xe0] sm:$0xff] %vm203, %v1819
      %1852 = vst.msk [vmem:[#allocation2 + $0xe8] sm:$0xff] %vm203, %v1820
      %1853 = vst.msk [vmem:[#allocation2 + $0xf0] sm:$0xff] %vm203, %v1821
      %1854 = vst.msk [vmem:[#allocation2 + $0xf8] sm:$0xff] %vm203, %v1822
      %v1855 = vld [vmem:[%s1790 + $0x1] sm:$0xff]
      %v1856 = vld [vmem:[%s1790 + $0x9] sm:$0xff]
      %v1857 = vld [vmem:[%s1790 + $0x19] sm:$0xff]
      %v1858 = vld [vmem:[%s1790 + $0x21] sm:$0xff]
      %v1859 = vld [vmem:[%s1790 + $0x31] sm:$0xff]
      %v1860 = vld [vmem:[%s1790 + $0x39] sm:$0xff]
      %v1861 = vld [vmem:[%s1790 + $0x49] sm:$0xff]
      %v1862 = vld [vmem:[%s1790 + $0x51] sm:$0xff]
      %v1863 = vld [vmem:[%s1790 + $0x61] sm:$0xff]
      %v1864 = vld [vmem:[%s1790 + $0x69] sm:$0xff]
      %v1865 = vld [vmem:[%s1790 + $0x79] sm:$0xff]
      %v1866 = vld [vmem:[%s1790 + $0x81] sm:$0xff]
      %v1867 = vld [vmem:[%s1790 + $0x91] sm:$0xff]
      %v1868 = vld [vmem:[%s1790 + $0x99] sm:$0xff]
      %v1869 = vld [vmem:[%s1790 + $0xa9] sm:$0xff]
      %v1870 = vld [vmem:[%s1790 + $0xb1] sm:$0xff]
      %v1871 = vld [vmem:[%s1790 + $0xc1] sm:$0xff]
      %v1872 = vld [vmem:[%s1790 + $0xc9] sm:$0xff]
      %v1873 = vld [vmem:[%s1790 + $0xd9] sm:$0xff]
      %v1874 = vld [vmem:[%s1790 + $0xe1] sm:$0xff]
      %v1875 = vld [vmem:[%s1790 + $0xf1] sm:$0xff]
      %v1876 = vld [vmem:[%s1790 + $0xf9] sm:$0xff]
      %v1877 = vld [vmem:[%s1790 + $0x109] sm:$0xff]
      %v1878 = vld [vmem:[%s1790 + $0x111] sm:$0xff]
      %v1879 = vld [vmem:[%s1790 + $0x121] sm:$0xff]
      %v1880 = vld [vmem:[%s1790 + $0x129] sm:$0xff]
      %v1881 = vld [vmem:[%s1790 + $0x139] sm:$0xff]
      %v1882 = vld [vmem:[%s1790 + $0x141] sm:$0xff]
      %v1883 = vld [vmem:[%s1790 + $0x151] sm:$0xff]
      %v1884 = vld [vmem:[%s1790 + $0x159] sm:$0xff]
      %v1885 = vld [vmem:[%s1790 + $0x169] sm:$0xff]
      %v1886 = vld [vmem:[%s1790 + $0x171] sm:$0xff]
      %1919 = vrot.lane.b32.xlu0 %v1855, 4
      %v1920 = vpop.permute.xlu0 %1919
      %1921 = vrot.lane.b32.xlu0 %v1856, 4
      %v1922 = vpop.permute.xlu0 %1921
      %1923 = vrot.lane.b32.xlu0 %v1857, 4
      %v1924 = vpop.permute.xlu0 %1923
      %1925 = vrot.lane.b32.xlu0 %v1858, 4
      %v1926 = vpop.permute.xlu0 %1925
      %1927 = vrot.lane.b32.xlu0 %v1859, 4
      %v1928 = vpop.permute.xlu0 %1927
      %1929 = vrot.lane.b32.xlu0 %v1860, 4
      %v1930 = vpop.permute.xlu0 %1929
      %1931 = vrot.lane.b32.xlu0 %v1861, 4
      %v1932 = vpop.permute.xlu0 %1931
      %1933 = vrot.lane.b32.xlu0 %v1862, 4
      %v1934 = vpop.permute.xlu0 %1933
      %1935 = vrot.lane.b32.xlu0 %v1863, 4
      %v1936 = vpop.permute.xlu0 %1935
      %1937 = vrot.lane.b32.xlu0 %v1864, 4
      %v1938 = vpop.permute.xlu0 %1937
      %1939 = vrot.lane.b32.xlu0 %v1865, 4
      %v1940 = vpop.permute.xlu0 %1939
      %1941 = vrot.lane.b32.xlu0 %v1866, 4
      %v1942 = vpop.permute.xlu0 %1941
      %1943 = vrot.lane.b32.xlu0 %v1867, 4
      %v1944 = vpop.permute.xlu0 %1943
      %1945 = vrot.lane.b32.xlu0 %v1868, 4
      %v1946 = vpop.permute.xlu0 %1945
      %1947 = vrot.lane.b32.xlu0 %v1869, 4
      %v1948 = vpop.permute.xlu0 %1947
      %1949 = vrot.lane.b32.xlu0 %v1870, 4
      %v1950 = vpop.permute.xlu0 %1949
      %1951 = vrot.lane.b32.xlu0 %v1871, 4
      %v1952 = vpop.permute.xlu0 %1951
      %1953 = vrot.lane.b32.xlu0 %v1872, 4
      %v1954 = vpop.permute.xlu0 %1953
      %1955 = vrot.lane.b32.xlu0 %v1873, 4
      %v1956 = vpop.permute.xlu0 %1955
      %1957 = vrot.lane.b32.xlu0 %v1874, 4
      %v1958 = vpop.permute.xlu0 %1957
      %1959 = vrot.lane.b32.xlu0 %v1875, 4
      %v1960 = vpop.permute.xlu0 %1959
      %1961 = vrot.lane.b32.xlu0 %v1876, 4
      %v1962 = vpop.permute.xlu0 %1961
      %1963 = vrot.lane.b32.xlu0 %v1877, 4
      %v1964 = vpop.permute.xlu0 %1963
      %1965 = vrot.lane.b32.xlu0 %v1878, 4
      %v1966 = vpop.permute.xlu0 %1965
      %1967 = vrot.lane.b32.xlu0 %v1879, 4
      %v1968 = vpop.permute.xlu0 %1967
      %1969 = vrot.lane.b32.xlu0 %v1880, 4
      %v1970 = vpop.permute.xlu0 %1969
      %1971 = vrot.lane.b32.xlu0 %v1881, 4
      %v1972 = vpop.permute.xlu0 %1971
      %1973 = vrot.lane.b32.xlu0 %v1882, 4
      %v1974 = vpop.permute.xlu0 %1973
      %1975 = vrot.lane.b32.xlu0 %v1883, 4
      %v1976 = vpop.permute.xlu0 %1975
      %1977 = vrot.lane.b32.xlu0 %v1884, 4
      %v1978 = vpop.permute.xlu0 %1977
      %1979 = vrot.lane.b32.xlu0 %v1885, 4
      %v1980 = vpop.permute.xlu0 %1979
      %1981 = vrot.lane.b32.xlu0 %v1886, 4
      %v1982 = vpop.permute.xlu0 %1981
      %2015 = vst.msk [vmem:[#allocation2] sm:$0xff] %vm396, %v1920
      %2016 = vst.msk [vmem:[#allocation2 + $0x8] sm:$0xff] %vm396, %v1922
      %2017 = vst.msk [vmem:[#allocation2 + $0x10] sm:$0xff] %vm396, %v1924
      %2018 = vst.msk [vmem:[#allocation2 + $0x18] sm:$0xff] %vm396, %v1926
      %2019 = vst.msk [vmem:[#allocation2 + $0x20] sm:$0xff] %vm396, %v1928
      %2020 = vst.msk [vmem:[#allocation2 + $0x28] sm:$0xff] %vm396, %v1930
      %2021 = vst.msk [vmem:[#allocation2 + $0x30] sm:$0xff] %vm396, %v1932
      %2022 = vst.msk [vmem:[#allocation2 + $0x38] sm:$0xff] %vm396, %v1934
      %2023 = vst.msk [vmem:[#allocation2 + $0x40] sm:$0xff] %vm396, %v1936
      %2024 = vst.msk [vmem:[#allocation2 + $0x48] sm:$0xff] %vm396, %v1938
      %2025 = vst.msk [vmem:[#allocation2 + $0x50] sm:$0xff] %vm396, %v1940
      %2026 = vst.msk [vmem:[#allocation2 + $0x58] sm:$0xff] %vm396, %v1942
      %2027 = vst.msk [vmem:[#allocation2 + $0x60] sm:$0xff] %vm396, %v1944
      %2028 = vst.msk [vmem:[#allocation2 + $0x68] sm:$0xff] %vm396, %v1946
      %2029 = vst.msk [vmem:[#allocation2 + $0x70] sm:$0xff] %vm396, %v1948
      %2030 = vst.msk [vmem:[#allocation2 + $0x78] sm:$0xff] %vm396, %v1950
      %2031 = vst.msk [vmem:[#allocation2 + $0x80] sm:$0xff] %vm396, %v1952
      %2032 = vst.msk [vmem:[#allocation2 + $0x88] sm:$0xff] %vm396, %v1954
      %2033 = vst.msk [vmem:[#allocation2 + $0x90] sm:$0xff] %vm396, %v1956
      %2034 = vst.msk [vmem:[#allocation2 + $0x98] sm:$0xff] %vm396, %v1958
      %2035 = vst.msk [vmem:[#allocation2 + $0xa0] sm:$0xff] %vm396, %v1960
      %2036 = vst.msk [vmem:[#allocation2 + $0xa8] sm:$0xff] %vm396, %v1962
      %2037 = vst.msk [vmem:[#allocation2 + $0xb0] sm:$0xff] %vm396, %v1964
      %2038 = vst.msk [vmem:[#allocation2 + $0xb8] sm:$0xff] %vm396, %v1966
      %2039 = vst.msk [vmem:[#allocation2 + $0xc0] sm:$0xff] %vm396, %v1968
      %2040 = vst.msk [vmem:[#allocation2 + $0xc8] sm:$0xff] %vm396, %v1970
      %2041 = vst.msk [vmem:[#allocation2 + $0xd0] sm:$0xff] %vm396, %v1972
      %2042 = vst.msk [vmem:[#allocation2 + $0xd8] sm:$0xff] %vm396, %v1974
      %2043 = vst.msk [vmem:[#allocation2 + $0xe0] sm:$0xff] %vm396, %v1976
      %2044 = vst.msk [vmem:[#allocation2 + $0xe8] sm:$0xff] %vm396, %v1978
      %2045 = vst.msk [vmem:[#allocation2 + $0xf0] sm:$0xff] %vm396, %v1980
      %2046 = vst.msk [vmem:[#allocation2 + $0xf8] sm:$0xff] %vm396, %v1982
      %v2047 = vld [vmem:[%s1790 + $0x2] sm:$0xff]
      %v2048 = vld [vmem:[%s1790 + $0xa] sm:$0xff]
      %v2049 = vld [vmem:[%s1790 + $0x1a] sm:$0xff]
      %v2050 = vld [vmem:[%s1790 + $0x22] sm:$0xff]
      %v2051 = vld [vmem:[%s1790 + $0x32] sm:$0xff]
      %v2052 = vld [vmem:[%s1790 + $0x3a] sm:$0xff]
      %v2053 = vld [vmem:[%s1790 + $0x4a] sm:$0xff]
      %v2054 = vld [vmem:[%s1790 + $0x52] sm:$0xff]
      %v2055 = vld [vmem:[%s1790 + $0x62] sm:$0xff]
      %v2056 = vld [vmem:[%s1790 + $0x6a] sm:$0xff]
      %v2057 = vld [vmem:[%s1790 + $0x7a] sm:$0xff]
      %v2058 = vld [vmem:[%s1790 + $0x82] sm:$0xff]
      %v2059 = vld [vmem:[%s1790 + $0x92] sm:$0xff]
      %v2060 = vld [vmem:[%s1790 + $0x9a] sm:$0xff]
      %v2061 = vld [vmem:[%s1790 + $0xaa] sm:$0xff]
      %v2062 = vld [vmem:[%s1790 + $0xb2] sm:$0xff]
      %v2063 = vld [vmem:[%s1790 + $0xc2] sm:$0xff]
      %v2064 = vld [vmem:[%s1790 + $0xca] sm:$0xff]
      %v2065 = vld [vmem:[%s1790 + $0xda] sm:$0xff]
      %v2066 = vld [vmem:[%s1790 + $0xe2] sm:$0xff]
      %v2067 = vld [vmem:[%s1790 + $0xf2] sm:$0xff]
      %v2068 = vld [vmem:[%s1790 + $0xfa] sm:$0xff]
      %v2069 = vld [vmem:[%s1790 + $0x10a] sm:$0xff]
      %v2070 = vld [vmem:[%s1790 + $0x112] sm:$0xff]
      %v2071 = vld [vmem:[%s1790 + $0x122] sm:$0xff]
      %v2072 = vld [vmem:[%s1790 + $0x12a] sm:$0xff]
      %v2073 = vld [vmem:[%s1790 + $0x13a] sm:$0xff]
      %v2074 = vld [vmem:[%s1790 + $0x142] sm:$0xff]
      %v2075 = vld [vmem:[%s1790 + $0x152] sm:$0xff]
      %v2076 = vld [vmem:[%s1790 + $0x15a] sm:$0xff]
      %v2077 = vld [vmem:[%s1790 + $0x16a] sm:$0xff]
      %v2078 = vld [vmem:[%s1790 + $0x172] sm:$0xff]
      %2111 = vrot.lane.b32.xlu0 %v2047, 8
      %v2112 = vpop.permute.xlu0 %2111
      %2113 = vrot.lane.b32.xlu0 %v2048, 8
      %v2114 = vpop.permute.xlu0 %2113
      %2115 = vrot.lane.b32.xlu0 %v2049, 8
      %v2116 = vpop.permute.xlu0 %2115
      %2117 = vrot.lane.b32.xlu0 %v2050, 8
      %v2118 = vpop.permute.xlu0 %2117
      %2119 = vrot.lane.b32.xlu0 %v2051, 8
      %v2120 = vpop.permute.xlu0 %2119
      %2121 = vrot.lane.b32.xlu0 %v2052, 8
      %v2122 = vpop.permute.xlu0 %2121
      %2123 = vrot.lane.b32.xlu0 %v2053, 8
      %v2124 = vpop.permute.xlu0 %2123
      %2125 = vrot.lane.b32.xlu0 %v2054, 8
      %v2126 = vpop.permute.xlu0 %2125
      %2127 = vrot.lane.b32.xlu0 %v2055, 8
      %v2128 = vpop.permute.xlu0 %2127
      %2129 = vrot.lane.b32.xlu0 %v2056, 8
      %v2130 = vpop.permute.xlu0 %2129
      %2131 = vrot.lane.b32.xlu0 %v2057, 8
      %v2132 = vpop.permute.xlu0 %2131
      %2133 = vrot.lane.b32.xlu0 %v2058, 8
      %v2134 = vpop.permute.xlu0 %2133
      %2135 = vrot.lane.b32.xlu0 %v2059, 8
      %v2136 = vpop.permute.xlu0 %2135
      %2137 = vrot.lane.b32.xlu0 %v2060, 8
      %v2138 = vpop.permute.xlu0 %2137
      %2139 = vrot.lane.b32.xlu0 %v2061, 8
      %v2140 = vpop.permute.xlu0 %2139
      %2141 = vrot.lane.b32.xlu0 %v2062, 8
      %v2142 = vpop.permute.xlu0 %2141
      %2143 = vrot.lane.b32.xlu0 %v2063, 8
      %v2144 = vpop.permute.xlu0 %2143
      %2145 = vrot.lane.b32.xlu0 %v2064, 8
      %v2146 = vpop.permute.xlu0 %2145
      %2147 = vrot.lane.b32.xlu0 %v2065, 8
      %v2148 = vpop.permute.xlu0 %2147
      %2149 = vrot.lane.b32.xlu0 %v2066, 8
      %v2150 = vpop.permute.xlu0 %2149
      %2151 = vrot.lane.b32.xlu0 %v2067, 8
      %v2152 = vpop.permute.xlu0 %2151
      %2153 = vrot.lane.b32.xlu0 %v2068, 8
      %v2154 = vpop.permute.xlu0 %2153
      %2155 = vrot.lane.b32.xlu0 %v2069, 8
      %v2156 = vpop.permute.xlu0 %2155
      %2157 = vrot.lane.b32.xlu0 %v2070, 8
      %v2158 = vpop.permute.xlu0 %2157
      %2159 = vrot.lane.b32.xlu0 %v2071, 8
      %v2160 = vpop.permute.xlu0 %2159
      %2161 = vrot.lane.b32.xlu0 %v2072, 8
      %v2162 = vpop.permute.xlu0 %2161
      %2163 = vrot.lane.b32.xlu0 %v2073, 8
      %v2164 = vpop.permute.xlu0 %2163
      %2165 = vrot.lane.b32.xlu0 %v2074, 8
      %v2166 = vpop.permute.xlu0 %2165
      %2167 = vrot.lane.b32.xlu0 %v2075, 8
      %v2168 = vpop.permute.xlu0 %2167
      %2169 = vrot.lane.b32.xlu0 %v2076, 8
      %v2170 = vpop.permute.xlu0 %2169
      %2171 = vrot.lane.b32.xlu0 %v2077, 8
      %v2172 = vpop.permute.xlu0 %2171
      %2173 = vrot.lane.b32.xlu0 %v2078, 8
      %v2174 = vpop.permute.xlu0 %2173
      %2207 = vst.msk [vmem:[#allocation2] sm:$0xff] %vm589, %v2112
      %2208 = vst.msk [vmem:[#allocation2 + $0x8] sm:$0xff] %vm589, %v2114
      %2209 = vst.msk [vmem:[#allocation2 + $0x10] sm:$0xff] %vm589, %v2116
      %2210 = vst.msk [vmem:[#allocation2 + $0x18] sm:$0xff] %vm589, %v2118
      %2211 = vst.msk [vmem:[#allocation2 + $0x20] sm:$0xff] %vm589, %v2120
      %2212 = vst.msk [vmem:[#allocation2 + $0x28] sm:$0xff] %vm589, %v2122
      %2213 = vst.msk [vmem:[#allocation2 + $0x30] sm:$0xff] %vm589, %v2124
      %2214 = vst.msk [vmem:[#allocation2 + $0x38] sm:$0xff] %vm589, %v2126
      %2215 = vst.msk [vmem:[#allocation2 + $0x40] sm:$0xff] %vm589, %v2128
      %2216 = vst.msk [vmem:[#allocation2 + $0x48] sm:$0xff] %vm589, %v2130
      %2217 = vst.msk [vmem:[#allocation2 + $0x50] sm:$0xff] %vm589, %v2132
      %2218 = vst.msk [vmem:[#allocation2 + $0x58] sm:$0xff] %vm589, %v2134
      %2219 = vst.msk [vmem:[#allocation2 + $0x60] sm:$0xff] %vm589, %v2136
      %2220 = vst.msk [vmem:[#allocation2 + $0x68] sm:$0xff] %vm589, %v2138
      %2221 = vst.msk [vmem:[#allocation2 + $0x70] sm:$0xff] %vm589, %v2140
      %2222 = vst.msk [vmem:[#allocation2 + $0x78] sm:$0xff] %vm589, %v2142
      %2223 = vst.msk [vmem:[#allocation2 + $0x80] sm:$0xff] %vm589, %v2144
      %2224 = vst.msk [vmem:[#allocation2 + $0x88] sm:$0xff] %vm589, %v2146
      %2225 = vst.msk [vmem:[#allocation2 + $0x90] sm:$0xff] %vm589, %v2148
      %2226 = vst.msk [vmem:[#allocation2 + $0x98] sm:$0xff] %vm589, %v2150
      %2227 = vst.msk [vmem:[#allocation2 + $0xa0] sm:$0xff] %vm589, %v2152
      %2228 = vst.msk [vmem:[#allocation2 + $0xa8] sm:$0xff] %vm589, %v2154
      %2229 = vst.msk [vmem:[#allocation2 + $0xb0] sm:$0xff] %vm589, %v2156
      %2230 = vst.msk [vmem:[#allocation2 + $0xb8] sm:$0xff] %vm589, %v2158
      %2231 = vst.msk [vmem:[#allocation2 + $0xc0] sm:$0xff] %vm589, %v2160
      %2232 = vst.msk [vmem:[#allocation2 + $0xc8] sm:$0xff] %vm589, %v2162
      %2233 = vst.msk [vmem:[#allocation2 + $0xd0] sm:$0xff] %vm589, %v2164
      %2234 = vst.msk [vmem:[#allocation2 + $0xd8] sm:$0xff] %vm589, %v2166
      %2235 = vst.msk [vmem:[#allocation2 + $0xe0] sm:$0xff] %vm589, %v2168
      %2236 = vst.msk [vmem:[#allocation2 + $0xe8] sm:$0xff] %vm589, %v2170
      %2237 = vst.msk [vmem:[#allocation2 + $0xf0] sm:$0xff] %vm589, %v2172
      %2238 = vst.msk [vmem:[#allocation2 + $0xf8] sm:$0xff] %vm589, %v2174
      %v2239 = vld [vmem:[#allocation2] sm:$0xff]
      %v2240 = vld [vmem:[#allocation2 + $0x8] sm:$0xff]
      %v2241 = vld [vmem:[#allocation2 + $0x10] sm:$0xff]
      %v2242 = vld [vmem:[#allocation2 + $0x18] sm:$0xff]
      %v2243 = vld [vmem:[#allocation2 + $0x20] sm:$0xff]
      %v2244 = vld [vmem:[#allocation2 + $0x28] sm:$0xff]
      %v2245 = vld [vmem:[#allocation2 + $0x30] sm:$0xff]
      %v2246 = vld [vmem:[#allocation2 + $0x38] sm:$0xff]
      %v2247 = vld [vmem:[#allocation2 + $0x40] sm:$0xff]
      %v2248 = vld [vmem:[#allocation2 + $0x48] sm:$0xff]
      %v2249 = vld [vmem:[#allocation2 + $0x50] sm:$0xff]
      %v2250 = vld [vmem:[#allocation2 + $0x58] sm:$0xff]
      %v2251 = vld [vmem:[#allocation2 + $0x60] sm:$0xff]
      %v2252 = vld [vmem:[#allocation2 + $0x68] sm:$0xff]
      %v2253 = vld [vmem:[#allocation2 + $0x70] sm:$0xff]
      %v2254 = vld [vmem:[#allocation2 + $0x78] sm:$0xff]
      %v2255 = vld [vmem:[#allocation2 + $0x80] sm:$0xff]
      %v2256 = vld [vmem:[#allocation2 + $0x88] sm:$0xff]
      %v2257 = vld [vmem:[#allocation2 + $0x90] sm:$0xff]
      %v2258 = vld [vmem:[#allocation2 + $0x98] sm:$0xff]
      %v2259 = vld [vmem:[#allocation2 + $0xa0] sm:$0xff]
      %v2260 = vld [vmem:[#allocation2 + $0xa8] sm:$0xff]
      %v2261 = vld [vmem:[#allocation2 + $0xb0] sm:$0xff]
      %v2262 = vld [vmem:[#allocation2 + $0xb8] sm:$0xff]
      %v2263 = vld [vmem:[#allocation2 + $0xc0] sm:$0xff]
      %v2264 = vld [vmem:[#allocation2 + $0xc8] sm:$0xff]
      %v2265 = vld [vmem:[#allocation2 + $0xd0] sm:$0xff]
      %v2266 = vld [vmem:[#allocation2 + $0xd8] sm:$0xff]
      %v2267 = vld [vmem:[#allocation2 + $0xe0] sm:$0xff]
      %v2268 = vld [vmem:[#allocation2 + $0xe8] sm:$0xff]
      %v2269 = vld [vmem:[#allocation2 + $0xf0] sm:$0xff]
      %v2270 = vld [vmem:[#allocation2 + $0xf8] sm:$0xff]
      %s2271 = scalar_lea.vmem %s1, 32
      %v2272 = vld [vmem:[%s2271] sm:$0xff]
      %v2273 = vld [vmem:[%s2271 + $0x8] sm:$0xf]
      %v2275 = vsel %vm1140, %v2239, 0
      %v2278 = vsel %vm1140, %v2240, 0
      %v2281 = vsel %vm1140, %v2241, 0
      %v2284 = vsel %vm1140, %v2242, 0
      %v2287 = vsel %vm1140, %v2243, 0
      %v2290 = vsel %vm1140, %v2244, 0
      %v2293 = vsel %vm1140, %v2245, 0
      %v2296 = vsel %vm1140, %v2246, 0
      %v2299 = vsel %vm1140, %v2247, 0
      %v2302 = vsel %vm1140, %v2248, 0
      %v2305 = vsel %vm1140, %v2249, 0
      %v2308 = vsel %vm1140, %v2250, 0
      %v2311 = vsel %vm1140, %v2251, 0
      %v2314 = vsel %vm1140, %v2252, 0
      %v2317 = vsel %vm1140, %v2253, 0
      %v2320 = vsel %vm1140, %v2254, 0
      %v2323 = vsel %vm1140, %v2255, 0
      %v2326 = vsel %vm1140, %v2256, 0
      %v2329 = vsel %vm1140, %v2257, 0
      %v2332 = vsel %vm1140, %v2258, 0
      %v2335 = vsel %vm1140, %v2259, 0
      %v2338 = vsel %vm1140, %v2260, 0
      %v2341 = vsel %vm1140, %v2261, 0
      %v2344 = vsel %vm1140, %v2262, 0
      %v2347 = vsel %vm1140, %v2263, 0
      %v2350 = vsel %vm1140, %v2264, 0
      %v2353 = vsel %vm1140, %v2265, 0
      %v2356 = vsel %vm1140, %v2266, 0
      %v2359 = vsel %vm1140, %v2267, 0
      %v2362 = vsel %vm1140, %v2268, 0
      %v2365 = vsel %vm1140, %v2269, 0
      %v2368 = vsel %vm1140, %v2270, 0
      %v2371 = vsel %vm1237, %v2273, 0
      %2373 = vmatprep.subr.mxu0 0.0
      %2374 = vmatpush1.msra.mxu0 0.0
      %2375 = vmatprep.subr.mxu0 0.0
      %2376 = vmatpush1.msra.mxu0 0.0
      %2377 = vmatprep.subr.mxu0 0.0
      %2378 = vmatpush1.msra.mxu0 0.0
      %2379 = vmatprep.subr.mxu0 0.0
      %2380 = vmatpush1.msra.mxu0 0.0
      %2381 = vmatprep.subr.mxu0 0.0
      %2382 = vmatpush1.msra.mxu0 0.0
      %2383 = vmatprep.subr.mxu0 0.0
      %2384 = vmatpush1.msra.mxu0 0.0
      %2385 = vmatprep.subr.mxu0 0.0
      %2386 = vmatpush1.msra.mxu0 0.0
      %2387 = vmatprep.subr.mxu0 0.0
      %2388 = vmatpush1.msra.mxu0 0.0
      %2389 = vmatprep.subr.mxu0 0.0
      %2390 = vmatpush1.msra.mxu0 0.0
      %2391 = vmatprep.subr.mxu0 0.0
      %2392 = vmatpush1.msra.mxu0 0.0
      %2393 = vmatprep.subr.mxu0 0.0
      %2394 = vmatpush1.msra.mxu0 0.0
      %2395 = vmatprep.subr.mxu0 0.0
      %2396 = vmatpush1.msra.mxu0 0.0
      %2397 = vmatprep.subr.mxu0 0.0
      %2398 = vmatpush1.msra.mxu0 0.0
      %2399 = vmatprep.subr.mxu0 0.0
      %2400 = vmatpush1.msra.mxu0 0.0
      %2401 = vmatprep.subr.mxu0 0.0
      %2402 = vmatpush1.msra.mxu0 %v2371
      %2403 = vmatprep.subr.mxu0 0.0
      %2404 = vmatpush1.msra.mxu0 %v2272
      %2405 = vmatprep.subr.mxu0 0.0
      %2406 = vmatpush2.msra.mxu0 0.0
      %2407 = vmatprep.subr.mxu0 0.0
      %2408 = vmatpush2.msra.mxu0 0.0
      %2409 = vmatprep.subr.mxu0 0.0
      %2410 = vmatpush2.msra.mxu0 0.0
      %2411 = vmatprep.subr.mxu0 0.0
      %2412 = vmatpush2.msra.mxu0 0.0
      %2413 = vmatprep.subr.mxu0 0.0
      %2414 = vmatpush2.msra.mxu0 0.0
      %2415 = vmatprep.subr.mxu0 0.0
      %2416 = vmatpush2.msra.mxu0 0.0
      %2417 = vmatprep.subr.mxu0 0.0
      %2418 = vmatpush2.msra.mxu0 0.0
      %2419 = vmatprep.subr.mxu0 0.0
      %2420 = vmatpush2.msra.mxu0 0.0
      %2421 = vmatprep.subr.mxu0 0.0
      %2422 = vmatpush2.msra.mxu0 0.0
      %2423 = vmatprep.subr.mxu0 0.0
      %2424 = vmatpush2.msra.mxu0 0.0
      %2425 = vmatprep.subr.mxu0 0.0
      %2426 = vmatpush2.msra.mxu0 0.0
      %2427 = vmatprep.subr.mxu0 0.0
      %2428 = vmatpush2.msra.mxu0 0.0
      %2429 = vmatprep.subr.mxu0 0.0
      %2430 = vmatpush2.msra.mxu0 0.0
      %2431 = vmatprep.subr.mxu0 0.0
      %2432 = vmatpush2.msra.mxu0 0.0
      %2433 = vmatprep.subr.mxu0 0.0
      %2434 = vmatpush2.msra.mxu0 0.0
      %2435 = vmatprep.subr.mxu0 0.0
      %2436 = vmatpush2.msra.mxu0 0.0
      %2437 = vmatprep.mubr.f32.mxu0 0.0
      %2438 = vmatmul.mubr.f32.gmra.mxu0 %v2275
      %v2439 = vpop.f32.mrf.mxu0
      %v2440 = vadd.f32 0.0, %v2439
      %v2441 = vpop.f32.mrf.mxu0
      %2442 = vmatprep.mubr.f32.mxu0 0.0
      %2443 = vmatmul.mubr.f32.gmra.mxu0 %v2278
      %v2444 = vpop.f32.mrf.mxu0
      %v2445 = vadd.f32 0.0, %v2444
      %v2446 = vpop.f32.mrf.mxu0
      %2447 = vmatprep.mubr.f32.mxu0 0.0
      %2448 = vmatmul.mubr.f32.gmra.mxu0 %v2281
      %v2449 = vpop.f32.mrf.mxu0
      %v2450 = vadd.f32 0.0, %v2449
      %v2451 = vpop.f32.mrf.mxu0
      %2452 = vmatprep.mubr.f32.mxu0 0.0
      %2453 = vmatmul.mubr.f32.gmra.mxu0 %v2284
      %v2454 = vpop.f32.mrf.mxu0
      %v2455 = vadd.f32 0.0, %v2454
      %v2456 = vpop.f32.mrf.mxu0
      %2457 = vmatprep.mubr.f32.mxu0 0.0
      %2458 = vmatmul.mubr.f32.gmra.mxu0 %v2287
      %v2459 = vpop.f32.mrf.mxu0
      %v2460 = vadd.f32 0.0, %v2459
      %v2461 = vpop.f32.mrf.mxu0
      %2462 = vmatprep.mubr.f32.mxu0 0.0
      %2463 = vmatmul.mubr.f32.gmra.mxu0 %v2290
      %v2464 = vpop.f32.mrf.mxu0
      %v2465 = vadd.f32 0.0, %v2464
      %v2466 = vpop.f32.mrf.mxu0
      %2467 = vmatprep.mubr.f32.mxu0 0.0
      %2468 = vmatmul.mubr.f32.gmra.mxu0 %v2293
      %v2469 = vpop.f32.mrf.mxu0
      %v2470 = vadd.f32 0.0, %v2469
      %v2471 = vpop.f32.mrf.mxu0
      %2472 = vmatprep.mubr.f32.mxu0 0.0
      %2473 = vmatmul.mubr.f32.gmra.mxu0 %v2296
      %v2474 = vpop.f32.mrf.mxu0
      %v2475 = vadd.f32 0.0, %v2474
      %v2476 = vpop.f32.mrf.mxu0
      %2477 = vmatprep.mubr.f32.mxu0 0.0
      %2478 = vmatmul.mubr.f32.gmra.mxu0 %v2299
      %v2479 = vpop.f32.mrf.mxu0
      %v2480 = vadd.f32 0.0, %v2479
      %v2481 = vpop.f32.mrf.mxu0
      %2482 = vmatprep.mubr.f32.mxu0 0.0
      %2483 = vmatmul.mubr.f32.gmra.mxu0 %v2302
      %v2484 = vpop.f32.mrf.mxu0
      %v2485 = vadd.f32 0.0, %v2484
      %v2486 = vpop.f32.mrf.mxu0
      %2487 = vmatprep.mubr.f32.mxu0 0.0
      %2488 = vmatmul.mubr.f32.gmra.mxu0 %v2305
      %v2489 = vpop.f32.mrf.mxu0
      %v2490 = vadd.f32 0.0, %v2489
      %v2491 = vpop.f32.mrf.mxu0
      %2492 = vmatprep.mubr.f32.mxu0 0.0
      %2493 = vmatmul.mubr.f32.gmra.mxu0 %v2308
      %v2494 = vpop.f32.mrf.mxu0
      %v2495 = vadd.f32 0.0, %v2494
      %v2496 = vpop.f32.mrf.mxu0
      %2497 = vmatprep.mubr.f32.mxu0 0.0
      %2498 = vmatmul.mubr.f32.gmra.mxu0 %v2311
      %v2499 = vpop.f32.mrf.mxu0
      %v2500 = vadd.f32 0.0, %v2499
      %v2501 = vpop.f32.mrf.mxu0
      %2502 = vmatprep.mubr.f32.mxu0 0.0
      %2503 = vmatmul.mubr.f32.gmra.mxu0 %v2314
      %v2504 = vpop.f32.mrf.mxu0
      %v2505 = vadd.f32 0.0, %v2504
      %v2506 = vpop.f32.mrf.mxu0
      %2507 = vmatprep.mubr.f32.mxu0 0.0
      %2508 = vmatmul.mubr.f32.gmra.mxu0 %v2317
      %v2509 = vpop.f32.mrf.mxu0
      %v2510 = vadd.f32 0.0, %v2509
      %v2511 = vpop.f32.mrf.mxu0
      %2512 = vmatprep.mubr.f32.mxu0 0.0
      %2513 = vmatmul.mubr.f32.gmra.mxu0 %v2320
      %v2514 = vpop.f32.mrf.mxu0
      %v2515 = vadd.f32 0.0, %v2514
      %v2516 = vpop.f32.mrf.mxu0
      %2517 = vmatprep.mubr.f32.mxu0 0.0
      %2518 = vmatmul.mubr.f32.gmra.mxu0 %v2323
      %v2519 = vpop.f32.mrf.mxu0
      %v2520 = vadd.f32 0.0, %v2519
      %v2521 = vpop.f32.mrf.mxu0
      %2522 = vmatprep.mubr.f32.mxu0 0.0
      %2523 = vmatmul.mubr.f32.gmra.mxu0 %v2326
      %v2524 = vpop.f32.mrf.mxu0
      %v2525 = vadd.f32 0.0, %v2524
      %v2526 = vpop.f32.mrf.mxu0
      %2527 = vmatprep.mubr.f32.mxu0 0.0
      %2528 = vmatmul.mubr.f32.gmra.mxu0 %v2329
      %v2529 = vpop.f32.mrf.mxu0
      %v2530 = vadd.f32 0.0, %v2529
      %v2531 = vpop.f32.mrf.mxu0
      %2532 = vmatprep.mubr.f32.mxu0 0.0
      %2533 = vmatmul.mubr.f32.gmra.mxu0 %v2332
      %v2534 = vpop.f32.mrf.mxu0
      %v2535 = vadd.f32 0.0, %v2534
      %v2536 = vpop.f32.mrf.mxu0
      %2537 = vmatprep.mubr.f32.mxu0 0.0
      %2538 = vmatmul.mubr.f32.gmra.mxu0 %v2335
      %v2539 = vpop.f32.mrf.mxu0
      %v2540 = vadd.f32 0.0, %v2539
      %v2541 = vpop.f32.mrf.mxu0
      %2542 = vmatprep.mubr.f32.mxu0 0.0
      %2543 = vmatmul.mubr.f32.gmra.mxu0 %v2338
      %v2544 = vpop.f32.mrf.mxu0
      %v2545 = vadd.f32 0.0, %v2544
      %v2546 = vpop.f32.mrf.mxu0
      %2547 = vmatprep.mubr.f32.mxu0 0.0
      %2548 = vmatmul.mubr.f32.gmra.mxu0 %v2341
      %v2549 = vpop.f32.mrf.mxu0
      %v2550 = vadd.f32 0.0, %v2549
      %v2551 = vpop.f32.mrf.mxu0
      %2552 = vmatprep.mubr.f32.mxu0 0.0
      %2553 = vmatmul.mubr.f32.gmra.mxu0 %v2344
      %v2554 = vpop.f32.mrf.mxu0
      %v2555 = vadd.f32 0.0, %v2554
      %v2556 = vpop.f32.mrf.mxu0
      %2557 = vmatprep.mubr.f32.mxu0 0.0
      %2558 = vmatmul.mubr.f32.gmra.mxu0 %v2347
      %v2559 = vpop.f32.mrf.mxu0
      %v2560 = vadd.f32 0.0, %v2559
      %v2561 = vpop.f32.mrf.mxu0
      %2562 = vmatprep.mubr.f32.mxu0 0.0
      %2563 = vmatmul.mubr.f32.gmra.mxu0 %v2350
      %v2564 = vpop.f32.mrf.mxu0
      %v2565 = vadd.f32 0.0, %v2564
      %v2566 = vpop.f32.mrf.mxu0
      %2567 = vmatprep.mubr.f32.mxu0 0.0
      %2568 = vmatmul.mubr.f32.gmra.mxu0 %v2353
      %v2569 = vpop.f32.mrf.mxu0
      %v2570 = vadd.f32 0.0, %v2569
      %v2571 = vpop.f32.mrf.mxu0
      %2572 = vmatprep.mubr.f32.mxu0 0.0
      %2573 = vmatmul.mubr.f32.gmra.mxu0 %v2356
      %v2574 = vpop.f32.mrf.mxu0
      %v2575 = vadd.f32 0.0, %v2574
      %v2576 = vpop.f32.mrf.mxu0
      %2577 = vmatprep.mubr.f32.mxu0 0.0
      %2578 = vmatmul.mubr.f32.gmra.mxu0 %v2359
      %v2579 = vpop.f32.mrf.mxu0
      %v2580 = vadd.f32 0.0, %v2579
      %v2581 = vpop.f32.mrf.mxu0
      %2582 = vmatprep.mubr.f32.mxu0 0.0
      %2583 = vmatmul.mubr.f32.gmra.mxu0 %v2362
      %v2584 = vpop.f32.mrf.mxu0
      %v2585 = vadd.f32 0.0, %v2584
      %v2586 = vpop.f32.mrf.mxu0
      %2587 = vmatprep.mubr.f32.mxu0 0.0
      %2588 = vmatmul.mubr.f32.gmra.mxu0 %v2365
      %v2589 = vpop.f32.mrf.mxu0
      %v2590 = vadd.f32 0.0, %v2589
      %v2591 = vpop.f32.mrf.mxu0
      %2592 = vmatprep.mubr.f32.mxu0 0.0
      %2593 = vmatmul.mubr.f32.gmra.mxu0 %v2368
      %v2594 = vpop.f32.mrf.mxu0
      %v2595 = vadd.f32 0.0, %v2594
      %v2596 = vpop.f32.mrf.mxu0
      %2597 = vdwg.mxu0
      %v2598 = vadd.f32 %v1632, %v2440
      %v2599 = vadd.f32 %v1637, %v2445
      %v2600 = vadd.f32 %v1642, %v2450
      %v2601 = vadd.f32 %v1647, %v2455
      %v2602 = vadd.f32 %v1652, %v2460
      %v2603 = vadd.f32 %v1657, %v2465
      %v2604 = vadd.f32 %v1662, %v2470
      %v2605 = vadd.f32 %v1667, %v2475
      %v2606 = vadd.f32 %v1672, %v2480
      %v2607 = vadd.f32 %v1677, %v2485
      %v2608 = vadd.f32 %v1682, %v2490
      %v2609 = vadd.f32 %v1687, %v2495
      %v2610 = vadd.f32 %v1692, %v2500
      %v2611 = vadd.f32 %v1697, %v2505
      %v2612 = vadd.f32 %v1702, %v2510
      %v2613 = vadd.f32 %v1707, %v2515
      %v2614 = vadd.f32 %v1712, %v2520
      %v2615 = vadd.f32 %v1717, %v2525
      %v2616 = vadd.f32 %v1722, %v2530
      %v2617 = vadd.f32 %v1727, %v2535
      %v2618 = vadd.f32 %v1732, %v2540
      %v2619 = vadd.f32 %v1737, %v2545
      %v2620 = vadd.f32 %v1742, %v2550
      %v2621 = vadd.f32 %v1747, %v2555
      %v2622 = vadd.f32 %v1752, %v2560
      %v2623 = vadd.f32 %v1757, %v2565
      %v2624 = vadd.f32 %v1762, %v2570
      %v2625 = vadd.f32 %v1767, %v2575
      %v2626 = vadd.f32 %v1772, %v2580
      %v2627 = vadd.f32 %v1777, %v2585
      %v2628 = vadd.f32 %v1782, %v2590
      %v2629 = vadd.f32 %v1787, %v2595
      %v2630 = vsel %vm203, %v2598, 0.0
      %v2631 = vsel %vm203, %v2599, 0.0
      %v2632 = vadd.f32 %v2630, %v2631
      %v2633 = vsel %vm203, %v2600, 0.0
      %v2634 = vadd.f32 %v2632, %v2633
      %v2635 = vsel %vm203, %v2601, 0.0
      %v2636 = vadd.f32 %v2634, %v2635
      %v2637 = vsel %vm203, %v2602, 0.0
      %v2638 = vadd.f32 %v2636, %v2637
      %v2639 = vsel %vm203, %v2603, 0.0
      %v2640 = vadd.f32 %v2638, %v2639
      %v2641 = vsel %vm203, %v2604, 0.0
      %v2642 = vadd.f32 %v2640, %v2641
      %v2643 = vsel %vm203, %v2605, 0.0
      %v2644 = vadd.f32 %v2642, %v2643
      %v2645 = vsel %vm203, %v2606, 0.0
      %v2646 = vadd.f32 %v2644, %v2645
      %v2647 = vsel %vm203, %v2607, 0.0
      %v2648 = vadd.f32 %v2646, %v2647
      %v2649 = vsel %vm203, %v2608, 0.0
      %v2650 = vadd.f32 %v2648, %v2649
      %v2651 = vsel %vm203, %v2609, 0.0
      %v2652 = vadd.f32 %v2650, %v2651
      %v2653 = vsel %vm203, %v2610, 0.0
      %v2654 = vadd.f32 %v2652, %v2653
      %v2655 = vsel %vm203, %v2611, 0.0
      %v2656 = vadd.f32 %v2654, %v2655
      %v2657 = vsel %vm203, %v2612, 0.0
      %v2658 = vadd.f32 %v2656, %v2657
      %v2659 = vsel %vm203, %v2613, 0.0
      %v2660 = vadd.f32 %v2658, %v2659
      %v2661 = vsel %vm203, %v2614, 0.0
      %v2662 = vadd.f32 %v2660, %v2661
      %v2663 = vsel %vm203, %v2615, 0.0
      %v2664 = vadd.f32 %v2662, %v2663
      %v2665 = vsel %vm203, %v2616, 0.0
      %v2666 = vadd.f32 %v2664, %v2665
      %v2667 = vsel %vm203, %v2617, 0.0
      %v2668 = vadd.f32 %v2666, %v2667
      %v2669 = vsel %vm203, %v2618, 0.0
      %v2670 = vadd.f32 %v2668, %v2669
      %v2671 = vsel %vm203, %v2619, 0.0
      %v2672 = vadd.f32 %v2670, %v2671
      %v2673 = vsel %vm203, %v2620, 0.0
      %v2674 = vadd.f32 %v2672, %v2673
      %v2675 = vsel %vm203, %v2621, 0.0
      %v2676 = vadd.f32 %v2674, %v2675
      %v2677 = vsel %vm203, %v2622, 0.0
      %v2678 = vadd.f32 %v2676, %v2677
      %v2679 = vsel %vm203, %v2623, 0.0
      %v2680 = vadd.f32 %v2678, %v2679
      %v2681 = vsel %vm203, %v2624, 0.0
      %v2682 = vadd.f32 %v2680, %v2681
      %v2683 = vsel %vm203, %v2625, 0.0
      %v2684 = vadd.f32 %v2682, %v2683
      %v2685 = vsel %vm203, %v2626, 0.0
      %v2686 = vadd.f32 %v2684, %v2685
      %v2687 = vsel %vm203, %v2627, 0.0
      %v2688 = vadd.f32 %v2686, %v2687
      %v2689 = vsel %vm203, %v2628, 0.0
      %v2690 = vadd.f32 %v2688, %v2689
      %v2691 = vsel %vm203, %v2629, 0.0
      %v2692 = vadd.f32 %v2690, %v2691
      %v2693 = vrot.slane %v2692, 4
      %v2694 = vadd.f32 %v2692, %v2693
      %v2695 = vrot.slane %v2694, 2
      %v2696 = vadd.f32 %v2694, %v2695
      %v2697 = vrot.slane %v2696, 1
      %v2698 = vadd.f32 %v2696, %v2697
      %v2699 = vmul.f32 %v2598, %v2598
      %v2700 = vmul.f32 %v2599, %v2599
      %v2701 = vmul.f32 %v2600, %v2600
      %v2702 = vmul.f32 %v2601, %v2601
      %v2703 = vmul.f32 %v2602, %v2602
      %v2704 = vmul.f32 %v2603, %v2603
      %v2705 = vmul.f32 %v2604, %v2604
      %v2706 = vmul.f32 %v2605, %v2605
      %v2707 = vmul.f32 %v2606, %v2606
      %v2708 = vmul.f32 %v2607, %v2607
      %v2709 = vmul.f32 %v2608, %v2608
      %v2710 = vmul.f32 %v2609, %v2609
      %v2711 = vmul.f32 %v2610, %v2610
      %v2712 = vmul.f32 %v2611, %v2611
      %v2713 = vmul.f32 %v2612, %v2612
      %v2714 = vmul.f32 %v2613, %v2613
      %v2715 = vmul.f32 %v2614, %v2614
      %v2716 = vmul.f32 %v2615, %v2615
      %v2717 = vmul.f32 %v2616, %v2616
      %v2718 = vmul.f32 %v2617, %v2617
      %v2719 = vmul.f32 %v2618, %v2618
      %v2720 = vmul.f32 %v2619, %v2619
      %v2721 = vmul.f32 %v2620, %v2620
      %v2722 = vmul.f32 %v2621, %v2621
      %v2723 = vmul.f32 %v2622, %v2622
      %v2724 = vmul.f32 %v2623, %v2623
      %v2725 = vmul.f32 %v2624, %v2624
      %v2726 = vmul.f32 %v2625, %v2625
      %v2727 = vmul.f32 %v2626, %v2626
      %v2728 = vmul.f32 %v2627, %v2627
      %v2729 = vmul.f32 %v2628, %v2628
      %v2730 = vmul.f32 %v2629, %v2629
      %v2731 = vsel %vm203, %v2699, 0.0
      %v2732 = vsel %vm203, %v2700, 0.0
      %v2733 = vadd.f32 %v2731, %v2732
      %v2734 = vsel %vm203, %v2701, 0.0
      %v2735 = vadd.f32 %v2733, %v2734
      %v2736 = vsel %vm203, %v2702, 0.0
      %v2737 = vadd.f32 %v2735, %v2736
      %v2738 = vsel %vm203, %v2703, 0.0
      %v2739 = vadd.f32 %v2737, %v2738
      %v2740 = vsel %vm203, %v2704, 0.0
      %v2741 = vadd.f32 %v2739, %v2740
      %v2742 = vsel %vm203, %v2705, 0.0
      %v2743 = vadd.f32 %v2741, %v2742
      %v2744 = vsel %vm203, %v2706, 0.0
      %v2745 = vadd.f32 %v2743, %v2744
      %v2746 = vsel %vm203, %v2707, 0.0
      %v2747 = vadd.f32 %v2745, %v2746
      %v2748 = vsel %vm203, %v2708, 0.0
      %v2749 = vadd.f32 %v2747, %v2748
      %v2750 = vsel %vm203, %v2709, 0.0
      %v2751 = vadd.f32 %v2749, %v2750
      %v2752 = vsel %vm203, %v2710, 0.0
      %v2753 = vadd.f32 %v2751, %v2752
      %v2754 = vsel %vm203, %v2711, 0.0
      %v2755 = vadd.f32 %v2753, %v2754
      %v2756 = vsel %vm203, %v2712, 0.0
      %v2757 = vadd.f32 %v2755, %v2756
      %v2758 = vsel %vm203, %v2713, 0.0
      %v2759 = vadd.f32 %v2757, %v2758
      %v2760 = vsel %vm203, %v2714, 0.0
      %v2761 = vadd.f32 %v2759, %v2760
      %v2762 = vsel %vm203, %v2715, 0.0
      %v2763 = vadd.f32 %v2761, %v2762
      %v2764 = vsel %vm203, %v2716, 0.0
      %v2765 = vadd.f32 %v2763, %v2764
      %v2766 = vsel %vm203, %v2717, 0.0
      %v2767 = vadd.f32 %v2765, %v2766
      %v2768 = vsel %vm203, %v2718, 0.0
      %v2769 = vadd.f32 %v2767, %v2768
      %v2770 = vsel %vm203, %v2719, 0.0
      %v2771 = vadd.f32 %v2769, %v2770
      %v2772 = vsel %vm203, %v2720, 0.0
      %v2773 = vadd.f32 %v2771, %v2772
      %v2774 = vsel %vm203, %v2721, 0.0
      %v2775 = vadd.f32 %v2773, %v2774
      %v2776 = vsel %vm203, %v2722, 0.0
      %v2777 = vadd.f32 %v2775, %v2776
      %v2778 = vsel %vm203, %v2723, 0.0
      %v2779 = vadd.f32 %v2777, %v2778
      %v2780 = vsel %vm203, %v2724, 0.0
      %v2781 = vadd.f32 %v2779, %v2780
      %v2782 = vsel %vm203, %v2725, 0.0
      %v2783 = vadd.f32 %v2781, %v2782
      %v2784 = vsel %vm203, %v2726, 0.0
      %v2785 = vadd.f32 %v2783, %v2784
      %v2786 = vsel %vm203, %v2727, 0.0
      %v2787 = vadd.f32 %v2785, %v2786
      %v2788 = vsel %vm203, %v2728, 0.0
      %v2789 = vadd.f32 %v2787, %v2788
      %v2790 = vsel %vm203, %v2729, 0.0
      %v2791 = vadd.f32 %v2789, %v2790
      %v2792 = vsel %vm203, %v2730, 0.0
      %v2793 = vadd.f32 %v2791, %v2792
      %v2794 = vrot.slane %v2793, 4
      %v2795 = vadd.f32 %v2793, %v2794
      %v2796 = vrot.slane %v2795, 2
      %v2797 = vadd.f32 %v2795, %v2796
      %v2798 = vrot.slane %v2797, 1
      %v2799 = vadd.f32 %v2797, %v2798
      %v2800 = vmul.f32 %v2698, 0.00390625
      %v2801 = vmul.f32 %v2799, 0.00390625
      %v2802 = vmul.f32 %v2800, %v2800
      %v2803 = vsub.f32 %v2801, %v2802
      %v2804 = vmax.f32 %v2803, 0.0
      %v2805 = vsub.f32 %v2598, %v2800
      %v2806 = vsub.f32 %v2599, %v2800
      %v2807 = vsub.f32 %v2600, %v2800
      %v2808 = vsub.f32 %v2601, %v2800
      %v2809 = vsub.f32 %v2602, %v2800
      %v2810 = vsub.f32 %v2603, %v2800
      %v2811 = vsub.f32 %v2604, %v2800
      %v2812 = vsub.f32 %v2605, %v2800
      %v2813 = vsub.f32 %v2606, %v2800
      %v2814 = vsub.f32 %v2607, %v2800
      %v2815 = vsub.f32 %v2608, %v2800
      %v2816 = vsub.f32 %v2609, %v2800
      %v2817 = vsub.f32 %v2610, %v2800
      %v2818 = vsub.f32 %v2611, %v2800
      %v2819 = vsub.f32 %v2612, %v2800
      %v2820 = vsub.f32 %v2613, %v2800
      %v2821 = vsub.f32 %v2614, %v2800
      %v2822 = vsub.f32 %v2615, %v2800
      %v2823 = vsub.f32 %v2616, %v2800
      %v2824 = vsub.f32 %v2617, %v2800
      %v2825 = vsub.f32 %v2618, %v2800
      %v2826 = vsub.f32 %v2619, %v2800
      %v2827 = vsub.f32 %v2620, %v2800
      %v2828 = vsub.f32 %v2621, %v2800
      %v2829 = vsub.f32 %v2622, %v2800
      %v2830 = vsub.f32 %v2623, %v2800
      %v2831 = vsub.f32 %v2624, %v2800
      %v2832 = vsub.f32 %v2625, %v2800
      %v2833 = vsub.f32 %v2626, %v2800
      %v2834 = vsub.f32 %v2627, %v2800
      %v2835 = vsub.f32 %v2628, %v2800
      %v2836 = vsub.f32 %v2629, %v2800
      %v2837 = vadd.f32 %v2804, 1e-05
      %v2838 = vrsqrt.pop %v2837
      %v2839 = vmul.f32 %v2805, %v2838
      %v2840 = vmul.f32 %v2806, %v2838
      %v2841 = vmul.f32 %v2807, %v2838
      %v2842 = vmul.f32 %v2808, %v2838
      %v2843 = vmul.f32 %v2809, %v2838
      %v2844 = vmul.f32 %v2810, %v2838
      %v2845 = vmul.f32 %v2811, %v2838
      %v2846 = vmul.f32 %v2812, %v2838
      %v2847 = vmul.f32 %v2813, %v2838
      %v2848 = vmul.f32 %v2814, %v2838
      %v2849 = vmul.f32 %v2815, %v2838
      %v2850 = vmul.f32 %v2816, %v2838
      %v2851 = vmul.f32 %v2817, %v2838
      %v2852 = vmul.f32 %v2818, %v2838
      %v2853 = vmul.f32 %v2819, %v2838
      %v2854 = vmul.f32 %v2820, %v2838
      %v2855 = vmul.f32 %v2821, %v2838
      %v2856 = vmul.f32 %v2822, %v2838
      %v2857 = vmul.f32 %v2823, %v2838
      %v2858 = vmul.f32 %v2824, %v2838
      %v2859 = vmul.f32 %v2825, %v2838
      %v2860 = vmul.f32 %v2826, %v2838
      %v2861 = vmul.f32 %v2827, %v2838
      %v2862 = vmul.f32 %v2828, %v2838
      %v2863 = vmul.f32 %v2829, %v2838
      %v2864 = vmul.f32 %v2830, %v2838
      %v2865 = vmul.f32 %v2831, %v2838
      %v2866 = vmul.f32 %v2832, %v2838
      %v2867 = vmul.f32 %v2833, %v2838
      %v2868 = vmul.f32 %v2834, %v2838
      %v2869 = vmul.f32 %v2835, %v2838
      %v2870 = vmul.f32 %v2836, %v2838
      %v2871 = vmax.f32 %v2839, 0.0
      %v2872 = vmax.f32 %v2840, 0.0
      %v2873 = vmax.f32 %v2841, 0.0
      %v2874 = vmax.f32 %v2842, 0.0
      %v2875 = vmax.f32 %v2843, 0.0
      %v2876 = vmax.f32 %v2844, 0.0
      %v2877 = vmax.f32 %v2845, 0.0
      %v2878 = vmax.f32 %v2846, 0.0
      %v2879 = vmax.f32 %v2847, 0.0
      %v2880 = vmax.f32 %v2848, 0.0
      %v2881 = vmax.f32 %v2849, 0.0
      %v2882 = vmax.f32 %v2850, 0.0
      %v2883 = vmax.f32 %v2851, 0.0
      %v2884 = vmax.f32 %v2852, 0.0
      %v2885 = vmax.f32 %v2853, 0.0
      %v2886 = vmax.f32 %v2854, 0.0
      %v2887 = vmax.f32 %v2855, 0.0
      %v2888 = vmax.f32 %v2856, 0.0
      %v2889 = vmax.f32 %v2857, 0.0
      %v2890 = vmax.f32 %v2858, 0.0
      %v2891 = vmax.f32 %v2859, 0.0
      %v2892 = vmax.f32 %v2860, 0.0
      %v2893 = vmax.f32 %v2861, 0.0
      %v2894 = vmax.f32 %v2862, 0.0
      %v2895 = vmax.f32 %v2863, 0.0
      %v2896 = vmax.f32 %v2864, 0.0
      %v2897 = vmax.f32 %v2865, 0.0
      %v2898 = vmax.f32 %v2866, 0.0
      %v2899 = vmax.f32 %v2867, 0.0
      %v2900 = vmax.f32 %v2868, 0.0
      %v2901 = vmax.f32 %v2869, 0.0
      %v2902 = vmax.f32 %v2870, 0.0
      %s2903 = scalar_lea.vmem [#allocation3], 24
      %2904 = vst.msk [vmem:[%s2903 + $0x1] sm:$0xff] %vm203, %v2871
      %2905 = vst.msk [vmem:[%s2903 + $0x9] sm:$0xff] %vm203, %v2872
      %2906 = vst.msk [vmem:[%s2903 + $0x19] sm:$0xff] %vm203, %v2873
      %2907 = vst.msk [vmem:[%s2903 + $0x21] sm:$0xff] %vm203, %v2874
      %2908 = vst.msk [vmem:[%s2903 + $0x31] sm:$0xff] %vm203, %v2875
      %2909 = vst.msk [vmem:[%s2903 + $0x39] sm:$0xff] %vm203, %v2876
      %2910 = vst.msk [vmem:[%s2903 + $0x49] sm:$0xff] %vm203, %v2877
      %2911 = vst.msk [vmem:[%s2903 + $0x51] sm:$0xff] %vm203, %v2878
      %2912 = vst.msk [vmem:[%s2903 + $0x61] sm:$0xff] %vm203, %v2879
      %2913 = vst.msk [vmem:[%s2903 + $0x69] sm:$0xff] %vm203, %v2880
      %2914 = vst.msk [vmem:[%s2903 + $0x79] sm:$0xff] %vm203, %v2881
      %2915 = vst.msk [vmem:[%s2903 + $0x81] sm:$0xff] %vm203, %v2882
      %2916 = vst.msk [vmem:[%s2903 + $0x91] sm:$0xff] %vm203, %v2883
      %2917 = vst.msk [vmem:[%s2903 + $0x99] sm:$0xff] %vm203, %v2884
      %2918 = vst.msk [vmem:[%s2903 + $0xa9] sm:$0xff] %vm203, %v2885
      %2919 = vst.msk [vmem:[%s2903 + $0xb1] sm:$0xff] %vm203, %v2886
      %2920 = vst.msk [vmem:[%s2903 + $0xc1] sm:$0xff] %vm203, %v2887
      %2921 = vst.msk [vmem:[%s2903 + $0xc9] sm:$0xff] %vm203, %v2888
      %2922 = vst.msk [vmem:[%s2903 + $0xd9] sm:$0xff] %vm203, %v2889
      %2923 = vst.msk [vmem:[%s2903 + $0xe1] sm:$0xff] %vm203, %v2890
      %2924 = vst.msk [vmem:[%s2903 + $0xf1] sm:$0xff] %vm203, %v2891
      %2925 = vst.msk [vmem:[%s2903 + $0xf9] sm:$0xff] %vm203, %v2892
      %2926 = vst.msk [vmem:[%s2903 + $0x109] sm:$0xff] %vm203, %v2893
      %2927 = vst.msk [vmem:[%s2903 + $0x111] sm:$0xff] %vm203, %v2894
      %2928 = vst.msk [vmem:[%s2903 + $0x121] sm:$0xff] %vm203, %v2895
      %2929 = vst.msk [vmem:[%s2903 + $0x129] sm:$0xff] %vm203, %v2896
      %2930 = vst.msk [vmem:[%s2903 + $0x139] sm:$0xff] %vm203, %v2897
      %2931 = vst.msk [vmem:[%s2903 + $0x141] sm:$0xff] %vm203, %v2898
      %2932 = vst.msk [vmem:[%s2903 + $0x151] sm:$0xff] %vm203, %v2899
      %2933 = vst.msk [vmem:[%s2903 + $0x159] sm:$0xff] %vm203, %v2900
      %2934 = vst.msk [vmem:[%s2903 + $0x169] sm:$0xff] %vm203, %v2901
      %2935 = vst.msk [vmem:[%s2903 + $0x171] sm:$0xff] %vm203, %v2902
      %s2936 = scalar_lea.vmem [#allocation3], 48
      %v2937 = vld [vmem:[%s2936 + $0x1] sm:$0xff]
      %v2938 = vld [vmem:[%s2936 + $0x9] sm:$0xff]
      %2939 = vst.msk [vmem:[#allocation3 + $0x1] sm:$0xff] %vm203, %v2937
      %2940 = vst.msk [vmem:[#allocation3 + $0x9] sm:$0xff] %vm203, %v2938
      %s2941 = scalar_lea.vmem [#allocation3], 360
      %v2942 = vld [vmem:[%s2941 + $0x1] sm:$0xff]
      %v2943 = vld [vmem:[%s2941 + $0x9] sm:$0xff]
      %s2944 = scalar_lea.vmem [#allocation3], 408
      %2945 = vst.msk [vmem:[%s2944 + $0x1] sm:$0xff] %vm203, %v2942
      %2946 = vst.msk [vmem:[%s2944 + $0x9] sm:$0xff] %vm203, %v2943
      %v2947 = vld [vmem:[#allocation3 + $0x2] sm:$0x1]
      %v2948 = vld [vmem:[#allocation3 + $0x1a] sm:$0x1]
      %v2949 = vld [vmem:[#allocation3 + $0x32] sm:$0x1]
      %v2950 = vld [vmem:[#allocation3 + $0x4a] sm:$0x1]
      %v2951 = vld [vmem:[#allocation3 + $0x62] sm:$0x1]
      %v2952 = vld [vmem:[#allocation3 + $0x7a] sm:$0x1]
      %v2953 = vld [vmem:[#allocation3 + $0x92] sm:$0x1]
      %v2954 = vld [vmem:[#allocation3 + $0xaa] sm:$0x1]
      %v2955 = vld [vmem:[#allocation3 + $0xc2] sm:$0x1]
      %v2956 = vld [vmem:[#allocation3 + $0xda] sm:$0x1]
      %v2957 = vld [vmem:[#allocation3 + $0xf2] sm:$0x1]
      %v2958 = vld [vmem:[#allocation3 + $0x10a] sm:$0x1]
      %v2959 = vld [vmem:[#allocation3 + $0x122] sm:$0x1]
      %v2960 = vld [vmem:[#allocation3 + $0x13a] sm:$0x1]
      %v2961 = vld [vmem:[#allocation3 + $0x152] sm:$0x1]
      %v2962 = vld [vmem:[#allocation3 + $0x16a] sm:$0x1]
      %v2963 = vld [vmem:[#allocation3 + $0x182] sm:$0x1]
      %v2964 = vld [vmem:[#allocation3 + $0x19a] sm:$0x1]
      %vm2965 = vcmask 24576
      %2966 = vst.msk [vmem:[#allocation3] sm:$0x1] %vm2965, %v2947
      %2967 = vst.msk [vmem:[#allocation3 + $0x18] sm:$0x1] %vm2965, %v2948
      %2968 = vst.msk [vmem:[#allocation3 + $0x30] sm:$0x1] %vm2965, %v2949
      %2969 = vst.msk [vmem:[#allocation3 + $0x48] sm:$0x1] %vm2965, %v2950
      %2970 = vst.msk [vmem:[#allocation3 + $0x60] sm:$0x1] %vm2965, %v2951
      %2971 = vst.msk [vmem:[#allocation3 + $0x78] sm:$0x1] %vm2965, %v2952
      %2972 = vst.msk [vmem:[#allocation3 + $0x90] sm:$0x1] %vm2965, %v2953
      %2973 = vst.msk [vmem:[#allocation3 + $0xa8] sm:$0x1] %vm2965, %v2954
      %2974 = vst.msk [vmem:[#allocation3 + $0xc0] sm:$0x1] %vm2965, %v2955
      %2975 = vst.msk [vmem:[#allocation3 + $0xd8] sm:$0x1] %vm2965, %v2956
      %2976 = vst.msk [vmem:[#allocation3 + $0xf0] sm:$0x1] %vm2965, %v2957
      %2977 = vst.msk [vmem:[#allocation3 + $0x108] sm:$0x1] %vm2965, %v2958
      %2978 = vst.msk [vmem:[#allocation3 + $0x120] sm:$0x1] %vm2965, %v2959
      %2979 = vst.msk [vmem:[#allocation3 + $0x138] sm:$0x1] %vm2965, %v2960
      %2980 = vst.msk [vmem:[#allocation3 + $0x150] sm:$0x1] %vm2965, %v2961
      %2981 = vst.msk [vmem:[#allocation3 + $0x168] sm:$0x1] %vm2965, %v2962
      %2982 = vst.msk [vmem:[#allocation3 + $0x180] sm:$0x1] %vm2965, %v2963
      %2983 = vst.msk [vmem:[#allocation3 + $0x198] sm:$0x1] %vm2965, %v2964
      %v2984 = vld [vmem:[#allocation3 + $0xf] sm:$0x1]
      %v2985 = vld [vmem:[#allocation3 + $0x27] sm:$0x1]
      %v2986 = vld [vmem:[#allocation3 + $0x3f] sm:$0x1]
      %v2987 = vld [vmem:[#allocation3 + $0x57] sm:$0x1]
      %v2988 = vld [vmem:[#allocation3 + $0x6f] sm:$0x1]
      %v2989 = vld [vmem:[#allocation3 + $0x87] sm:$0x1]
      %v2990 = vld [vmem:[#allocation3 + $0x9f] sm:$0x1]
      %v2991 = vld [vmem:[#allocation3 + $0xb7] sm:$0x1]
      %v2992 = vld [vmem:[#allocation3 + $0xcf] sm:$0x1]
      %v2993 = vld [vmem:[#allocation3 + $0xe7] sm:$0x1]
      %v2994 = vld [vmem:[#allocation3 + $0xff] sm:$0x1]
      %v2995 = vld [vmem:[#allocation3 + $0x117] sm:$0x1]
      %v2996 = vld [vmem:[#allocation3 + $0x12f] sm:$0x1]
      %v2997 = vld [vmem:[#allocation3 + $0x147] sm:$0x1]
      %v2998 = vld [vmem:[#allocation3 + $0x15f] sm:$0x1]
      %v2999 = vld [vmem:[#allocation3 + $0x177] sm:$0x1]
      %v3000 = vld [vmem:[#allocation3 + $0x18f] sm:$0x1]
      %v3001 = vld [vmem:[#allocation3 + $0x1a7] sm:$0x1]
      %3002 = vst.msk [vmem:[#allocation3 + $0x11] sm:$0x1] %vm2965, %v2984
      %3003 = vst.msk [vmem:[#allocation3 + $0x29] sm:$0x1] %vm2965, %v2985
      %3004 = vst.msk [vmem:[#allocation3 + $0x41] sm:$0x1] %vm2965, %v2986
      %3005 = vst.msk [vmem:[#allocation3 + $0x59] sm:$0x1] %vm2965, %v2987
      %3006 = vst.msk [vmem:[#allocation3 + $0x71] sm:$0x1] %vm2965, %v2988
      %3007 = vst.msk [vmem:[#allocation3 + $0x89] sm:$0x1] %vm2965, %v2989
      %3008 = vst.msk [vmem:[#allocation3 + $0xa1] sm:$0x1] %vm2965, %v2990
      %3009 = vst.msk [vmem:[#allocation3 + $0xb9] sm:$0x1] %vm2965, %v2991
      %3010 = vst.msk [vmem:[#allocation3 + $0xd1] sm:$0x1] %vm2965, %v2992
      %3011 = vst.msk [vmem:[#allocation3 + $0xe9] sm:$0x1] %vm2965, %v2993
      %3012 = vst.msk [vmem:[#allocation3 + $0x101] sm:$0x1] %vm2965, %v2994
      %3013 = vst.msk [vmem:[#allocation3 + $0x119] sm:$0x1] %vm2965, %v2995
      %3014 = vst.msk [vmem:[#allocation3 + $0x131] sm:$0x1] %vm2965, %v2996
      %3015 = vst.msk [vmem:[#allocation3 + $0x149] sm:$0x1] %vm2965, %v2997
      %3016 = vst.msk [vmem:[#allocation3 + $0x161] sm:$0x1] %vm2965, %v2998
      %3017 = vst.msk [vmem:[#allocation3 + $0x179] sm:$0x1] %vm2965, %v2999
      %3018 = vst.msk [vmem:[#allocation3 + $0x191] sm:$0x1] %vm2965, %v3000
      %3019 = vst.msk [vmem:[#allocation3 + $0x1a9] sm:$0x1] %vm2965, %v3001
      %v3020 = vld [vmem:[#allocation3] sm:$0xff]
      %v3021 = vld [vmem:[#allocation3 + $0x8] sm:$0xff]
      %v3022 = vld [vmem:[#allocation3 + $0x18] sm:$0xff]
      %v3023 = vld [vmem:[#allocation3 + $0x20] sm:$0xff]
      %v3024 = vld [vmem:[#allocation3 + $0x30] sm:$0xff]
      %v3025 = vld [vmem:[#allocation3 + $0x38] sm:$0xff]
      %v3026 = vld [vmem:[#allocation3 + $0x48] sm:$0xff]
      %v3027 = vld [vmem:[#allocation3 + $0x50] sm:$0xff]
      %v3028 = vld [vmem:[#allocation3 + $0x60] sm:$0xff]
      %v3029 = vld [vmem:[#allocation3 + $0x68] sm:$0xff]
      %v3030 = vld [vmem:[#allocation3 + $0x78] sm:$0xff]
      %v3031 = vld [vmem:[#allocation3 + $0x80] sm:$0xff]
      %v3032 = vld [vmem:[#allocation3 + $0x90] sm:$0xff]
      %v3033 = vld [vmem:[#allocation3 + $0x98] sm:$0xff]
      %v3034 = vld [vmem:[#allocation3 + $0xa8] sm:$0xff]
      %v3035 = vld [vmem:[#allocation3 + $0xb0] sm:$0xff]
      %v3036 = vld [vmem:[#allocation3 + $0xc0] sm:$0xff]
      %v3037 = vld [vmem:[#allocation3 + $0xc8] sm:$0xff]
      %v3038 = vld [vmem:[#allocation3 + $0xd8] sm:$0xff]
      %v3039 = vld [vmem:[#allocation3 + $0xe0] sm:$0xff]
      %v3040 = vld [vmem:[#allocation3 + $0xf0] sm:$0xff]
      %v3041 = vld [vmem:[#allocation3 + $0xf8] sm:$0xff]
      %v3042 = vld [vmem:[#allocation3 + $0x108] sm:$0xff]
      %v3043 = vld [vmem:[#allocation3 + $0x110] sm:$0xff]
      %v3044 = vld [vmem:[#allocation3 + $0x120] sm:$0xff]
      %v3045 = vld [vmem:[#allocation3 + $0x128] sm:$0xff]
      %v3046 = vld [vmem:[#allocation3 + $0x138] sm:$0xff]
      %v3047 = vld [vmem:[#allocation3 + $0x140] sm:$0xff]
      %v3048 = vld [vmem:[#allocation3 + $0x150] sm:$0xff]
      %v3049 = vld [vmem:[#allocation3 + $0x158] sm:$0xff]
      %v3050 = vld [vmem:[#allocation3 + $0x168] sm:$0xff]
      %v3051 = vld [vmem:[#allocation3 + $0x170] sm:$0xff]
      %3052 = vst.msk [vmem:[#allocation2] sm:$0xff] %vm203, %v3020
      %3053 = vst.msk [vmem:[#allocation2 + $0x8] sm:$0xff] %vm203, %v3021
      %3054 = vst.msk [vmem:[#allocation2 + $0x10] sm:$0xff] %vm203, %v3022
      %3055 = vst.msk [vmem:[#allocation2 + $0x18] sm:$0xff] %vm203, %v3023
      %3056 = vst.msk [vmem:[#allocation2 + $0x20] sm:$0xff] %vm203, %v3024
      %3057 = vst.msk [vmem:[#allocation2 + $0x28] sm:$0xff] %vm203, %v3025
      %3058 = vst.msk [vmem:[#allocation2 + $0x30] sm:$0xff] %vm203, %v3026
      %3059 = vst.msk [vmem:[#allocation2 + $0x38] sm:$0xff] %vm203, %v3027
      %3060 = vst.msk [vmem:[#allocation2 + $0x40] sm:$0xff] %vm203, %v3028
      %3061 = vst.msk [vmem:[#allocation2 + $0x48] sm:$0xff] %vm203, %v3029
      %3062 = vst.msk [vmem:[#allocation2 + $0x50] sm:$0xff] %vm203, %v3030
      %3063 = vst.msk [vmem:[#allocation2 + $0x58] sm:$0xff] %vm203, %v3031
      %3064 = vst.msk [vmem:[#allocation2 + $0x60] sm:$0xff] %vm203, %v3032
      %3065 = vst.msk [vmem:[#allocation2 + $0x68] sm:$0xff] %vm203, %v3033
      %3066 = vst.msk [vmem:[#allocation2 + $0x70] sm:$0xff] %vm203, %v3034
      %3067 = vst.msk [vmem:[#allocation2 + $0x78] sm:$0xff] %vm203, %v3035
      %3068 = vst.msk [vmem:[#allocation2 + $0x80] sm:$0xff] %vm203, %v3036
      %3069 = vst.msk [vmem:[#allocation2 + $0x88] sm:$0xff] %vm203, %v3037
      %3070 = vst.msk [vmem:[#allocation2 + $0x90] sm:$0xff] %vm203, %v3038
      %3071 = vst.msk [vmem:[#allocation2 + $0x98] sm:$0xff] %vm203, %v3039
      %3072 = vst.msk [vmem:[#allocation2 + $0xa0] sm:$0xff] %vm203, %v3040
      %3073 = vst.msk [vmem:[#allocation2 + $0xa8] sm:$0xff] %vm203, %v3041
      %3074 = vst.msk [vmem:[#allocation2 + $0xb0] sm:$0xff] %vm203, %v3042
      %3075 = vst.msk [vmem:[#allocation2 + $0xb8] sm:$0xff] %vm203, %v3043
      %3076 = vst.msk [vmem:[#allocation2 + $0xc0] sm:$0xff] %vm203, %v3044
      %3077 = vst.msk [vmem:[#allocation2 + $0xc8] sm:$0xff] %vm203, %v3045
      %3078 = vst.msk [vmem:[#allocation2 + $0xd0] sm:$0xff] %vm203, %v3046
      %3079 = vst.msk [vmem:[#allocation2 + $0xd8] sm:$0xff] %vm203, %v3047
      %3080 = vst.msk [vmem:[#allocation2 + $0xe0] sm:$0xff] %vm203, %v3048
      %3081 = vst.msk [vmem:[#allocation2 + $0xe8] sm:$0xff] %vm203, %v3049
      %3082 = vst.msk [vmem:[#allocation2 + $0xf0] sm:$0xff] %vm203, %v3050
      %3083 = vst.msk [vmem:[#allocation2 + $0xf8] sm:$0xff] %vm203, %v3051
      %v3084 = vld [vmem:[#allocation3 + $0x1] sm:$0xff]
      %v3085 = vld [vmem:[#allocation3 + $0x9] sm:$0xff]
      %v3086 = vld [vmem:[#allocation3 + $0x19] sm:$0xff]
      %v3087 = vld [vmem:[#allocation3 + $0x21] sm:$0xff]
      %v3088 = vld [vmem:[#allocation3 + $0x31] sm:$0xff]
      %v3089 = vld [vmem:[#allocation3 + $0x39] sm:$0xff]
      %v3090 = vld [vmem:[#allocation3 + $0x49] sm:$0xff]
      %v3091 = vld [vmem:[#allocation3 + $0x51] sm:$0xff]
      %v3092 = vld [vmem:[#allocation3 + $0x61] sm:$0xff]
      %v3093 = vld [vmem:[#allocation3 + $0x69] sm:$0xff]
      %v3094 = vld [vmem:[#allocation3 + $0x79] sm:$0xff]
      %v3095 = vld [vmem:[#allocation3 + $0x81] sm:$0xff]
      %v3096 = vld [vmem:[#allocation3 + $0x91] sm:$0xff]
      %v3097 = vld [vmem:[#allocation3 + $0x99] sm:$0xff]
      %v3098 = vld [vmem:[#allocation3 + $0xa9] sm:$0xff]
      %v3099 = vld [vmem:[#allocation3 + $0xb1] sm:$0xff]
      %v3100 = vld [vmem:[#allocation3 + $0xc1] sm:$0xff]
      %v3101 = vld [vmem:[#allocation3 + $0xc9] sm:$0xff]
      %v3102 = vld [vmem:[#allocation3 + $0xd9] sm:$0xff]
      %v3103 = vld [vmem:[#allocation3 + $0xe1] sm:$0xff]
      %v3104 = vld [vmem:[#allocation3 + $0xf1] sm:$0xff]
      %v3105 = vld [vmem:[#allocation3 + $0xf9] sm:$0xff]
      %v3106 = vld [vmem:[#allocation3 + $0x109] sm:$0xff]
      %v3107 = vld [vmem:[#allocation3 + $0x111] sm:$0xff]
      %v3108 = vld [vmem:[#allocation3 + $0x121] sm:$0xff]
      %v3109 = vld [vmem:[#allocation3 + $0x129] sm:$0xff]
      %v3110 = vld [vmem:[#allocation3 + $0x139] sm:$0xff]
      %v3111 = vld [vmem:[#allocation3 + $0x141] sm:$0xff]
      %v3112 = vld [vmem:[#allocation3 + $0x151] sm:$0xff]
      %v3113 = vld [vmem:[#allocation3 + $0x159] sm:$0xff]
      %v3114 = vld [vmem:[#allocation3 + $0x169] sm:$0xff]
      %v3115 = vld [vmem:[#allocation3 + $0x171] sm:$0xff]
      %3148 = vrot.lane.b32.xlu0 %v3084, 4
      %v3149 = vpop.permute.xlu0 %3148
      %3150 = vrot.lane.b32.xlu0 %v3085, 4
      %v3151 = vpop.permute.xlu0 %3150
      %3152 = vrot.lane.b32.xlu0 %v3086, 4
      %v3153 = vpop.permute.xlu0 %3152
      %3154 = vrot.lane.b32.xlu0 %v3087, 4
      %v3155 = vpop.permute.xlu0 %3154
      %3156 = vrot.lane.b32.xlu0 %v3088, 4
      %v3157 = vpop.permute.xlu0 %3156
      %3158 = vrot.lane.b32.xlu0 %v3089, 4
      %v3159 = vpop.permute.xlu0 %3158
      %3160 = vrot.lane.b32.xlu0 %v3090, 4
      %v3161 = vpop.permute.xlu0 %3160
      %3162 = vrot.lane.b32.xlu0 %v3091, 4
      %v3163 = vpop.permute.xlu0 %3162
      %3164 = vrot.lane.b32.xlu0 %v3092, 4
      %v3165 = vpop.permute.xlu0 %3164
      %3166 = vrot.lane.b32.xlu0 %v3093, 4
      %v3167 = vpop.permute.xlu0 %3166
      %3168 = vrot.lane.b32.xlu0 %v3094, 4
      %v3169 = vpop.permute.xlu0 %3168
      %3170 = vrot.lane.b32.xlu0 %v3095, 4
      %v3171 = vpop.permute.xlu0 %3170
      %3172 = vrot.lane.b32.xlu0 %v3096, 4
      %v3173 = vpop.permute.xlu0 %3172
      %3174 = vrot.lane.b32.xlu0 %v3097, 4
      %v3175 = vpop.permute.xlu0 %3174
      %3176 = vrot.lane.b32.xlu0 %v3098, 4
      %v3177 = vpop.permute.xlu0 %3176
      %3178 = vrot.lane.b32.xlu0 %v3099, 4
      %v3179 = vpop.permute.xlu0 %3178
      %3180 = vrot.lane.b32.xlu0 %v3100, 4
      %v3181 = vpop.permute.xlu0 %3180
      %3182 = vrot.lane.b32.xlu0 %v3101, 4
      %v3183 = vpop.permute.xlu0 %3182
      %3184 = vrot.lane.b32.xlu0 %v3102, 4
      %v3185 = vpop.permute.xlu0 %3184
      %3186 = vrot.lane.b32.xlu0 %v3103, 4
      %v3187 = vpop.permute.xlu0 %3186
      %3188 = vrot.lane.b32.xlu0 %v3104, 4
      %v3189 = vpop.permute.xlu0 %3188
      %3190 = vrot.lane.b32.xlu0 %v3105, 4
      %v3191 = vpop.permute.xlu0 %3190
      %3192 = vrot.lane.b32.xlu0 %v3106, 4
      %v3193 = vpop.permute.xlu0 %3192
      %3194 = vrot.lane.b32.xlu0 %v3107, 4
      %v3195 = vpop.permute.xlu0 %3194
      %3196 = vrot.lane.b32.xlu0 %v3108, 4
      %v3197 = vpop.permute.xlu0 %3196
      %3198 = vrot.lane.b32.xlu0 %v3109, 4
      %v3199 = vpop.permute.xlu0 %3198
      %3200 = vrot.lane.b32.xlu0 %v3110, 4
      %v3201 = vpop.permute.xlu0 %3200
      %3202 = vrot.lane.b32.xlu0 %v3111, 4
      %v3203 = vpop.permute.xlu0 %3202
      %3204 = vrot.lane.b32.xlu0 %v3112, 4
      %v3205 = vpop.permute.xlu0 %3204
      %3206 = vrot.lane.b32.xlu0 %v3113, 4
      %v3207 = vpop.permute.xlu0 %3206
      %3208 = vrot.lane.b32.xlu0 %v3114, 4
      %v3209 = vpop.permute.xlu0 %3208
      %3210 = vrot.lane.b32.xlu0 %v3115, 4
      %v3211 = vpop.permute.xlu0 %3210
      %3244 = vst.msk [vmem:[#allocation2] sm:$0xff] %vm396, %v3149
      %3245 = vst.msk [vmem:[#allocation2 + $0x8] sm:$0xff] %vm396, %v3151
      %3246 = vst.msk [vmem:[#allocation2 + $0x10] sm:$0xff] %vm396, %v3153
      %3247 = vst.msk [vmem:[#allocation2 + $0x18] sm:$0xff] %vm396, %v3155
      %3248 = vst.msk [vmem:[#allocation2 + $0x20] sm:$0xff] %vm396, %v3157
      %3249 = vst.msk [vmem:[#allocation2 + $0x28] sm:$0xff] %vm396, %v3159
      %3250 = vst.msk [vmem:[#allocation2 + $0x30] sm:$0xff] %vm396, %v3161
      %3251 = vst.msk [vmem:[#allocation2 + $0x38] sm:$0xff] %vm396, %v3163
      %3252 = vst.msk [vmem:[#allocation2 + $0x40] sm:$0xff] %vm396, %v3165
      %3253 = vst.msk [vmem:[#allocation2 + $0x48] sm:$0xff] %vm396, %v3167
      %3254 = vst.msk [vmem:[#allocation2 + $0x50] sm:$0xff] %vm396, %v3169
      %3255 = vst.msk [vmem:[#allocation2 + $0x58] sm:$0xff] %vm396, %v3171
      %3256 = vst.msk [vmem:[#allocation2 + $0x60] sm:$0xff] %vm396, %v3173
      %3257 = vst.msk [vmem:[#allocation2 + $0x68] sm:$0xff] %vm396, %v3175
      %3258 = vst.msk [vmem:[#allocation2 + $0x70] sm:$0xff] %vm396, %v3177
      %3259 = vst.msk [vmem:[#allocation2 + $0x78] sm:$0xff] %vm396, %v3179
      %3260 = vst.msk [vmem:[#allocation2 + $0x80] sm:$0xff] %vm396, %v3181
      %3261 = vst.msk [vmem:[#allocation2 + $0x88] sm:$0xff] %vm396, %v3183
      %3262 = vst.msk [vmem:[#allocation2 + $0x90] sm:$0xff] %vm396, %v3185
      %3263 = vst.msk [vmem:[#allocation2 + $0x98] sm:$0xff] %vm396, %v3187
      %3264 = vst.msk [vmem:[#allocation2 + $0xa0] sm:$0xff] %vm396, %v3189
      %3265 = vst.msk [vmem:[#allocation2 + $0xa8] sm:$0xff] %vm396, %v3191
      %3266 = vst.msk [vmem:[#allocation2 + $0xb0] sm:$0xff] %vm396, %v3193
      %3267 = vst.msk [vmem:[#allocation2 + $0xb8] sm:$0xff] %vm396, %v3195
      %3268 = vst.msk [vmem:[#allocation2 + $0xc0] sm:$0xff] %vm396, %v3197
      %3269 = vst.msk [vmem:[#allocation2 + $0xc8] sm:$0xff] %vm396, %v3199
      %3270 = vst.msk [vmem:[#allocation2 + $0xd0] sm:$0xff] %vm396, %v3201
      %3271 = vst.msk [vmem:[#allocation2 + $0xd8] sm:$0xff] %vm396, %v3203
      %3272 = vst.msk [vmem:[#allocation2 + $0xe0] sm:$0xff] %vm396, %v3205
      %3273 = vst.msk [vmem:[#allocation2 + $0xe8] sm:$0xff] %vm396, %v3207
      %3274 = vst.msk [vmem:[#allocation2 + $0xf0] sm:$0xff] %vm396, %v3209
      %3275 = vst.msk [vmem:[#allocation2 + $0xf8] sm:$0xff] %vm396, %v3211
      %v3276 = vld [vmem:[#allocation3 + $0x2] sm:$0xff]
      %v3277 = vld [vmem:[#allocation3 + $0xa] sm:$0xff]
      %v3278 = vld [vmem:[#allocation3 + $0x1a] sm:$0xff]
      %v3279 = vld [vmem:[#allocation3 + $0x22] sm:$0xff]
      %v3280 = vld [vmem:[#allocation3 + $0x32] sm:$0xff]
      %v3281 = vld [vmem:[#allocation3 + $0x3a] sm:$0xff]
      %v3282 = vld [vmem:[#allocation3 + $0x4a] sm:$0xff]
      %v3283 = vld [vmem:[#allocation3 + $0x52] sm:$0xff]
      %v3284 = vld [vmem:[#allocation3 + $0x62] sm:$0xff]
      %v3285 = vld [vmem:[#allocation3 + $0x6a] sm:$0xff]
      %v3286 = vld [vmem:[#allocation3 + $0x7a] sm:$0xff]
      %v3287 = vld [vmem:[#allocation3 + $0x82] sm:$0xff]
      %v3288 = vld [vmem:[#allocation3 + $0x92] sm:$0xff]
      %v3289 = vld [vmem:[#allocation3 + $0x9a] sm:$0xff]
      %v3290 = vld [vmem:[#allocation3 + $0xaa] sm:$0xff]
      %v3291 = vld [vmem:[#allocation3 + $0xb2] sm:$0xff]
      %v3292 = vld [vmem:[#allocation3 + $0xc2] sm:$0xff]
      %v3293 = vld [vmem:[#allocation3 + $0xca] sm:$0xff]
      %v3294 = vld [vmem:[#allocation3 + $0xda] sm:$0xff]
      %v3295 = vld [vmem:[#allocation3 + $0xe2] sm:$0xff]
      %v3296 = vld [vmem:[#allocation3 + $0xf2] sm:$0xff]
      %v3297 = vld [vmem:[#allocation3 + $0xfa] sm:$0xff]
      %v3298 = vld [vmem:[#allocation3 + $0x10a] sm:$0xff]
      %v3299 = vld [vmem:[#allocation3 + $0x112] sm:$0xff]
      %v3300 = vld [vmem:[#allocation3 + $0x122] sm:$0xff]
      %v3301 = vld [vmem:[#allocation3 + $0x12a] sm:$0xff]
      %v3302 = vld [vmem:[#allocation3 + $0x13a] sm:$0xff]
      %v3303 = vld [vmem:[#allocation3 + $0x142] sm:$0xff]
      %v3304 = vld [vmem:[#allocation3 + $0x152] sm:$0xff]
      %v3305 = vld [vmem:[#allocation3 + $0x15a] sm:$0xff]
      %v3306 = vld [vmem:[#allocation3 + $0x16a] sm:$0xff]
      %v3307 = vld [vmem:[#allocation3 + $0x172] sm:$0xff]
      %3340 = vrot.lane.b32.xlu0 %v3276, 8
      %v3341 = vpop.permute.xlu0 %3340
      %3342 = vrot.lane.b32.xlu0 %v3277, 8
      %v3343 = vpop.permute.xlu0 %3342
      %3344 = vrot.lane.b32.xlu0 %v3278, 8
      %v3345 = vpop.permute.xlu0 %3344
      %3346 = vrot.lane.b32.xlu0 %v3279, 8
      %v3347 = vpop.permute.xlu0 %3346
      %3348 = vrot.lane.b32.xlu0 %v3280, 8
      %v3349 = vpop.permute.xlu0 %3348
      %3350 = vrot.lane.b32.xlu0 %v3281, 8
      %v3351 = vpop.permute.xlu0 %3350
      %3352 = vrot.lane.b32.xlu0 %v3282, 8
      %v3353 = vpop.permute.xlu0 %3352
      %3354 = vrot.lane.b32.xlu0 %v3283, 8
      %v3355 = vpop.permute.xlu0 %3354
      %3356 = vrot.lane.b32.xlu0 %v3284, 8
      %v3357 = vpop.permute.xlu0 %3356
      %3358 = vrot.lane.b32.xlu0 %v3285, 8
      %v3359 = vpop.permute.xlu0 %3358
      %3360 = vrot.lane.b32.xlu0 %v3286, 8
      %v3361 = vpop.permute.xlu0 %3360
      %3362 = vrot.lane.b32.xlu0 %v3287, 8
      %v3363 = vpop.permute.xlu0 %3362
      %3364 = vrot.lane.b32.xlu0 %v3288, 8
      %v3365 = vpop.permute.xlu0 %3364
      %3366 = vrot.lane.b32.xlu0 %v3289, 8
      %v3367 = vpop.permute.xlu0 %3366
      %3368 = vrot.lane.b32.xlu0 %v3290, 8
      %v3369 = vpop.permute.xlu0 %3368
      %3370 = vrot.lane.b32.xlu0 %v3291, 8
      %v3371 = vpop.permute.xlu0 %3370
      %3372 = vrot.lane.b32.xlu0 %v3292, 8
      %v3373 = vpop.permute.xlu0 %3372
      %3374 = vrot.lane.b32.xlu0 %v3293, 8
      %v3375 = vpop.permute.xlu0 %3374
      %3376 = vrot.lane.b32.xlu0 %v3294, 8
      %v3377 = vpop.permute.xlu0 %3376
      %3378 = vrot.lane.b32.xlu0 %v3295, 8
      %v3379 = vpop.permute.xlu0 %3378
      %3380 = vrot.lane.b32.xlu0 %v3296, 8
      %v3381 = vpop.permute.xlu0 %3380
      %3382 = vrot.lane.b32.xlu0 %v3297, 8
      %v3383 = vpop.permute.xlu0 %3382
      %3384 = vrot.lane.b32.xlu0 %v3298, 8
      %v3385 = vpop.permute.xlu0 %3384
      %3386 = vrot.lane.b32.xlu0 %v3299, 8
      %v3387 = vpop.permute.xlu0 %3386
      %3388 = vrot.lane.b32.xlu0 %v3300, 8
      %v3389 = vpop.permute.xlu0 %3388
      %3390 = vrot.lane.b32.xlu0 %v3301, 8
      %v3391 = vpop.permute.xlu0 %3390
      %3392 = vrot.lane.b32.xlu0 %v3302, 8
      %v3393 = vpop.permute.xlu0 %3392
      %3394 = vrot.lane.b32.xlu0 %v3303, 8
      %v3395 = vpop.permute.xlu0 %3394
      %3396 = vrot.lane.b32.xlu0 %v3304, 8
      %v3397 = vpop.permute.xlu0 %3396
      %3398 = vrot.lane.b32.xlu0 %v3305, 8
      %v3399 = vpop.permute.xlu0 %3398
      %3400 = vrot.lane.b32.xlu0 %v3306, 8
      %v3401 = vpop.permute.xlu0 %3400
      %3402 = vrot.lane.b32.xlu0 %v3307, 8
      %v3403 = vpop.permute.xlu0 %3402
      %3436 = vst.msk [vmem:[#allocation2] sm:$0xff] %vm589, %v3341
      %3437 = vst.msk [vmem:[#allocation2 + $0x8] sm:$0xff] %vm589, %v3343
      %3438 = vst.msk [vmem:[#allocation2 + $0x10] sm:$0xff] %vm589, %v3345
      %3439 = vst.msk [vmem:[#allocation2 + $0x18] sm:$0xff] %vm589, %v3347
      %3440 = vst.msk [vmem:[#allocation2 + $0x20] sm:$0xff] %vm589, %v3349
      %3441 = vst.msk [vmem:[#allocation2 + $0x28] sm:$0xff] %vm589, %v3351
      %3442 = vst.msk [vmem:[#allocation2 + $0x30] sm:$0xff] %vm589, %v3353
      %3443 = vst.msk [vmem:[#allocation2 + $0x38] sm:$0xff] %vm589, %v3355
      %3444 = vst.msk [vmem:[#allocation2 + $0x40] sm:$0xff] %vm589, %v3357
      %3445 = vst.msk [vmem:[#allocation2 + $0x48] sm:$0xff] %vm589, %v3359
      %3446 = vst.msk [vmem:[#allocation2 + $0x50] sm:$0xff] %vm589, %v3361
      %3447 = vst.msk [vmem:[#allocation2 + $0x58] sm:$0xff] %vm589, %v3363
      %3448 = vst.msk [vmem:[#allocation2 + $0x60] sm:$0xff] %vm589, %v3365
      %3449 = vst.msk [vmem:[#allocation2 + $0x68] sm:$0xff] %vm589, %v3367
      %3450 = vst.msk [vmem:[#allocation2 + $0x70] sm:$0xff] %vm589, %v3369
      %3451 = vst.msk [vmem:[#allocation2 + $0x78] sm:$0xff] %vm589, %v3371
      %3452 = vst.msk [vmem:[#allocation2 + $0x80] sm:$0xff] %vm589, %v3373
      %3453 = vst.msk [vmem:[#allocation2 + $0x88] sm:$0xff] %vm589, %v3375
      %3454 = vst.msk [vmem:[#allocation2 + $0x90] sm:$0xff] %vm589, %v3377
      %3455 = vst.msk [vmem:[#allocation2 + $0x98] sm:$0xff] %vm589, %v3379
      %3456 = vst.msk [vmem:[#allocation2 + $0xa0] sm:$0xff] %vm589, %v3381
      %3457 = vst.msk [vmem:[#allocation2 + $0xa8] sm:$0xff] %vm589, %v3383
      %3458 = vst.msk [vmem:[#allocation2 + $0xb0] sm:$0xff] %vm589, %v3385
      %3459 = vst.msk [vmem:[#allocation2 + $0xb8] sm:$0xff] %vm589, %v3387
      %3460 = vst.msk [vmem:[#allocation2 + $0xc0] sm:$0xff] %vm589, %v3389
      %3461 = vst.msk [vmem:[#allocation2 + $0xc8] sm:$0xff] %vm589, %v3391
      %3462 = vst.msk [vmem:[#allocation2 + $0xd0] sm:$0xff] %vm589, %v3393
      %3463 = vst.msk [vmem:[#allocation2 + $0xd8] sm:$0xff] %vm589, %v3395
      %3464 = vst.msk [vmem:[#allocation2 + $0xe0] sm:$0xff] %vm589, %v3397
      %3465 = vst.msk [vmem:[#allocation2 + $0xe8] sm:$0xff] %vm589, %v3399
      %3466 = vst.msk [vmem:[#allocation2 + $0xf0] sm:$0xff] %vm589, %v3401
      %3467 = vst.msk [vmem:[#allocation2 + $0xf8] sm:$0xff] %vm589, %v3403
      %v3468 = vld [vmem:[#allocation2] sm:$0xff]
      %v3469 = vld [vmem:[#allocation2 + $0x8] sm:$0xff]
      %v3470 = vld [vmem:[#allocation2 + $0x10] sm:$0xff]
      %v3471 = vld [vmem:[#allocation2 + $0x18] sm:$0xff]
      %v3472 = vld [vmem:[#allocation2 + $0x20] sm:$0xff]
      %v3473 = vld [vmem:[#allocation2 + $0x28] sm:$0xff]
      %v3474 = vld [vmem:[#allocation2 + $0x30] sm:$0xff]
      %v3475 = vld [vmem:[#allocation2 + $0x38] sm:$0xff]
      %v3476 = vld [vmem:[#allocation2 + $0x40] sm:$0xff]
      %v3477 = vld [vmem:[#allocation2 + $0x48] sm:$0xff]
      %v3478 = vld [vmem:[#allocation2 + $0x50] sm:$0xff]
      %v3479 = vld [vmem:[#allocation2 + $0x58] sm:$0xff]
      %v3480 = vld [vmem:[#allocation2 + $0x60] sm:$0xff]
      %v3481 = vld [vmem:[#allocation2 + $0x68] sm:$0xff]
      %v3482 = vld [vmem:[#allocation2 + $0x70] sm:$0xff]
      %v3483 = vld [vmem:[#allocation2 + $0x78] sm:$0xff]
      %v3484 = vld [vmem:[#allocation2 + $0x80] sm:$0xff]
      %v3485 = vld [vmem:[#allocation2 + $0x88] sm:$0xff]
      %v3486 = vld [vmem:[#allocation2 + $0x90] sm:$0xff]
      %v3487 = vld [vmem:[#allocation2 + $0x98] sm:$0xff]
      %v3488 = vld [vmem:[#allocation2 + $0xa0] sm:$0xff]
      %v3489 = vld [vmem:[#allocation2 + $0xa8] sm:$0xff]
      %v3490 = vld [vmem:[#allocation2 + $0xb0] sm:$0xff]
      %v3491 = vld [vmem:[#allocation2 + $0xb8] sm:$0xff]
      %v3492 = vld [vmem:[#allocation2 + $0xc0] sm:$0xff]
      %v3493 = vld [vmem:[#allocation2 + $0xc8] sm:$0xff]
      %v3494 = vld [vmem:[#allocation2 + $0xd0] sm:$0xff]
      %v3495 = vld [vmem:[#allocation2 + $0xd8] sm:$0xff]
      %v3496 = vld [vmem:[#allocation2 + $0xe0] sm:$0xff]
      %v3497 = vld [vmem:[#allocation2 + $0xe8] sm:$0xff]
      %v3498 = vld [vmem:[#allocation2 + $0xf0] sm:$0xff]
      %v3499 = vld [vmem:[#allocation2 + $0xf8] sm:$0xff]
      %v3500 = vld [vmem:[%s2] sm:$0xff]
      %v3501 = vld [vmem:[%s2 + $0x8] sm:$0xf]
      %v3502 = vld [vmem:[%s2903] sm:$0xff]
      %v3503 = vld [vmem:[%s2903 + $0x8] sm:$0xff]
      %v3504 = vld [vmem:[%s2903 + $0x18] sm:$0xff]
      %v3505 = vld [vmem:[%s2903 + $0x20] sm:$0xff]
      %v3506 = vld [vmem:[%s2903 + $0x30] sm:$0xff]
      %v3507 = vld [vmem:[%s2903 + $0x38] sm:$0xff]
      %v3508 = vld [vmem:[%s2903 + $0x48] sm:$0xff]
      %v3509 = vld [vmem:[%s2903 + $0x50] sm:$0xff]
      %v3510 = vld [vmem:[%s2903 + $0x60] sm:$0xff]
      %v3511 = vld [vmem:[%s2903 + $0x68] sm:$0xff]
      %v3512 = vld [vmem:[%s2903 + $0x78] sm:$0xff]
      %v3513 = vld [vmem:[%s2903 + $0x80] sm:$0xff]
      %v3514 = vld [vmem:[%s2903 + $0x90] sm:$0xff]
      %v3515 = vld [vmem:[%s2903 + $0x98] sm:$0xff]
      %v3516 = vld [vmem:[%s2903 + $0xa8] sm:$0xff]
      %v3517 = vld [vmem:[%s2903 + $0xb0] sm:$0xff]
      %v3518 = vld [vmem:[%s2903 + $0xc0] sm:$0xff]
      %v3519 = vld [vmem:[%s2903 + $0xc8] sm:$0xff]
      %v3520 = vld [vmem:[%s2903 + $0xd8] sm:$0xff]
      %v3521 = vld [vmem:[%s2903 + $0xe0] sm:$0xff]
      %v3522 = vld [vmem:[%s2903 + $0xf0] sm:$0xff]
      %v3523 = vld [vmem:[%s2903 + $0xf8] sm:$0xff]
      %v3524 = vld [vmem:[%s2903 + $0x108] sm:$0xff]
      %v3525 = vld [vmem:[%s2903 + $0x110] sm:$0xff]
      %v3526 = vld [vmem:[%s2903 + $0x120] sm:$0xff]
      %v3527 = vld [vmem:[%s2903 + $0x128] sm:$0xff]
      %v3528 = vld [vmem:[%s2903 + $0x138] sm:$0xff]
      %v3529 = vld [vmem:[%s2903 + $0x140] sm:$0xff]
      %v3530 = vld [vmem:[%s2903 + $0x150] sm:$0xff]
      %v3531 = vld [vmem:[%s2903 + $0x158] sm:$0xff]
      %v3532 = vld [vmem:[%s2903 + $0x168] sm:$0xff]
      %v3533 = vld [vmem:[%s2903 + $0x170] sm:$0xff]
      %3534 = vst.msk [vmem:[#allocation2] sm:$0xff] %vm203, %v3502
      %3535 = vst.msk [vmem:[#allocation2 + $0x8] sm:$0xff] %vm203, %v3503
      %3536 = vst.msk [vmem:[#allocation2 + $0x10] sm:$0xff] %vm203, %v3504
      %3537 = vst.msk [vmem:[#allocation2 + $0x18] sm:$0xff] %vm203, %v3505
      %3538 = vst.msk [vmem:[#allocation2 + $0x20] sm:$0xff] %vm203, %v3506
      %3539 = vst.msk [vmem:[#allocation2 + $0x28] sm:$0xff] %vm203, %v3507
      %3540 = vst.msk [vmem:[#allocation2 + $0x30] sm:$0xff] %vm203, %v3508
      %3541 = vst.msk [vmem:[#allocation2 + $0x38] sm:$0xff] %vm203, %v3509
      %3542 = vst.msk [vmem:[#allocation2 + $0x40] sm:$0xff] %vm203, %v3510
      %3543 = vst.msk [vmem:[#allocation2 + $0x48] sm:$0xff] %vm203, %v3511
      %3544 = vst.msk [vmem:[#allocation2 + $0x50] sm:$0xff] %vm203, %v3512
      %3545 = vst.msk [vmem:[#allocation2 + $0x58] sm:$0xff] %vm203, %v3513
      %3546 = vst.msk [vmem:[#allocation2 + $0x60] sm:$0xff] %vm203, %v3514
      %3547 = vst.msk [vmem:[#allocation2 + $0x68] sm:$0xff] %vm203, %v3515
      %3548 = vst.msk [vmem:[#allocation2 + $0x70] sm:$0xff] %vm203, %v3516
      %3549 = vst.msk [vmem:[#allocation2 + $0x78] sm:$0xff] %vm203, %v3517
      %3550 = vst.msk [vmem:[#allocation2 + $0x80] sm:$0xff] %vm203, %v3518
      %3551 = vst.msk [vmem:[#allocation2 + $0x88] sm:$0xff] %vm203, %v3519
      %3552 = vst.msk [vmem:[#allocation2 + $0x90] sm:$0xff] %vm203, %v3520
      %3553 = vst.msk [vmem:[#allocation2 + $0x98] sm:$0xff] %vm203, %v3521
      %3554 = vst.msk [vmem:[#allocation2 + $0xa0] sm:$0xff] %vm203, %v3522
      %3555 = vst.msk [vmem:[#allocation2 + $0xa8] sm:$0xff] %vm203, %v3523
      %3556 = vst.msk [vmem:[#allocation2 + $0xb0] sm:$0xff] %vm203, %v3524
      %3557 = vst.msk [vmem:[#allocation2 + $0xb8] sm:$0xff] %vm203, %v3525
      %3558 = vst.msk [vmem:[#allocation2 + $0xc0] sm:$0xff] %vm203, %v3526
      %3559 = vst.msk [vmem:[#allocation2 + $0xc8] sm:$0xff] %vm203, %v3527
      %3560 = vst.msk [vmem:[#allocation2 + $0xd0] sm:$0xff] %vm203, %v3528
      %3561 = vst.msk [vmem:[#allocation2 + $0xd8] sm:$0xff] %vm203, %v3529
      %3562 = vst.msk [vmem:[#allocation2 + $0xe0] sm:$0xff] %vm203, %v3530
      %3563 = vst.msk [vmem:[#allocation2 + $0xe8] sm:$0xff] %vm203, %v3531
      %3564 = vst.msk [vmem:[#allocation2 + $0xf0] sm:$0xff] %vm203, %v3532
      %3565 = vst.msk [vmem:[#allocation2 + $0xf8] sm:$0xff] %vm203, %v3533
      %v3566 = vld [vmem:[%s2903 + $0x1] sm:$0xff]
      %v3567 = vld [vmem:[%s2903 + $0x9] sm:$0xff]
      %v3568 = vld [vmem:[%s2903 + $0x19] sm:$0xff]
      %v3569 = vld [vmem:[%s2903 + $0x21] sm:$0xff]
      %v3570 = vld [vmem:[%s2903 + $0x31] sm:$0xff]
      %v3571 = vld [vmem:[%s2903 + $0x39] sm:$0xff]
      %v3572 = vld [vmem:[%s2903 + $0x49] sm:$0xff]
      %v3573 = vld [vmem:[%s2903 + $0x51] sm:$0xff]
      %v3574 = vld [vmem:[%s2903 + $0x61] sm:$0xff]
      %v3575 = vld [vmem:[%s2903 + $0x69] sm:$0xff]
      %v3576 = vld [vmem:[%s2903 + $0x79] sm:$0xff]
      %v3577 = vld [vmem:[%s2903 + $0x81] sm:$0xff]
      %v3578 = vld [vmem:[%s2903 + $0x91] sm:$0xff]
      %v3579 = vld [vmem:[%s2903 + $0x99] sm:$0xff]
      %v3580 = vld [vmem:[%s2903 + $0xa9] sm:$0xff]
      %v3581 = vld [vmem:[%s2903 + $0xb1] sm:$0xff]
      %v3582 = vld [vmem:[%s2903 + $0xc1] sm:$0xff]
      %v3583 = vld [vmem:[%s2903 + $0xc9] sm:$0xff]
      %v3584 = vld [vmem:[%s2903 + $0xd9] sm:$0xff]
      %v3585 = vld [vmem:[%s2903 + $0xe1] sm:$0xff]
      %v3586 = vld [vmem:[%s2903 + $0xf1] sm:$0xff]
      %v3587 = vld [vmem:[%s2903 + $0xf9] sm:$0xff]
      %v3588 = vld [vmem:[%s2903 + $0x109] sm:$0xff]
      %v3589 = vld [vmem:[%s2903 + $0x111] sm:$0xff]
      %v3590 = vld [vmem:[%s2903 + $0x121] sm:$0xff]
      %v3591 = vld [vmem:[%s2903 + $0x129] sm:$0xff]
      %v3592 = vld [vmem:[%s2903 + $0x139] sm:$0xff]
      %v3593 = vld [vmem:[%s2903 + $0x141] sm:$0xff]
      %v3594 = vld [vmem:[%s2903 + $0x151] sm:$0xff]
      %v3595 = vld [vmem:[%s2903 + $0x159] sm:$0xff]
      %v3596 = vld [vmem:[%s2903 + $0x169] sm:$0xff]
      %v3597 = vld [vmem:[%s2903 + $0x171] sm:$0xff]
      %3630 = vrot.lane.b32.xlu0 %v3566, 4
      %v3631 = vpop.permute.xlu0 %3630
      %3632 = vrot.lane.b32.xlu0 %v3567, 4
      %v3633 = vpop.permute.xlu0 %3632
      %3634 = vrot.lane.b32.xlu0 %v3568, 4
      %v3635 = vpop.permute.xlu0 %3634
      %3636 = vrot.lane.b32.xlu0 %v3569, 4
      %v3637 = vpop.permute.xlu0 %3636
      %3638 = vrot.lane.b32.xlu0 %v3570, 4
      %v3639 = vpop.permute.xlu0 %3638
      %3640 = vrot.lane.b32.xlu0 %v3571, 4
      %v3641 = vpop.permute.xlu0 %3640
      %3642 = vrot.lane.b32.xlu0 %v3572, 4
      %v3643 = vpop.permute.xlu0 %3642
      %3644 = vrot.lane.b32.xlu0 %v3573, 4
      %v3645 = vpop.permute.xlu0 %3644
      %3646 = vrot.lane.b32.xlu0 %v3574, 4
      %v3647 = vpop.permute.xlu0 %3646
      %3648 = vrot.lane.b32.xlu0 %v3575, 4
      %v3649 = vpop.permute.xlu0 %3648
      %3650 = vrot.lane.b32.xlu0 %v3576, 4
      %v3651 = vpop.permute.xlu0 %3650
      %3652 = vrot.lane.b32.xlu0 %v3577, 4
      %v3653 = vpop.permute.xlu0 %3652
      %3654 = vrot.lane.b32.xlu0 %v3578, 4
      %v3655 = vpop.permute.xlu0 %3654
      %3656 = vrot.lane.b32.xlu0 %v3579, 4
      %v3657 = vpop.permute.xlu0 %3656
      %3658 = vrot.lane.b32.xlu0 %v3580, 4
      %v3659 = vpop.permute.xlu0 %3658
      %3660 = vrot.lane.b32.xlu0 %v3581, 4
      %v3661 = vpop.permute.xlu0 %3660
      %3662 = vrot.lane.b32.xlu0 %v3582, 4
      %v3663 = vpop.permute.xlu0 %3662
      %3664 = vrot.lane.b32.xlu0 %v3583, 4
      %v3665 = vpop.permute.xlu0 %3664
      %3666 = vrot.lane.b32.xlu0 %v3584, 4
      %v3667 = vpop.permute.xlu0 %3666
      %3668 = vrot.lane.b32.xlu0 %v3585, 4
      %v3669 = vpop.permute.xlu0 %3668
      %3670 = vrot.lane.b32.xlu0 %v3586, 4
      %v3671 = vpop.permute.xlu0 %3670
      %3672 = vrot.lane.b32.xlu0 %v3587, 4
      %v3673 = vpop.permute.xlu0 %3672
      %3674 = vrot.lane.b32.xlu0 %v3588, 4
      %v3675 = vpop.permute.xlu0 %3674
      %3676 = vrot.lane.b32.xlu0 %v3589, 4
      %v3677 = vpop.permute.xlu0 %3676
      %3678 = vrot.lane.b32.xlu0 %v3590, 4
      %v3679 = vpop.permute.xlu0 %3678
      %3680 = vrot.lane.b32.xlu0 %v3591, 4
      %v3681 = vpop.permute.xlu0 %3680
      %3682 = vrot.lane.b32.xlu0 %v3592, 4
      %v3683 = vpop.permute.xlu0 %3682
      %3684 = vrot.lane.b32.xlu0 %v3593, 4
      %v3685 = vpop.permute.xlu0 %3684
      %3686 = vrot.lane.b32.xlu0 %v3594, 4
      %v3687 = vpop.permute.xlu0 %3686
      %3688 = vrot.lane.b32.xlu0 %v3595, 4
      %v3689 = vpop.permute.xlu0 %3688
      %3690 = vrot.lane.b32.xlu0 %v3596, 4
      %v3691 = vpop.permute.xlu0 %3690
      %3692 = vrot.lane.b32.xlu0 %v3597, 4
      %v3693 = vpop.permute.xlu0 %3692
      %3726 = vst.msk [vmem:[#allocation2] sm:$0xff] %vm396, %v3631
      %3727 = vst.msk [vmem:[#allocation2 + $0x8] sm:$0xff] %vm396, %v3633
      %3728 = vst.msk [vmem:[#allocation2 + $0x10] sm:$0xff] %vm396, %v3635
      %3729 = vst.msk [vmem:[#allocation2 + $0x18] sm:$0xff] %vm396, %v3637
      %3730 = vst.msk [vmem:[#allocation2 + $0x20] sm:$0xff] %vm396, %v3639
      %3731 = vst.msk [vmem:[#allocation2 + $0x28] sm:$0xff] %vm396, %v3641
      %3732 = vst.msk [vmem:[#allocation2 + $0x30] sm:$0xff] %vm396, %v3643
      %3733 = vst.msk [vmem:[#allocation2 + $0x38] sm:$0xff] %vm396, %v3645
      %3734 = vst.msk [vmem:[#allocation2 + $0x40] sm:$0xff] %vm396, %v3647
      %3735 = vst.msk [vmem:[#allocation2 + $0x48] sm:$0xff] %vm396, %v3649
      %3736 = vst.msk [vmem:[#allocation2 + $0x50] sm:$0xff] %vm396, %v3651
      %3737 = vst.msk [vmem:[#allocation2 + $0x58] sm:$0xff] %vm396, %v3653
      %3738 = vst.msk [vmem:[#allocation2 + $0x60] sm:$0xff] %vm396, %v3655
      %3739 = vst.msk [vmem:[#allocation2 + $0x68] sm:$0xff] %vm396, %v3657
      %3740 = vst.msk [vmem:[#allocation2 + $0x70] sm:$0xff] %vm396, %v3659
      %3741 = vst.msk [vmem:[#allocation2 + $0x78] sm:$0xff] %vm396, %v3661
      %3742 = vst.msk [vmem:[#allocation2 + $0x80] sm:$0xff] %vm396, %v3663
      %3743 = vst.msk [vmem:[#allocation2 + $0x88] sm:$0xff] %vm396, %v3665
      %3744 = vst.msk [vmem:[#allocation2 + $0x90] sm:$0xff] %vm396, %v3667
      %3745 = vst.msk [vmem:[#allocation2 + $0x98] sm:$0xff] %vm396, %v3669
      %3746 = vst.msk [vmem:[#allocation2 + $0xa0] sm:$0xff] %vm396, %v3671
      %3747 = vst.msk [vmem:[#allocation2 + $0xa8] sm:$0xff] %vm396, %v3673
      %3748 = vst.msk [vmem:[#allocation2 + $0xb0] sm:$0xff] %vm396, %v3675
      %3749 = vst.msk [vmem:[#allocation2 + $0xb8] sm:$0xff] %vm396, %v3677
      %3750 = vst.msk [vmem:[#allocation2 + $0xc0] sm:$0xff] %vm396, %v3679
      %3751 = vst.msk [vmem:[#allocation2 + $0xc8] sm:$0xff] %vm396, %v3681
      %3752 = vst.msk [vmem:[#allocation2 + $0xd0] sm:$0xff] %vm396, %v3683
      %3753 = vst.msk [vmem:[#allocation2 + $0xd8] sm:$0xff] %vm396, %v3685
      %3754 = vst.msk [vmem:[#allocation2 + $0xe0] sm:$0xff] %vm396, %v3687
      %3755 = vst.msk [vmem:[#allocation2 + $0xe8] sm:$0xff] %vm396, %v3689
      %3756 = vst.msk [vmem:[#allocation2 + $0xf0] sm:$0xff] %vm396, %v3691
      %3757 = vst.msk [vmem:[#allocation2 + $0xf8] sm:$0xff] %vm396, %v3693
      %v3758 = vld [vmem:[%s2903 + $0x2] sm:$0xff]
      %v3759 = vld [vmem:[%s2903 + $0xa] sm:$0xff]
      %v3760 = vld [vmem:[%s2903 + $0x1a] sm:$0xff]
      %v3761 = vld [vmem:[%s2903 + $0x22] sm:$0xff]
      %v3762 = vld [vmem:[%s2903 + $0x32] sm:$0xff]
      %v3763 = vld [vmem:[%s2903 + $0x3a] sm:$0xff]
      %v3764 = vld [vmem:[%s2903 + $0x4a] sm:$0xff]
      %v3765 = vld [vmem:[%s2903 + $0x52] sm:$0xff]
      %v3766 = vld [vmem:[%s2903 + $0x62] sm:$0xff]
      %v3767 = vld [vmem:[%s2903 + $0x6a] sm:$0xff]
      %v3768 = vld [vmem:[%s2903 + $0x7a] sm:$0xff]
      %v3769 = vld [vmem:[%s2903 + $0x82] sm:$0xff]
      %v3770 = vld [vmem:[%s2903 + $0x92] sm:$0xff]
      %v3771 = vld [vmem:[%s2903 + $0x9a] sm:$0xff]
      %v3772 = vld [vmem:[%s2903 + $0xaa] sm:$0xff]
      %v3773 = vld [vmem:[%s2903 + $0xb2] sm:$0xff]
      %v3774 = vld [vmem:[%s2903 + $0xc2] sm:$0xff]
      %v3775 = vld [vmem:[%s2903 + $0xca] sm:$0xff]
      %v3776 = vld [vmem:[%s2903 + $0xda] sm:$0xff]
      %v3777 = vld [vmem:[%s2903 + $0xe2] sm:$0xff]
      %v3778 = vld [vmem:[%s2903 + $0xf2] sm:$0xff]
      %v3779 = vld [vmem:[%s2903 + $0xfa] sm:$0xff]
      %v3780 = vld [vmem:[%s2903 + $0x10a] sm:$0xff]
      %v3781 = vld [vmem:[%s2903 + $0x112] sm:$0xff]
      %v3782 = vld [vmem:[%s2903 + $0x122] sm:$0xff]
      %v3783 = vld [vmem:[%s2903 + $0x12a] sm:$0xff]
      %v3784 = vld [vmem:[%s2903 + $0x13a] sm:$0xff]
      %v3785 = vld [vmem:[%s2903 + $0x142] sm:$0xff]
      %v3786 = vld [vmem:[%s2903 + $0x152] sm:$0xff]
      %v3787 = vld [vmem:[%s2903 + $0x15a] sm:$0xff]
      %v3788 = vld [vmem:[%s2903 + $0x16a] sm:$0xff]
      %v3789 = vld [vmem:[%s2903 + $0x172] sm:$0xff]
      %3822 = vrot.lane.b32.xlu0 %v3758, 8
      %v3823 = vpop.permute.xlu0 %3822
      %3824 = vrot.lane.b32.xlu0 %v3759, 8
      %v3825 = vpop.permute.xlu0 %3824
      %3826 = vrot.lane.b32.xlu0 %v3760, 8
      %v3827 = vpop.permute.xlu0 %3826
      %3828 = vrot.lane.b32.xlu0 %v3761, 8
      %v3829 = vpop.permute.xlu0 %3828
      %3830 = vrot.lane.b32.xlu0 %v3762, 8
      %v3831 = vpop.permute.xlu0 %3830
      %3832 = vrot.lane.b32.xlu0 %v3763, 8
      %v3833 = vpop.permute.xlu0 %3832
      %3834 = vrot.lane.b32.xlu0 %v3764, 8
      %v3835 = vpop.permute.xlu0 %3834
      %3836 = vrot.lane.b32.xlu0 %v3765, 8
      %v3837 = vpop.permute.xlu0 %3836
      %3838 = vrot.lane.b32.xlu0 %v3766, 8
      %v3839 = vpop.permute.xlu0 %3838
      %3840 = vrot.lane.b32.xlu0 %v3767, 8
      %v3841 = vpop.permute.xlu0 %3840
      %3842 = vrot.lane.b32.xlu0 %v3768, 8
      %v3843 = vpop.permute.xlu0 %3842
      %3844 = vrot.lane.b32.xlu0 %v3769, 8
      %v3845 = vpop.permute.xlu0 %3844
      %3846 = vrot.lane.b32.xlu0 %v3770, 8
      %v3847 = vpop.permute.xlu0 %3846
      %3848 = vrot.lane.b32.xlu0 %v3771, 8
      %v3849 = vpop.permute.xlu0 %3848
      %3850 = vrot.lane.b32.xlu0 %v3772, 8
      %v3851 = vpop.permute.xlu0 %3850
      %3852 = vrot.lane.b32.xlu0 %v3773, 8
      %v3853 = vpop.permute.xlu0 %3852
      %3854 = vrot.lane.b32.xlu0 %v3774, 8
      %v3855 = vpop.permute.xlu0 %3854
      %3856 = vrot.lane.b32.xlu0 %v3775, 8
      %v3857 = vpop.permute.xlu0 %3856
      %3858 = vrot.lane.b32.xlu0 %v3776, 8
      %v3859 = vpop.permute.xlu0 %3858
      %3860 = vrot.lane.b32.xlu0 %v3777, 8
      %v3861 = vpop.permute.xlu0 %3860
      %3862 = vrot.lane.b32.xlu0 %v3778, 8
      %v3863 = vpop.permute.xlu0 %3862
      %3864 = vrot.lane.b32.xlu0 %v3779, 8
      %v3865 = vpop.permute.xlu0 %3864
      %3866 = vrot.lane.b32.xlu0 %v3780, 8
      %v3867 = vpop.permute.xlu0 %3866
      %3868 = vrot.lane.b32.xlu0 %v3781, 8
      %v3869 = vpop.permute.xlu0 %3868
      %3870 = vrot.lane.b32.xlu0 %v3782, 8
      %v3871 = vpop.permute.xlu0 %3870
      %3872 = vrot.lane.b32.xlu0 %v3783, 8
      %v3873 = vpop.permute.xlu0 %3872
      %3874 = vrot.lane.b32.xlu0 %v3784, 8
      %v3875 = vpop.permute.xlu0 %3874
      %3876 = vrot.lane.b32.xlu0 %v3785, 8
      %v3877 = vpop.permute.xlu0 %3876
      %3878 = vrot.lane.b32.xlu0 %v3786, 8
      %v3879 = vpop.permute.xlu0 %3878
      %3880 = vrot.lane.b32.xlu0 %v3787, 8
      %v3881 = vpop.permute.xlu0 %3880
      %3882 = vrot.lane.b32.xlu0 %v3788, 8
      %v3883 = vpop.permute.xlu0 %3882
      %3884 = vrot.lane.b32.xlu0 %v3789, 8
      %v3885 = vpop.permute.xlu0 %3884
      %3918 = vst.msk [vmem:[#allocation2] sm:$0xff] %vm589, %v3823
      %3919 = vst.msk [vmem:[#allocation2 + $0x8] sm:$0xff] %vm589, %v3825
      %3920 = vst.msk [vmem:[#allocation2 + $0x10] sm:$0xff] %vm589, %v3827
      %3921 = vst.msk [vmem:[#allocation2 + $0x18] sm:$0xff] %vm589, %v3829
      %3922 = vst.msk [vmem:[#allocation2 + $0x20] sm:$0xff] %vm589, %v3831
      %3923 = vst.msk [vmem:[#allocation2 + $0x28] sm:$0xff] %vm589, %v3833
      %3924 = vst.msk [vmem:[#allocation2 + $0x30] sm:$0xff] %vm589, %v3835
      %3925 = vst.msk [vmem:[#allocation2 + $0x38] sm:$0xff] %vm589, %v3837
      %3926 = vst.msk [vmem:[#allocation2 + $0x40] sm:$0xff] %vm589, %v3839
      %3927 = vst.msk [vmem:[#allocation2 + $0x48] sm:$0xff] %vm589, %v3841
      %3928 = vst.msk [vmem:[#allocation2 + $0x50] sm:$0xff] %vm589, %v3843
      %3929 = vst.msk [vmem:[#allocation2 + $0x58] sm:$0xff] %vm589, %v3845
      %3930 = vst.msk [vmem:[#allocation2 + $0x60] sm:$0xff] %vm589, %v3847
      %3931 = vst.msk [vmem:[#allocation2 + $0x68] sm:$0xff] %vm589, %v3849
      %3932 = vst.msk [vmem:[#allocation2 + $0x70] sm:$0xff] %vm589, %v3851
      %3933 = vst.msk [vmem:[#allocation2 + $0x78] sm:$0xff] %vm589, %v3853
      %3934 = vst.msk [vmem:[#allocation2 + $0x80] sm:$0xff] %vm589, %v3855
      %3935 = vst.msk [vmem:[#allocation2 + $0x88] sm:$0xff] %vm589, %v3857
      %3936 = vst.msk [vmem:[#allocation2 + $0x90] sm:$0xff] %vm589, %v3859
      %3937 = vst.msk [vmem:[#allocation2 + $0x98] sm:$0xff] %vm589, %v3861
      %3938 = vst.msk [vmem:[#allocation2 + $0xa0] sm:$0xff] %vm589, %v3863
      %3939 = vst.msk [vmem:[#allocation2 + $0xa8] sm:$0xff] %vm589, %v3865
      %3940 = vst.msk [vmem:[#allocation2 + $0xb0] sm:$0xff] %vm589, %v3867
      %3941 = vst.msk [vmem:[#allocation2 + $0xb8] sm:$0xff] %vm589, %v3869
      %3942 = vst.msk [vmem:[#allocation2 + $0xc0] sm:$0xff] %vm589, %v3871
      %3943 = vst.msk [vmem:[#allocation2 + $0xc8] sm:$0xff] %vm589, %v3873
      %3944 = vst.msk [vmem:[#allocation2 + $0xd0] sm:$0xff] %vm589, %v3875
      %3945 = vst.msk [vmem:[#allocation2 + $0xd8] sm:$0xff] %vm589, %v3877
      %3946 = vst.msk [vmem:[#allocation2 + $0xe0] sm:$0xff] %vm589, %v3879
      %3947 = vst.msk [vmem:[#allocation2 + $0xe8] sm:$0xff] %vm589, %v3881
      %3948 = vst.msk [vmem:[#allocation2 + $0xf0] sm:$0xff] %vm589, %v3883
      %3949 = vst.msk [vmem:[#allocation2 + $0xf8] sm:$0xff] %vm589, %v3885
      %v3950 = vld [vmem:[#allocation2] sm:$0xff]
      %v3951 = vld [vmem:[#allocation2 + $0x8] sm:$0xff]
      %v3952 = vld [vmem:[#allocation2 + $0x10] sm:$0xff]
      %v3953 = vld [vmem:[#allocation2 + $0x18] sm:$0xff]
      %v3954 = vld [vmem:[#allocation2 + $0x20] sm:$0xff]
      %v3955 = vld [vmem:[#allocation2 + $0x28] sm:$0xff]
      %v3956 = vld [vmem:[#allocation2 + $0x30] sm:$0xff]
      %v3957 = vld [vmem:[#allocation2 + $0x38] sm:$0xff]
      %v3958 = vld [vmem:[#allocation2 + $0x40] sm:$0xff]
      %v3959 = vld [vmem:[#allocation2 + $0x48] sm:$0xff]
      %v3960 = vld [vmem:[#allocation2 + $0x50] sm:$0xff]
      %v3961 = vld [vmem:[#allocation2 + $0x58] sm:$0xff]
      %v3962 = vld [vmem:[#allocation2 + $0x60] sm:$0xff]
      %v3963 = vld [vmem:[#allocation2 + $0x68] sm:$0xff]
      %v3964 = vld [vmem:[#allocation2 + $0x70] sm:$0xff]
      %v3965 = vld [vmem:[#allocation2 + $0x78] sm:$0xff]
      %v3966 = vld [vmem:[#allocation2 + $0x80] sm:$0xff]
      %v3967 = vld [vmem:[#allocation2 + $0x88] sm:$0xff]
      %v3968 = vld [vmem:[#allocation2 + $0x90] sm:$0xff]
      %v3969 = vld [vmem:[#allocation2 + $0x98] sm:$0xff]
      %v3970 = vld [vmem:[#allocation2 + $0xa0] sm:$0xff]
      %v3971 = vld [vmem:[#allocation2 + $0xa8] sm:$0xff]
      %v3972 = vld [vmem:[#allocation2 + $0xb0] sm:$0xff]
      %v3973 = vld [vmem:[#allocation2 + $0xb8] sm:$0xff]
      %v3974 = vld [vmem:[#allocation2 + $0xc0] sm:$0xff]
      %v3975 = vld [vmem:[#allocation2 + $0xc8] sm:$0xff]
      %v3976 = vld [vmem:[#allocation2 + $0xd0] sm:$0xff]
      %v3977 = vld [vmem:[#allocation2 + $0xd8] sm:$0xff]
      %v3978 = vld [vmem:[#allocation2 + $0xe0] sm:$0xff]
      %v3979 = vld [vmem:[#allocation2 + $0xe8] sm:$0xff]
      %v3980 = vld [vmem:[#allocation2 + $0xf0] sm:$0xff]
      %v3981 = vld [vmem:[#allocation2 + $0xf8] sm:$0xff]
      %s3982 = scalar_lea.vmem %s2, 16
      %v3983 = vld [vmem:[%s3982] sm:$0xff]
      %v3984 = vld [vmem:[%s3982 + $0x8] sm:$0xf]
      %v3986 = vsel %vm1140, %v3950, 0
      %v3989 = vsel %vm1140, %v3951, 0
      %v3992 = vsel %vm1140, %v3952, 0
      %v3995 = vsel %vm1140, %v3953, 0
      %v3998 = vsel %vm1140, %v3954, 0
      %v4001 = vsel %vm1140, %v3955, 0
      %v4004 = vsel %vm1140, %v3956, 0
      %v4007 = vsel %vm1140, %v3957, 0
      %v4010 = vsel %vm1140, %v3958, 0
      %v4013 = vsel %vm1140, %v3959, 0
      %v4016 = vsel %vm1140, %v3960, 0
      %v4019 = vsel %vm1140, %v3961, 0
      %v4022 = vsel %vm1140, %v3962, 0
      %v4025 = vsel %vm1140, %v3963, 0
      %v4028 = vsel %vm1140, %v3964, 0
      %v4031 = vsel %vm1140, %v3965, 0
      %v4034 = vsel %vm1140, %v3966, 0
      %v4037 = vsel %vm1140, %v3967, 0
      %v4040 = vsel %vm1140, %v3968, 0
      %v4043 = vsel %vm1140, %v3969, 0
      %v4046 = vsel %vm1140, %v3970, 0
      %v4049 = vsel %vm1140, %v3971, 0
      %v4052 = vsel %vm1140, %v3972, 0
      %v4055 = vsel %vm1140, %v3973, 0
      %v4058 = vsel %vm1140, %v3974, 0
      %v4061 = vsel %vm1140, %v3975, 0
      %v4064 = vsel %vm1140, %v3976, 0
      %v4067 = vsel %vm1140, %v3977, 0
      %v4070 = vsel %vm1140, %v3978, 0
      %v4073 = vsel %vm1140, %v3979, 0
      %v4076 = vsel %vm1140, %v3980, 0
      %v4079 = vsel %vm1140, %v3981, 0
      %v4082 = vsel %vm1237, %v3984, 0
      %4084 = vmatprep.subr.mxu0 0.0
      %4085 = vmatpush1.msra.mxu0 0.0
      %4086 = vmatprep.subr.mxu0 0.0
      %4087 = vmatpush1.msra.mxu0 0.0
      %4088 = vmatprep.subr.mxu0 0.0
      %4089 = vmatpush1.msra.mxu0 0.0
      %4090 = vmatprep.subr.mxu0 0.0
      %4091 = vmatpush1.msra.mxu0 0.0
      %4092 = vmatprep.subr.mxu0 0.0
      %4093 = vmatpush1.msra.mxu0 0.0
      %4094 = vmatprep.subr.mxu0 0.0
      %4095 = vmatpush1.msra.mxu0 0.0
      %4096 = vmatprep.subr.mxu0 0.0
      %4097 = vmatpush1.msra.mxu0 0.0
      %4098 = vmatprep.subr.mxu0 0.0
      %4099 = vmatpush1.msra.mxu0 0.0
      %4100 = vmatprep.subr.mxu0 0.0
      %4101 = vmatpush1.msra.mxu0 0.0
      %4102 = vmatprep.subr.mxu0 0.0
      %4103 = vmatpush1.msra.mxu0 0.0
      %4104 = vmatprep.subr.mxu0 0.0
      %4105 = vmatpush1.msra.mxu0 0.0
      %4106 = vmatprep.subr.mxu0 0.0
      %4107 = vmatpush1.msra.mxu0 0.0
      %4108 = vmatprep.subr.mxu0 0.0
      %4109 = vmatpush1.msra.mxu0 0.0
      %4110 = vmatprep.subr.mxu0 0.0
      %4111 = vmatpush1.msra.mxu0 0.0
      %4112 = vmatprep.subr.mxu0 0.0
      %4113 = vmatpush1.msra.mxu0 %v4082
      %4114 = vmatprep.subr.mxu0 0.0
      %4115 = vmatpush1.msra.mxu0 %v3983
      %4116 = vmatprep.subr.mxu0 0.0
      %4117 = vmatpush2.msra.mxu0 0.0
      %4118 = vmatprep.subr.mxu0 0.0
      %4119 = vmatpush2.msra.mxu0 0.0
      %4120 = vmatprep.subr.mxu0 0.0
      %4121 = vmatpush2.msra.mxu0 0.0
      %4122 = vmatprep.subr.mxu0 0.0
      %4123 = vmatpush2.msra.mxu0 0.0
      %4124 = vmatprep.subr.mxu0 0.0
      %4125 = vmatpush2.msra.mxu0 0.0
      %4126 = vmatprep.subr.mxu0 0.0
      %4127 = vmatpush2.msra.mxu0 0.0
      %4128 = vmatprep.subr.mxu0 0.0
      %4129 = vmatpush2.msra.mxu0 0.0
      %4130 = vmatprep.subr.mxu0 0.0
      %4131 = vmatpush2.msra.mxu0 0.0
      %4132 = vmatprep.subr.mxu0 0.0
      %4133 = vmatpush2.msra.mxu0 0.0
      %4134 = vmatprep.subr.mxu0 0.0
      %4135 = vmatpush2.msra.mxu0 0.0
      %4136 = vmatprep.subr.mxu0 0.0
      %4137 = vmatpush2.msra.mxu0 0.0
      %4138 = vmatprep.subr.mxu0 0.0
      %4139 = vmatpush2.msra.mxu0 0.0
      %4140 = vmatprep.subr.mxu0 0.0
      %4141 = vmatpush2.msra.mxu0 0.0
      %4142 = vmatprep.subr.mxu0 0.0
      %4143 = vmatpush2.msra.mxu0 0.0
      %4144 = vmatprep.subr.mxu0 0.0
      %4145 = vmatpush2.msra.mxu0 0.0
      %4146 = vmatprep.subr.mxu0 0.0
      %4147 = vmatpush2.msra.mxu0 0.0
      %4148 = vmatprep.mubr.f32.mxu0 0.0
      %4149 = vmatmul.mubr.f32.gmra.mxu0 %v3986
      %v4150 = vpop.f32.mrf.mxu0
      %v4151 = vadd.f32 0.0, %v4150
      %v4152 = vpop.f32.mrf.mxu0
      %4153 = vmatprep.mubr.f32.mxu0 0.0
      %4154 = vmatmul.mubr.f32.gmra.mxu0 %v3989
      %v4155 = vpop.f32.mrf.mxu0
      %v4156 = vadd.f32 0.0, %v4155
      %v4157 = vpop.f32.mrf.mxu0
      %4158 = vmatprep.mubr.f32.mxu0 0.0
      %4159 = vmatmul.mubr.f32.gmra.mxu0 %v3992
      %v4160 = vpop.f32.mrf.mxu0
      %v4161 = vadd.f32 0.0, %v4160
      %v4162 = vpop.f32.mrf.mxu0
      %4163 = vmatprep.mubr.f32.mxu0 0.0
      %4164 = vmatmul.mubr.f32.gmra.mxu0 %v3995
      %v4165 = vpop.f32.mrf.mxu0
      %v4166 = vadd.f32 0.0, %v4165
      %v4167 = vpop.f32.mrf.mxu0
      %4168 = vmatprep.mubr.f32.mxu0 0.0
      %4169 = vmatmul.mubr.f32.gmra.mxu0 %v3998
      %v4170 = vpop.f32.mrf.mxu0
      %v4171 = vadd.f32 0.0, %v4170
      %v4172 = vpop.f32.mrf.mxu0
      %4173 = vmatprep.mubr.f32.mxu0 0.0
      %4174 = vmatmul.mubr.f32.gmra.mxu0 %v4001
      %v4175 = vpop.f32.mrf.mxu0
      %v4176 = vadd.f32 0.0, %v4175
      %v4177 = vpop.f32.mrf.mxu0
      %4178 = vmatprep.mubr.f32.mxu0 0.0
      %4179 = vmatmul.mubr.f32.gmra.mxu0 %v4004
      %v4180 = vpop.f32.mrf.mxu0
      %v4181 = vadd.f32 0.0, %v4180
      %v4182 = vpop.f32.mrf.mxu0
      %4183 = vmatprep.mubr.f32.mxu0 0.0
      %4184 = vmatmul.mubr.f32.gmra.mxu0 %v4007
      %v4185 = vpop.f32.mrf.mxu0
      %v4186 = vadd.f32 0.0, %v4185
      %v4187 = vpop.f32.mrf.mxu0
      %4188 = vmatprep.mubr.f32.mxu0 0.0
      %4189 = vmatmul.mubr.f32.gmra.mxu0 %v4010
      %v4190 = vpop.f32.mrf.mxu0
      %v4191 = vadd.f32 0.0, %v4190
      %v4192 = vpop.f32.mrf.mxu0
      %4193 = vmatprep.mubr.f32.mxu0 0.0
      %4194 = vmatmul.mubr.f32.gmra.mxu0 %v4013
      %v4195 = vpop.f32.mrf.mxu0
      %v4196 = vadd.f32 0.0, %v4195
      %v4197 = vpop.f32.mrf.mxu0
      %4198 = vmatprep.mubr.f32.mxu0 0.0
      %4199 = vmatmul.mubr.f32.gmra.mxu0 %v4016
      %v4200 = vpop.f32.mrf.mxu0
      %v4201 = vadd.f32 0.0, %v4200
      %v4202 = vpop.f32.mrf.mxu0
      %4203 = vmatprep.mubr.f32.mxu0 0.0
      %4204 = vmatmul.mubr.f32.gmra.mxu0 %v4019
      %v4205 = vpop.f32.mrf.mxu0
      %v4206 = vadd.f32 0.0, %v4205
      %v4207 = vpop.f32.mrf.mxu0
      %4208 = vmatprep.mubr.f32.mxu0 0.0
      %4209 = vmatmul.mubr.f32.gmra.mxu0 %v4022
      %v4210 = vpop.f32.mrf.mxu0
      %v4211 = vadd.f32 0.0, %v4210
      %v4212 = vpop.f32.mrf.mxu0
      %4213 = vmatprep.mubr.f32.mxu0 0.0
      %4214 = vmatmul.mubr.f32.gmra.mxu0 %v4025
      %v4215 = vpop.f32.mrf.mxu0
      %v4216 = vadd.f32 0.0, %v4215
      %v4217 = vpop.f32.mrf.mxu0
      %4218 = vmatprep.mubr.f32.mxu0 0.0
      %4219 = vmatmul.mubr.f32.gmra.mxu0 %v4028
      %v4220 = vpop.f32.mrf.mxu0
      %v4221 = vadd.f32 0.0, %v4220
      %v4222 = vpop.f32.mrf.mxu0
      %4223 = vmatprep.mubr.f32.mxu0 0.0
      %4224 = vmatmul.mubr.f32.gmra.mxu0 %v4031
      %v4225 = vpop.f32.mrf.mxu0
      %v4226 = vadd.f32 0.0, %v4225
      %v4227 = vpop.f32.mrf.mxu0
      %4228 = vmatprep.mubr.f32.mxu0 0.0
      %4229 = vmatmul.mubr.f32.gmra.mxu0 %v4034
      %v4230 = vpop.f32.mrf.mxu0
      %v4231 = vadd.f32 0.0, %v4230
      %v4232 = vpop.f32.mrf.mxu0
      %4233 = vmatprep.mubr.f32.mxu0 0.0
      %4234 = vmatmul.mubr.f32.gmra.mxu0 %v4037
      %v4235 = vpop.f32.mrf.mxu0
      %v4236 = vadd.f32 0.0, %v4235
      %v4237 = vpop.f32.mrf.mxu0
      %4238 = vmatprep.mubr.f32.mxu0 0.0
      %4239 = vmatmul.mubr.f32.gmra.mxu0 %v4040
      %v4240 = vpop.f32.mrf.mxu0
      %v4241 = vadd.f32 0.0, %v4240
      %v4242 = vpop.f32.mrf.mxu0
      %4243 = vmatprep.mubr.f32.mxu0 0.0
      %4244 = vmatmul.mubr.f32.gmra.mxu0 %v4043
      %v4245 = vpop.f32.mrf.mxu0
      %v4246 = vadd.f32 0.0, %v4245
      %v4247 = vpop.f32.mrf.mxu0
      %4248 = vmatprep.mubr.f32.mxu0 0.0
      %4249 = vmatmul.mubr.f32.gmra.mxu0 %v4046
      %v4250 = vpop.f32.mrf.mxu0
      %v4251 = vadd.f32 0.0, %v4250
      %v4252 = vpop.f32.mrf.mxu0
      %4253 = vmatprep.mubr.f32.mxu0 0.0
      %4254 = vmatmul.mubr.f32.gmra.mxu0 %v4049
      %v4255 = vpop.f32.mrf.mxu0
      %v4256 = vadd.f32 0.0, %v4255
      %v4257 = vpop.f32.mrf.mxu0
      %4258 = vmatprep.mubr.f32.mxu0 0.0
      %4259 = vmatmul.mubr.f32.gmra.mxu0 %v4052
      %v4260 = vpop.f32.mrf.mxu0
      %v4261 = vadd.f32 0.0, %v4260
      %v4262 = vpop.f32.mrf.mxu0
      %4263 = vmatprep.mubr.f32.mxu0 0.0
      %4264 = vmatmul.mubr.f32.gmra.mxu0 %v4055
      %v4265 = vpop.f32.mrf.mxu0
      %v4266 = vadd.f32 0.0, %v4265
      %v4267 = vpop.f32.mrf.mxu0
      %4268 = vmatprep.mubr.f32.mxu0 0.0
      %4269 = vmatmul.mubr.f32.gmra.mxu0 %v4058
      %v4270 = vpop.f32.mrf.mxu0
      %v4271 = vadd.f32 0.0, %v4270
      %v4272 = vpop.f32.mrf.mxu0
      %4273 = vmatprep.mubr.f32.mxu0 0.0
      %4274 = vmatmul.mubr.f32.gmra.mxu0 %v4061
      %v4275 = vpop.f32.mrf.mxu0
      %v4276 = vadd.f32 0.0, %v4275
      %v4277 = vpop.f32.mrf.mxu0
      %4278 = vmatprep.mubr.f32.mxu0 0.0
      %4279 = vmatmul.mubr.f32.gmra.mxu0 %v4064
      %v4280 = vpop.f32.mrf.mxu0
      %v4281 = vadd.f32 0.0, %v4280
      %v4282 = vpop.f32.mrf.mxu0
      %4283 = vmatprep.mubr.f32.mxu0 0.0
      %4284 = vmatmul.mubr.f32.gmra.mxu0 %v4067
      %v4285 = vpop.f32.mrf.mxu0
      %v4286 = vadd.f32 0.0, %v4285
      %v4287 = vpop.f32.mrf.mxu0
      %4288 = vmatprep.mubr.f32.mxu0 0.0
      %4289 = vmatmul.mubr.f32.gmra.mxu0 %v4070
      %v4290 = vpop.f32.mrf.mxu0
      %v4291 = vadd.f32 0.0, %v4290
      %v4292 = vpop.f32.mrf.mxu0
      %4293 = vmatprep.mubr.f32.mxu0 0.0
      %4294 = vmatmul.mubr.f32.gmra.mxu0 %v4073
      %v4295 = vpop.f32.mrf.mxu0
      %v4296 = vadd.f32 0.0, %v4295
      %v4297 = vpop.f32.mrf.mxu0
      %4298 = vmatprep.mubr.f32.mxu0 0.0
      %4299 = vmatmul.mubr.f32.gmra.mxu0 %v4076
      %v4300 = vpop.f32.mrf.mxu0
      %v4301 = vadd.f32 0.0, %v4300
      %v4302 = vpop.f32.mrf.mxu0
      %4303 = vmatprep.mubr.f32.mxu0 0.0
      %4304 = vmatmul.mubr.f32.gmra.mxu0 %v4079
      %v4305 = vpop.f32.mrf.mxu0
      %v4306 = vadd.f32 0.0, %v4305
      %v4307 = vpop.f32.mrf.mxu0
      %4308 = vdwg.mxu0
      %v4310 = vsel %vm1140, %v3468, 0
      %v4313 = vsel %vm1140, %v3469, 0
      %v4316 = vsel %vm1140, %v3470, 0
      %v4319 = vsel %vm1140, %v3471, 0
      %v4322 = vsel %vm1140, %v3472, 0
      %v4325 = vsel %vm1140, %v3473, 0
      %v4328 = vsel %vm1140, %v3474, 0
      %v4331 = vsel %vm1140, %v3475, 0
      %v4334 = vsel %vm1140, %v3476, 0
      %v4337 = vsel %vm1140, %v3477, 0
      %v4340 = vsel %vm1140, %v3478, 0
      %v4343 = vsel %vm1140, %v3479, 0
      %v4346 = vsel %vm1140, %v3480, 0
      %v4349 = vsel %vm1140, %v3481, 0
      %v4352 = vsel %vm1140, %v3482, 0
      %v4355 = vsel %vm1140, %v3483, 0
      %v4358 = vsel %vm1140, %v3484, 0
      %v4361 = vsel %vm1140, %v3485, 0
      %v4364 = vsel %vm1140, %v3486, 0
      %v4367 = vsel %vm1140, %v3487, 0
      %v4370 = vsel %vm1140, %v3488, 0
      %v4373 = vsel %vm1140, %v3489, 0
      %v4376 = vsel %vm1140, %v3490, 0
      %v4379 = vsel %vm1140, %v3491, 0
      %v4382 = vsel %vm1140, %v3492, 0
      %v4385 = vsel %vm1140, %v3493, 0
      %v4388 = vsel %vm1140, %v3494, 0
      %v4391 = vsel %vm1140, %v3495, 0
      %v4394 = vsel %vm1140, %v3496, 0
      %v4397 = vsel %vm1140, %v3497, 0
      %v4400 = vsel %vm1140, %v3498, 0
      %v4403 = vsel %vm1140, %v3499, 0
      %v4406 = vsel %vm1237, %v3501, 0
      %4408 = vmatprep.subr.mxu0 0.0
      %4409 = vmatpush1.msra.mxu0 0.0
      %4410 = vmatprep.subr.mxu0 0.0
      %4411 = vmatpush1.msra.mxu0 0.0
      %4412 = vmatprep.subr.mxu0 0.0
      %4413 = vmatpush1.msra.mxu0 0.0
      %4414 = vmatprep.subr.mxu0 0.0
      %4415 = vmatpush1.msra.mxu0 0.0
      %4416 = vmatprep.subr.mxu0 0.0
      %4417 = vmatpush1.msra.mxu0 0.0
      %4418 = vmatprep.subr.mxu0 0.0
      %4419 = vmatpush1.msra.mxu0 0.0
      %4420 = vmatprep.subr.mxu0 0.0
      %4421 = vmatpush1.msra.mxu0 0.0
      %4422 = vmatprep.subr.mxu0 0.0
      %4423 = vmatpush1.msra.mxu0 0.0
      %4424 = vmatprep.subr.mxu0 0.0
      %4425 = vmatpush1.msra.mxu0 0.0
      %4426 = vmatprep.subr.mxu0 0.0
      %4427 = vmatpush1.msra.mxu0 0.0
      %4428 = vmatprep.subr.mxu0 0.0
      %4429 = vmatpush1.msra.mxu0 0.0
      %4430 = vmatprep.subr.mxu0 0.0
      %4431 = vmatpush1.msra.mxu0 0.0
      %4432 = vmatprep.subr.mxu0 0.0
      %4433 = vmatpush1.msra.mxu0 0.0
      %4434 = vmatprep.subr.mxu0 0.0
      %4435 = vmatpush1.msra.mxu0 0.0
      %4436 = vmatprep.subr.mxu0 0.0
      %4437 = vmatpush1.msra.mxu0 %v4406
      %4438 = vmatprep.subr.mxu0 0.0
      %4439 = vmatpush1.msra.mxu0 %v3500
      %4440 = vmatprep.subr.mxu0 0.0
      %4441 = vmatpush2.msra.mxu0 0.0
      %4442 = vmatprep.subr.mxu0 0.0
      %4443 = vmatpush2.msra.mxu0 0.0
      %4444 = vmatprep.subr.mxu0 0.0
      %4445 = vmatpush2.msra.mxu0 0.0
      %4446 = vmatprep.subr.mxu0 0.0
      %4447 = vmatpush2.msra.mxu0 0.0
      %4448 = vmatprep.subr.mxu0 0.0
      %4449 = vmatpush2.msra.mxu0 0.0
      %4450 = vmatprep.subr.mxu0 0.0
      %4451 = vmatpush2.msra.mxu0 0.0
      %4452 = vmatprep.subr.mxu0 0.0
      %4453 = vmatpush2.msra.mxu0 0.0
      %4454 = vmatprep.subr.mxu0 0.0
      %4455 = vmatpush2.msra.mxu0 0.0
      %4456 = vmatprep.subr.mxu0 0.0
      %4457 = vmatpush2.msra.mxu0 0.0
      %4458 = vmatprep.subr.mxu0 0.0
      %4459 = vmatpush2.msra.mxu0 0.0
      %4460 = vmatprep.subr.mxu0 0.0
      %4461 = vmatpush2.msra.mxu0 0.0
      %4462 = vmatprep.subr.mxu0 0.0
      %4463 = vmatpush2.msra.mxu0 0.0
      %4464 = vmatprep.subr.mxu0 0.0
      %4465 = vmatpush2.msra.mxu0 0.0
      %4466 = vmatprep.subr.mxu0 0.0
      %4467 = vmatpush2.msra.mxu0 0.0
      %4468 = vmatprep.subr.mxu0 0.0
      %4469 = vmatpush2.msra.mxu0 0.0
      %4470 = vmatprep.subr.mxu0 0.0
      %4471 = vmatpush2.msra.mxu0 0.0
      %4472 = vmatprep.mubr.f32.mxu0 0.0
      %4473 = vmatmul.mubr.f32.gmra.mxu0 %v4310
      %v4474 = vpop.f32.mrf.mxu0
      %v4475 = vadd.f32 %v4151, %v4474
      %v4476 = vpop.f32.mrf.mxu0
      %4477 = vmatprep.mubr.f32.mxu0 0.0
      %4478 = vmatmul.mubr.f32.gmra.mxu0 %v4313
      %v4479 = vpop.f32.mrf.mxu0
      %v4480 = vadd.f32 %v4156, %v4479
      %v4481 = vpop.f32.mrf.mxu0
      %4482 = vmatprep.mubr.f32.mxu0 0.0
      %4483 = vmatmul.mubr.f32.gmra.mxu0 %v4316
      %v4484 = vpop.f32.mrf.mxu0
      %v4485 = vadd.f32 %v4161, %v4484
      %v4486 = vpop.f32.mrf.mxu0
      %4487 = vmatprep.mubr.f32.mxu0 0.0
      %4488 = vmatmul.mubr.f32.gmra.mxu0 %v4319
      %v4489 = vpop.f32.mrf.mxu0
      %v4490 = vadd.f32 %v4166, %v4489
      %v4491 = vpop.f32.mrf.mxu0
      %4492 = vmatprep.mubr.f32.mxu0 0.0
      %4493 = vmatmul.mubr.f32.gmra.mxu0 %v4322
      %v4494 = vpop.f32.mrf.mxu0
      %v4495 = vadd.f32 %v4171, %v4494
      %v4496 = vpop.f32.mrf.mxu0
      %4497 = vmatprep.mubr.f32.mxu0 0.0
      %4498 = vmatmul.mubr.f32.gmra.mxu0 %v4325
      %v4499 = vpop.f32.mrf.mxu0
      %v4500 = vadd.f32 %v4176, %v4499
      %v4501 = vpop.f32.mrf.mxu0
      %4502 = vmatprep.mubr.f32.mxu0 0.0
      %4503 = vmatmul.mubr.f32.gmra.mxu0 %v4328
      %v4504 = vpop.f32.mrf.mxu0
      %v4505 = vadd.f32 %v4181, %v4504
      %v4506 = vpop.f32.mrf.mxu0
      %4507 = vmatprep.mubr.f32.mxu0 0.0
      %4508 = vmatmul.mubr.f32.gmra.mxu0 %v4331
      %v4509 = vpop.f32.mrf.mxu0
      %v4510 = vadd.f32 %v4186, %v4509
      %v4511 = vpop.f32.mrf.mxu0
      %4512 = vmatprep.mubr.f32.mxu0 0.0
      %4513 = vmatmul.mubr.f32.gmra.mxu0 %v4334
      %v4514 = vpop.f32.mrf.mxu0
      %v4515 = vadd.f32 %v4191, %v4514
      %v4516 = vpop.f32.mrf.mxu0
      %4517 = vmatprep.mubr.f32.mxu0 0.0
      %4518 = vmatmul.mubr.f32.gmra.mxu0 %v4337
      %v4519 = vpop.f32.mrf.mxu0
      %v4520 = vadd.f32 %v4196, %v4519
      %v4521 = vpop.f32.mrf.mxu0
      %4522 = vmatprep.mubr.f32.mxu0 0.0
      %4523 = vmatmul.mubr.f32.gmra.mxu0 %v4340
      %v4524 = vpop.f32.mrf.mxu0
      %v4525 = vadd.f32 %v4201, %v4524
      %v4526 = vpop.f32.mrf.mxu0
      %4527 = vmatprep.mubr.f32.mxu0 0.0
      %4528 = vmatmul.mubr.f32.gmra.mxu0 %v4343
      %v4529 = vpop.f32.mrf.mxu0
      %v4530 = vadd.f32 %v4206, %v4529
      %v4531 = vpop.f32.mrf.mxu0
      %4532 = vmatprep.mubr.f32.mxu0 0.0
      %4533 = vmatmul.mubr.f32.gmra.mxu0 %v4346
      %v4534 = vpop.f32.mrf.mxu0
      %v4535 = vadd.f32 %v4211, %v4534
      %v4536 = vpop.f32.mrf.mxu0
      %4537 = vmatprep.mubr.f32.mxu0 0.0
      %4538 = vmatmul.mubr.f32.gmra.mxu0 %v4349
      %v4539 = vpop.f32.mrf.mxu0
      %v4540 = vadd.f32 %v4216, %v4539
      %v4541 = vpop.f32.mrf.mxu0
      %4542 = vmatprep.mubr.f32.mxu0 0.0
      %4543 = vmatmul.mubr.f32.gmra.mxu0 %v4352
      %v4544 = vpop.f32.mrf.mxu0
      %v4545 = vadd.f32 %v4221, %v4544
      %v4546 = vpop.f32.mrf.mxu0
      %4547 = vmatprep.mubr.f32.mxu0 0.0
      %4548 = vmatmul.mubr.f32.gmra.mxu0 %v4355
      %v4549 = vpop.f32.mrf.mxu0
      %v4550 = vadd.f32 %v4226, %v4549
      %v4551 = vpop.f32.mrf.mxu0
      %4552 = vmatprep.mubr.f32.mxu0 0.0
      %4553 = vmatmul.mubr.f32.gmra.mxu0 %v4358
      %v4554 = vpop.f32.mrf.mxu0
      %v4555 = vadd.f32 %v4231, %v4554
      %v4556 = vpop.f32.mrf.mxu0
      %4557 = vmatprep.mubr.f32.mxu0 0.0
      %4558 = vmatmul.mubr.f32.gmra.mxu0 %v4361
      %v4559 = vpop.f32.mrf.mxu0
      %v4560 = vadd.f32 %v4236, %v4559
      %v4561 = vpop.f32.mrf.mxu0
      %4562 = vmatprep.mubr.f32.mxu0 0.0
      %4563 = vmatmul.mubr.f32.gmra.mxu0 %v4364
      %v4564 = vpop.f32.mrf.mxu0
      %v4565 = vadd.f32 %v4241, %v4564
      %v4566 = vpop.f32.mrf.mxu0
      %4567 = vmatprep.mubr.f32.mxu0 0.0
      %4568 = vmatmul.mubr.f32.gmra.mxu0 %v4367
      %v4569 = vpop.f32.mrf.mxu0
      %v4570 = vadd.f32 %v4246, %v4569
      %v4571 = vpop.f32.mrf.mxu0
      %4572 = vmatprep.mubr.f32.mxu0 0.0
      %4573 = vmatmul.mubr.f32.gmra.mxu0 %v4370
      %v4574 = vpop.f32.mrf.mxu0
      %v4575 = vadd.f32 %v4251, %v4574
      %v4576 = vpop.f32.mrf.mxu0
      %4577 = vmatprep.mubr.f32.mxu0 0.0
      %4578 = vmatmul.mubr.f32.gmra.mxu0 %v4373
      %v4579 = vpop.f32.mrf.mxu0
      %v4580 = vadd.f32 %v4256, %v4579
      %v4581 = vpop.f32.mrf.mxu0
      %4582 = vmatprep.mubr.f32.mxu0 0.0
      %4583 = vmatmul.mubr.f32.gmra.mxu0 %v4376
      %v4584 = vpop.f32.mrf.mxu0
      %v4585 = vadd.f32 %v4261, %v4584
      %v4586 = vpop.f32.mrf.mxu0
      %4587 = vmatprep.mubr.f32.mxu0 0.0
      %4588 = vmatmul.mubr.f32.gmra.mxu0 %v4379
      %v4589 = vpop.f32.mrf.mxu0
      %v4590 = vadd.f32 %v4266, %v4589
      %v4591 = vpop.f32.mrf.mxu0
      %4592 = vmatprep.mubr.f32.mxu0 0.0
      %4593 = vmatmul.mubr.f32.gmra.mxu0 %v4382
      %v4594 = vpop.f32.mrf.mxu0
      %v4595 = vadd.f32 %v4271, %v4594
      %v4596 = vpop.f32.mrf.mxu0
      %4597 = vmatprep.mubr.f32.mxu0 0.0
      %4598 = vmatmul.mubr.f32.gmra.mxu0 %v4385
      %v4599 = vpop.f32.mrf.mxu0
      %v4600 = vadd.f32 %v4276, %v4599
      %v4601 = vpop.f32.mrf.mxu0
      %4602 = vmatprep.mubr.f32.mxu0 0.0
      %4603 = vmatmul.mubr.f32.gmra.mxu0 %v4388
      %v4604 = vpop.f32.mrf.mxu0
      %v4605 = vadd.f32 %v4281, %v4604
      %v4606 = vpop.f32.mrf.mxu0
      %4607 = vmatprep.mubr.f32.mxu0 0.0
      %4608 = vmatmul.mubr.f32.gmra.mxu0 %v4391
      %v4609 = vpop.f32.mrf.mxu0
      %v4610 = vadd.f32 %v4286, %v4609
      %v4611 = vpop.f32.mrf.mxu0
      %4612 = vmatprep.mubr.f32.mxu0 0.0
      %4613 = vmatmul.mubr.f32.gmra.mxu0 %v4394
      %v4614 = vpop.f32.mrf.mxu0
      %v4615 = vadd.f32 %v4291, %v4614
      %v4616 = vpop.f32.mrf.mxu0
      %4617 = vmatprep.mubr.f32.mxu0 0.0
      %4618 = vmatmul.mubr.f32.gmra.mxu0 %v4397
      %v4619 = vpop.f32.mrf.mxu0
      %v4620 = vadd.f32 %v4296, %v4619
      %v4621 = vpop.f32.mrf.mxu0
      %4622 = vmatprep.mubr.f32.mxu0 0.0
      %4623 = vmatmul.mubr.f32.gmra.mxu0 %v4400
      %v4624 = vpop.f32.mrf.mxu0
      %v4625 = vadd.f32 %v4301, %v4624
      %v4626 = vpop.f32.mrf.mxu0
      %4627 = vmatprep.mubr.f32.mxu0 0.0
      %4628 = vmatmul.mubr.f32.gmra.mxu0 %v4403
      %v4629 = vpop.f32.mrf.mxu0
      %v4630 = vadd.f32 %v4306, %v4629
      %v4631 = vpop.f32.mrf.mxu0
      %4632 = vdwg.mxu0
      %v4633 = vld [vmem:[%s2936] sm:$0xff]
      %v4634 = vld [vmem:[%s2936 + $0x8] sm:$0xff]
      %v4635 = vld [vmem:[%s2936 + $0x18] sm:$0xff]
      %v4636 = vld [vmem:[%s2936 + $0x20] sm:$0xff]
      %v4637 = vld [vmem:[%s2936 + $0x30] sm:$0xff]
      %v4638 = vld [vmem:[%s2936 + $0x38] sm:$0xff]
      %v4639 = vld [vmem:[%s2936 + $0x48] sm:$0xff]
      %v4640 = vld [vmem:[%s2936 + $0x50] sm:$0xff]
      %v4641 = vld [vmem:[%s2936 + $0x60] sm:$0xff]
      %v4642 = vld [vmem:[%s2936 + $0x68] sm:$0xff]
      %v4643 = vld [vmem:[%s2936 + $0x78] sm:$0xff]
      %v4644 = vld [vmem:[%s2936 + $0x80] sm:$0xff]
      %v4645 = vld [vmem:[%s2936 + $0x90] sm:$0xff]
      %v4646 = vld [vmem:[%s2936 + $0x98] sm:$0xff]
      %v4647 = vld [vmem:[%s2936 + $0xa8] sm:$0xff]
      %v4648 = vld [vmem:[%s2936 + $0xb0] sm:$0xff]
      %v4649 = vld [vmem:[%s2936 + $0xc0] sm:$0xff]
      %v4650 = vld [vmem:[%s2936 + $0xc8] sm:$0xff]
      %v4651 = vld [vmem:[%s2936 + $0xd8] sm:$0xff]
      %v4652 = vld [vmem:[%s2936 + $0xe0] sm:$0xff]
      %v4653 = vld [vmem:[%s2936 + $0xf0] sm:$0xff]
      %v4654 = vld [vmem:[%s2936 + $0xf8] sm:$0xff]
      %v4655 = vld [vmem:[%s2936 + $0x108] sm:$0xff]
      %v4656 = vld [vmem:[%s2936 + $0x110] sm:$0xff]
      %v4657 = vld [vmem:[%s2936 + $0x120] sm:$0xff]
      %v4658 = vld [vmem:[%s2936 + $0x128] sm:$0xff]
      %v4659 = vld [vmem:[%s2936 + $0x138] sm:$0xff]
      %v4660 = vld [vmem:[%s2936 + $0x140] sm:$0xff]
      %v4661 = vld [vmem:[%s2936 + $0x150] sm:$0xff]
      %v4662 = vld [vmem:[%s2936 + $0x158] sm:$0xff]
      %v4663 = vld [vmem:[%s2936 + $0x168] sm:$0xff]
      %v4664 = vld [vmem:[%s2936 + $0x170] sm:$0xff]
      %4665 = vst.msk [vmem:[#allocation2] sm:$0xff] %vm203, %v4633
      %4666 = vst.msk [vmem:[#allocation2 + $0x8] sm:$0xff] %vm203, %v4634
      %4667 = vst.msk [vmem:[#allocation2 + $0x10] sm:$0xff] %vm203, %v4635
      %4668 = vst.msk [vmem:[#allocation2 + $0x18] sm:$0xff] %vm203, %v4636
      %4669 = vst.msk [vmem:[#allocation2 + $0x20] sm:$0xff] %vm203, %v4637
      %4670 = vst.msk [vmem:[#allocation2 + $0x28] sm:$0xff] %vm203, %v4638
      %4671 = vst.msk [vmem:[#allocation2 + $0x30] sm:$0xff] %vm203, %v4639
      %4672 = vst.msk [vmem:[#allocation2 + $0x38] sm:$0xff] %vm203, %v4640
      %4673 = vst.msk [vmem:[#allocation2 + $0x40] sm:$0xff] %vm203, %v4641
      %4674 = vst.msk [vmem:[#allocation2 + $0x48] sm:$0xff] %vm203, %v4642
      %4675 = vst.msk [vmem:[#allocation2 + $0x50] sm:$0xff] %vm203, %v4643
      %4676 = vst.msk [vmem:[#allocation2 + $0x58] sm:$0xff] %vm203, %v4644
      %4677 = vst.msk [vmem:[#allocation2 + $0x60] sm:$0xff] %vm203, %v4645
      %4678 = vst.msk [vmem:[#allocation2 + $0x68] sm:$0xff] %vm203, %v4646
      %4679 = vst.msk [vmem:[#allocation2 + $0x70] sm:$0xff] %vm203, %v4647
      %4680 = vst.msk [vmem:[#allocation2 + $0x78] sm:$0xff] %vm203, %v4648
      %4681 = vst.msk [vmem:[#allocation2 + $0x80] sm:$0xff] %vm203, %v4649
      %4682 = vst.msk [vmem:[#allocation2 + $0x88] sm:$0xff] %vm203, %v4650
      %4683 = vst.msk [vmem:[#allocation2 + $0x90] sm:$0xff] %vm203, %v4651
      %4684 = vst.msk [vmem:[#allocation2 + $0x98] sm:$0xff] %vm203, %v4652
      %4685 = vst.msk [vmem:[#allocation2 + $0xa0] sm:$0xff] %vm203, %v4653
      %4686 = vst.msk [vmem:[#allocation2 + $0xa8] sm:$0xff] %vm203, %v4654
      %4687 = vst.msk [vmem:[#allocation2 + $0xb0] sm:$0xff] %vm203, %v4655
      %4688 = vst.msk [vmem:[#allocation2 + $0xb8] sm:$0xff] %vm203, %v4656
      %4689 = vst.msk [vmem:[#allocation2 + $0xc0] sm:$0xff] %vm203, %v4657
      %4690 = vst.msk [vmem:[#allocation2 + $0xc8] sm:$0xff] %vm203, %v4658
      %4691 = vst.msk [vmem:[#allocation2 + $0xd0] sm:$0xff] %vm203, %v4659
      %4692 = vst.msk [vmem:[#allocation2 + $0xd8] sm:$0xff] %vm203, %v4660
      %4693 = vst.msk [vmem:[#allocation2 + $0xe0] sm:$0xff] %vm203, %v4661
      %4694 = vst.msk [vmem:[#allocation2 + $0xe8] sm:$0xff] %vm203, %v4662
      %4695 = vst.msk [vmem:[#allocation2 + $0xf0] sm:$0xff] %vm203, %v4663
      %4696 = vst.msk [vmem:[#allocation2 + $0xf8] sm:$0xff] %vm203, %v4664
      %v4697 = vld [vmem:[%s2936 + $0x1] sm:$0xff]
      %v4698 = vld [vmem:[%s2936 + $0x9] sm:$0xff]
      %v4699 = vld [vmem:[%s2936 + $0x19] sm:$0xff]
      %v4700 = vld [vmem:[%s2936 + $0x21] sm:$0xff]
      %v4701 = vld [vmem:[%s2936 + $0x31] sm:$0xff]
      %v4702 = vld [vmem:[%s2936 + $0x39] sm:$0xff]
      %v4703 = vld [vmem:[%s2936 + $0x49] sm:$0xff]
      %v4704 = vld [vmem:[%s2936 + $0x51] sm:$0xff]
      %v4705 = vld [vmem:[%s2936 + $0x61] sm:$0xff]
      %v4706 = vld [vmem:[%s2936 + $0x69] sm:$0xff]
      %v4707 = vld [vmem:[%s2936 + $0x79] sm:$0xff]
      %v4708 = vld [vmem:[%s2936 + $0x81] sm:$0xff]
      %v4709 = vld [vmem:[%s2936 + $0x91] sm:$0xff]
      %v4710 = vld [vmem:[%s2936 + $0x99] sm:$0xff]
      %v4711 = vld [vmem:[%s2936 + $0xa9] sm:$0xff]
      %v4712 = vld [vmem:[%s2936 + $0xb1] sm:$0xff]
      %v4713 = vld [vmem:[%s2936 + $0xc1] sm:$0xff]
      %v4714 = vld [vmem:[%s2936 + $0xc9] sm:$0xff]
      %v4715 = vld [vmem:[%s2936 + $0xd9] sm:$0xff]
      %v4716 = vld [vmem:[%s2936 + $0xe1] sm:$0xff]
      %v4717 = vld [vmem:[%s2936 + $0xf1] sm:$0xff]
      %v4718 = vld [vmem:[%s2936 + $0xf9] sm:$0xff]
      %v4719 = vld [vmem:[%s2936 + $0x109] sm:$0xff]
      %v4720 = vld [vmem:[%s2936 + $0x111] sm:$0xff]
      %v4721 = vld [vmem:[%s2936 + $0x121] sm:$0xff]
      %v4722 = vld [vmem:[%s2936 + $0x129] sm:$0xff]
      %v4723 = vld [vmem:[%s2936 + $0x139] sm:$0xff]
      %v4724 = vld [vmem:[%s2936 + $0x141] sm:$0xff]
      %v4725 = vld [vmem:[%s2936 + $0x151] sm:$0xff]
      %v4726 = vld [vmem:[%s2936 + $0x159] sm:$0xff]
      %v4727 = vld [vmem:[%s2936 + $0x169] sm:$0xff]
      %v4728 = vld [vmem:[%s2936 + $0x171] sm:$0xff]
      %4761 = vrot.lane.b32.xlu0 %v4697, 4
      %v4762 = vpop.permute.xlu0 %4761
      %4763 = vrot.lane.b32.xlu0 %v4698, 4
      %v4764 = vpop.permute.xlu0 %4763
      %4765 = vrot.lane.b32.xlu0 %v4699, 4
      %v4766 = vpop.permute.xlu0 %4765
      %4767 = vrot.lane.b32.xlu0 %v4700, 4
      %v4768 = vpop.permute.xlu0 %4767
      %4769 = vrot.lane.b32.xlu0 %v4701, 4
      %v4770 = vpop.permute.xlu0 %4769
      %4771 = vrot.lane.b32.xlu0 %v4702, 4
      %v4772 = vpop.permute.xlu0 %4771
      %4773 = vrot.lane.b32.xlu0 %v4703, 4
      %v4774 = vpop.permute.xlu0 %4773
      %4775 = vrot.lane.b32.xlu0 %v4704, 4
      %v4776 = vpop.permute.xlu0 %4775
      %4777 = vrot.lane.b32.xlu0 %v4705, 4
      %v4778 = vpop.permute.xlu0 %4777
      %4779 = vrot.lane.b32.xlu0 %v4706, 4
      %v4780 = vpop.permute.xlu0 %4779
      %4781 = vrot.lane.b32.xlu0 %v4707, 4
      %v4782 = vpop.permute.xlu0 %4781
      %4783 = vrot.lane.b32.xlu0 %v4708, 4
      %v4784 = vpop.permute.xlu0 %4783
      %4785 = vrot.lane.b32.xlu0 %v4709, 4
      %v4786 = vpop.permute.xlu0 %4785
      %4787 = vrot.lane.b32.xlu0 %v4710, 4
      %v4788 = vpop.permute.xlu0 %4787
      %4789 = vrot.lane.b32.xlu0 %v4711, 4
      %v4790 = vpop.permute.xlu0 %4789
      %4791 = vrot.lane.b32.xlu0 %v4712, 4
      %v4792 = vpop.permute.xlu0 %4791
      %4793 = vrot.lane.b32.xlu0 %v4713, 4
      %v4794 = vpop.permute.xlu0 %4793
      %4795 = vrot.lane.b32.xlu0 %v4714, 4
      %v4796 = vpop.permute.xlu0 %4795
      %4797 = vrot.lane.b32.xlu0 %v4715, 4
      %v4798 = vpop.permute.xlu0 %4797
      %4799 = vrot.lane.b32.xlu0 %v4716, 4
      %v4800 = vpop.permute.xlu0 %4799
      %4801 = vrot.lane.b32.xlu0 %v4717, 4
      %v4802 = vpop.permute.xlu0 %4801
      %4803 = vrot.lane.b32.xlu0 %v4718, 4
      %v4804 = vpop.permute.xlu0 %4803
      %4805 = vrot.lane.b32.xlu0 %v4719, 4
      %v4806 = vpop.permute.xlu0 %4805
      %4807 = vrot.lane.b32.xlu0 %v4720, 4
      %v4808 = vpop.permute.xlu0 %4807
      %4809 = vrot.lane.b32.xlu0 %v4721, 4
      %v4810 = vpop.permute.xlu0 %4809
      %4811 = vrot.lane.b32.xlu0 %v4722, 4
      %v4812 = vpop.permute.xlu0 %4811
      %4813 = vrot.lane.b32.xlu0 %v4723, 4
      %v4814 = vpop.permute.xlu0 %4813
      %4815 = vrot.lane.b32.xlu0 %v4724, 4
      %v4816 = vpop.permute.xlu0 %4815
      %4817 = vrot.lane.b32.xlu0 %v4725, 4
      %v4818 = vpop.permute.xlu0 %4817
      %4819 = vrot.lane.b32.xlu0 %v4726, 4
      %v4820 = vpop.permute.xlu0 %4819
      %4821 = vrot.lane.b32.xlu0 %v4727, 4
      %v4822 = vpop.permute.xlu0 %4821
      %4823 = vrot.lane.b32.xlu0 %v4728, 4
      %v4824 = vpop.permute.xlu0 %4823
      %4857 = vst.msk [vmem:[#allocation2] sm:$0xff] %vm396, %v4762
      %4858 = vst.msk [vmem:[#allocation2 + $0x8] sm:$0xff] %vm396, %v4764
      %4859 = vst.msk [vmem:[#allocation2 + $0x10] sm:$0xff] %vm396, %v4766
      %4860 = vst.msk [vmem:[#allocation2 + $0x18] sm:$0xff] %vm396, %v4768
      %4861 = vst.msk [vmem:[#allocation2 + $0x20] sm:$0xff] %vm396, %v4770
      %4862 = vst.msk [vmem:[#allocation2 + $0x28] sm:$0xff] %vm396, %v4772
      %4863 = vst.msk [vmem:[#allocation2 + $0x30] sm:$0xff] %vm396, %v4774
      %4864 = vst.msk [vmem:[#allocation2 + $0x38] sm:$0xff] %vm396, %v4776
      %4865 = vst.msk [vmem:[#allocation2 + $0x40] sm:$0xff] %vm396, %v4778
      %4866 = vst.msk [vmem:[#allocation2 + $0x48] sm:$0xff] %vm396, %v4780
      %4867 = vst.msk [vmem:[#allocation2 + $0x50] sm:$0xff] %vm396, %v4782
      %4868 = vst.msk [vmem:[#allocation2 + $0x58] sm:$0xff] %vm396, %v4784
      %4869 = vst.msk [vmem:[#allocation2 + $0x60] sm:$0xff] %vm396, %v4786
      %4870 = vst.msk [vmem:[#allocation2 + $0x68] sm:$0xff] %vm396, %v4788
      %4871 = vst.msk [vmem:[#allocation2 + $0x70] sm:$0xff] %vm396, %v4790
      %4872 = vst.msk [vmem:[#allocation2 + $0x78] sm:$0xff] %vm396, %v4792
      %4873 = vst.msk [vmem:[#allocation2 + $0x80] sm:$0xff] %vm396, %v4794
      %4874 = vst.msk [vmem:[#allocation2 + $0x88] sm:$0xff] %vm396, %v4796
      %4875 = vst.msk [vmem:[#allocation2 + $0x90] sm:$0xff] %vm396, %v4798
      %4876 = vst.msk [vmem:[#allocation2 + $0x98] sm:$0xff] %vm396, %v4800
      %4877 = vst.msk [vmem:[#allocation2 + $0xa0] sm:$0xff] %vm396, %v4802
      %4878 = vst.msk [vmem:[#allocation2 + $0xa8] sm:$0xff] %vm396, %v4804
      %4879 = vst.msk [vmem:[#allocation2 + $0xb0] sm:$0xff] %vm396, %v4806
      %4880 = vst.msk [vmem:[#allocation2 + $0xb8] sm:$0xff] %vm396, %v4808
      %4881 = vst.msk [vmem:[#allocation2 + $0xc0] sm:$0xff] %vm396, %v4810
      %4882 = vst.msk [vmem:[#allocation2 + $0xc8] sm:$0xff] %vm396, %v4812
      %4883 = vst.msk [vmem:[#allocation2 + $0xd0] sm:$0xff] %vm396, %v4814
      %4884 = vst.msk [vmem:[#allocation2 + $0xd8] sm:$0xff] %vm396, %v4816
      %4885 = vst.msk [vmem:[#allocation2 + $0xe0] sm:$0xff] %vm396, %v4818
      %4886 = vst.msk [vmem:[#allocation2 + $0xe8] sm:$0xff] %vm396, %v4820
      %4887 = vst.msk [vmem:[#allocation2 + $0xf0] sm:$0xff] %vm396, %v4822
      %4888 = vst.msk [vmem:[#allocation2 + $0xf8] sm:$0xff] %vm396, %v4824
      %v4889 = vld [vmem:[%s2936 + $0x2] sm:$0xff]
      %v4890 = vld [vmem:[%s2936 + $0xa] sm:$0xff]
      %v4891 = vld [vmem:[%s2936 + $0x1a] sm:$0xff]
      %v4892 = vld [vmem:[%s2936 + $0x22] sm:$0xff]
      %v4893 = vld [vmem:[%s2936 + $0x32] sm:$0xff]
      %v4894 = vld [vmem:[%s2936 + $0x3a] sm:$0xff]
      %v4895 = vld [vmem:[%s2936 + $0x4a] sm:$0xff]
      %v4896 = vld [vmem:[%s2936 + $0x52] sm:$0xff]
      %v4897 = vld [vmem:[%s2936 + $0x62] sm:$0xff]
      %v4898 = vld [vmem:[%s2936 + $0x6a] sm:$0xff]
      %v4899 = vld [vmem:[%s2936 + $0x7a] sm:$0xff]
      %v4900 = vld [vmem:[%s2936 + $0x82] sm:$0xff]
      %v4901 = vld [vmem:[%s2936 + $0x92] sm:$0xff]
      %v4902 = vld [vmem:[%s2936 + $0x9a] sm:$0xff]
      %v4903 = vld [vmem:[%s2936 + $0xaa] sm:$0xff]
      %v4904 = vld [vmem:[%s2936 + $0xb2] sm:$0xff]
      %v4905 = vld [vmem:[%s2936 + $0xc2] sm:$0xff]
      %v4906 = vld [vmem:[%s2936 + $0xca] sm:$0xff]
      %v4907 = vld [vmem:[%s2936 + $0xda] sm:$0xff]
      %v4908 = vld [vmem:[%s2936 + $0xe2] sm:$0xff]
      %v4909 = vld [vmem:[%s2936 + $0xf2] sm:$0xff]
      %v4910 = vld [vmem:[%s2936 + $0xfa] sm:$0xff]
      %v4911 = vld [vmem:[%s2936 + $0x10a] sm:$0xff]
      %v4912 = vld [vmem:[%s2936 + $0x112] sm:$0xff]
      %v4913 = vld [vmem:[%s2936 + $0x122] sm:$0xff]
      %v4914 = vld [vmem:[%s2936 + $0x12a] sm:$0xff]
      %v4915 = vld [vmem:[%s2936 + $0x13a] sm:$0xff]
      %v4916 = vld [vmem:[%s2936 + $0x142] sm:$0xff]
      %v4917 = vld [vmem:[%s2936 + $0x152] sm:$0xff]
      %v4918 = vld [vmem:[%s2936 + $0x15a] sm:$0xff]
      %v4919 = vld [vmem:[%s2936 + $0x16a] sm:$0xff]
      %v4920 = vld [vmem:[%s2936 + $0x172] sm:$0xff]
      %4953 = vrot.lane.b32.xlu0 %v4889, 8
      %v4954 = vpop.permute.xlu0 %4953
      %4955 = vrot.lane.b32.xlu0 %v4890, 8
      %v4956 = vpop.permute.xlu0 %4955
      %4957 = vrot.lane.b32.xlu0 %v4891, 8
      %v4958 = vpop.permute.xlu0 %4957
      %4959 = vrot.lane.b32.xlu0 %v4892, 8
      %v4960 = vpop.permute.xlu0 %4959
      %4961 = vrot.lane.b32.xlu0 %v4893, 8
      %v4962 = vpop.permute.xlu0 %4961
      %4963 = vrot.lane.b32.xlu0 %v4894, 8
      %v4964 = vpop.permute.xlu0 %4963
      %4965 = vrot.lane.b32.xlu0 %v4895, 8
      %v4966 = vpop.permute.xlu0 %4965
      %4967 = vrot.lane.b32.xlu0 %v4896, 8
      %v4968 = vpop.permute.xlu0 %4967
      %4969 = vrot.lane.b32.xlu0 %v4897, 8
      %v4970 = vpop.permute.xlu0 %4969
      %4971 = vrot.lane.b32.xlu0 %v4898, 8
      %v4972 = vpop.permute.xlu0 %4971
      %4973 = vrot.lane.b32.xlu0 %v4899, 8
      %v4974 = vpop.permute.xlu0 %4973
      %4975 = vrot.lane.b32.xlu0 %v4900, 8
      %v4976 = vpop.permute.xlu0 %4975
      %4977 = vrot.lane.b32.xlu0 %v4901, 8
      %v4978 = vpop.permute.xlu0 %4977
      %4979 = vrot.lane.b32.xlu0 %v4902, 8
      %v4980 = vpop.permute.xlu0 %4979
      %4981 = vrot.lane.b32.xlu0 %v4903, 8
      %v4982 = vpop.permute.xlu0 %4981
      %4983 = vrot.lane.b32.xlu0 %v4904, 8
      %v4984 = vpop.permute.xlu0 %4983
      %4985 = vrot.lane.b32.xlu0 %v4905, 8
      %v4986 = vpop.permute.xlu0 %4985
      %4987 = vrot.lane.b32.xlu0 %v4906, 8
      %v4988 = vpop.permute.xlu0 %4987
      %4989 = vrot.lane.b32.xlu0 %v4907, 8
      %v4990 = vpop.permute.xlu0 %4989
      %4991 = vrot.lane.b32.xlu0 %v4908, 8
      %v4992 = vpop.permute.xlu0 %4991
      %4993 = vrot.lane.b32.xlu0 %v4909, 8
      %v4994 = vpop.permute.xlu0 %4993
      %4995 = vrot.lane.b32.xlu0 %v4910, 8
      %v4996 = vpop.permute.xlu0 %4995
      %4997 = vrot.lane.b32.xlu0 %v4911, 8
      %v4998 = vpop.permute.xlu0 %4997
      %4999 = vrot.lane.b32.xlu0 %v4912, 8
      %v5000 = vpop.permute.xlu0 %4999
      %5001 = vrot.lane.b32.xlu0 %v4913, 8
      %v5002 = vpop.permute.xlu0 %5001
      %5003 = vrot.lane.b32.xlu0 %v4914, 8
      %v5004 = vpop.permute.xlu0 %5003
      %5005 = vrot.lane.b32.xlu0 %v4915, 8
      %v5006 = vpop.permute.xlu0 %5005
      %5007 = vrot.lane.b32.xlu0 %v4916, 8
      %v5008 = vpop.permute.xlu0 %5007
      %5009 = vrot.lane.b32.xlu0 %v4917, 8
      %v5010 = vpop.permute.xlu0 %5009
      %5011 = vrot.lane.b32.xlu0 %v4918, 8
      %v5012 = vpop.permute.xlu0 %5011
      %5013 = vrot.lane.b32.xlu0 %v4919, 8
      %v5014 = vpop.permute.xlu0 %5013
      %5015 = vrot.lane.b32.xlu0 %v4920, 8
      %v5016 = vpop.permute.xlu0 %5015
      %5049 = vst.msk [vmem:[#allocation2] sm:$0xff] %vm589, %v4954
      %5050 = vst.msk [vmem:[#allocation2 + $0x8] sm:$0xff] %vm589, %v4956
      %5051 = vst.msk [vmem:[#allocation2 + $0x10] sm:$0xff] %vm589, %v4958
      %5052 = vst.msk [vmem:[#allocation2 + $0x18] sm:$0xff] %vm589, %v4960
      %5053 = vst.msk [vmem:[#allocation2 + $0x20] sm:$0xff] %vm589, %v4962
      %5054 = vst.msk [vmem:[#allocation2 + $0x28] sm:$0xff] %vm589, %v4964
      %5055 = vst.msk [vmem:[#allocation2 + $0x30] sm:$0xff] %vm589, %v4966
      %5056 = vst.msk [vmem:[#allocation2 + $0x38] sm:$0xff] %vm589, %v4968
      %5057 = vst.msk [vmem:[#allocation2 + $0x40] sm:$0xff] %vm589, %v4970
      %5058 = vst.msk [vmem:[#allocation2 + $0x48] sm:$0xff] %vm589, %v4972
      %5059 = vst.msk [vmem:[#allocation2 + $0x50] sm:$0xff] %vm589, %v4974
      %5060 = vst.msk [vmem:[#allocation2 + $0x58] sm:$0xff] %vm589, %v4976
      %5061 = vst.msk [vmem:[#allocation2 + $0x60] sm:$0xff] %vm589, %v4978
      %5062 = vst.msk [vmem:[#allocation2 + $0x68] sm:$0xff] %vm589, %v4980
      %5063 = vst.msk [vmem:[#allocation2 + $0x70] sm:$0xff] %vm589, %v4982
      %5064 = vst.msk [vmem:[#allocation2 + $0x78] sm:$0xff] %vm589, %v4984
      %5065 = vst.msk [vmem:[#allocation2 + $0x80] sm:$0xff] %vm589, %v4986
      %5066 = vst.msk [vmem:[#allocation2 + $0x88] sm:$0xff] %vm589, %v4988
      %5067 = vst.msk [vmem:[#allocation2 + $0x90] sm:$0xff] %vm589, %v4990
      %5068 = vst.msk [vmem:[#allocation2 + $0x98] sm:$0xff] %vm589, %v4992
      %5069 = vst.msk [vmem:[#allocation2 + $0xa0] sm:$0xff] %vm589, %v4994
      %5070 = vst.msk [vmem:[#allocation2 + $0xa8] sm:$0xff] %vm589, %v4996
      %5071 = vst.msk [vmem:[#allocation2 + $0xb0] sm:$0xff] %vm589, %v4998
      %5072 = vst.msk [vmem:[#allocation2 + $0xb8] sm:$0xff] %vm589, %v5000
      %5073 = vst.msk [vmem:[#allocation2 + $0xc0] sm:$0xff] %vm589, %v5002
      %5074 = vst.msk [vmem:[#allocation2 + $0xc8] sm:$0xff] %vm589, %v5004
      %5075 = vst.msk [vmem:[#allocation2 + $0xd0] sm:$0xff] %vm589, %v5006
      %5076 = vst.msk [vmem:[#allocation2 + $0xd8] sm:$0xff] %vm589, %v5008
      %5077 = vst.msk [vmem:[#allocation2 + $0xe0] sm:$0xff] %vm589, %v5010
      %5078 = vst.msk [vmem:[#allocation2 + $0xe8] sm:$0xff] %vm589, %v5012
      %5079 = vst.msk [vmem:[#allocation2 + $0xf0] sm:$0xff] %vm589, %v5014
      %5080 = vst.msk [vmem:[#allocation2 + $0xf8] sm:$0xff] %vm589, %v5016
      %v5081 = vld [vmem:[#allocation2] sm:$0xff]
      %v5082 = vld [vmem:[#allocation2 + $0x8] sm:$0xff]
      %v5083 = vld [vmem:[#allocation2 + $0x10] sm:$0xff]
      %v5084 = vld [vmem:[#allocation2 + $0x18] sm:$0xff]
      %v5085 = vld [vmem:[#allocation2 + $0x20] sm:$0xff]
      %v5086 = vld [vmem:[#allocation2 + $0x28] sm:$0xff]
      %v5087 = vld [vmem:[#allocation2 + $0x30] sm:$0xff]
      %v5088 = vld [vmem:[#allocation2 + $0x38] sm:$0xff]
      %v5089 = vld [vmem:[#allocation2 + $0x40] sm:$0xff]
      %v5090 = vld [vmem:[#allocation2 + $0x48] sm:$0xff]
      %v5091 = vld [vmem:[#allocation2 + $0x50] sm:$0xff]
      %v5092 = vld [vmem:[#allocation2 + $0x58] sm:$0xff]
      %v5093 = vld [vmem:[#allocation2 + $0x60] sm:$0xff]
      %v5094 = vld [vmem:[#allocation2 + $0x68] sm:$0xff]
      %v5095 = vld [vmem:[#allocation2 + $0x70] sm:$0xff]
      %v5096 = vld [vmem:[#allocation2 + $0x78] sm:$0xff]
      %v5097 = vld [vmem:[#allocation2 + $0x80] sm:$0xff]
      %v5098 = vld [vmem:[#allocation2 + $0x88] sm:$0xff]
      %v5099 = vld [vmem:[#allocation2 + $0x90] sm:$0xff]
      %v5100 = vld [vmem:[#allocation2 + $0x98] sm:$0xff]
      %v5101 = vld [vmem:[#allocation2 + $0xa0] sm:$0xff]
      %v5102 = vld [vmem:[#allocation2 + $0xa8] sm:$0xff]
      %v5103 = vld [vmem:[#allocation2 + $0xb0] sm:$0xff]
      %v5104 = vld [vmem:[#allocation2 + $0xb8] sm:$0xff]
      %v5105 = vld [vmem:[#allocation2 + $0xc0] sm:$0xff]
      %v5106 = vld [vmem:[#allocation2 + $0xc8] sm:$0xff]
      %v5107 = vld [vmem:[#allocation2 + $0xd0] sm:$0xff]
      %v5108 = vld [vmem:[#allocation2 + $0xd8] sm:$0xff]
      %v5109 = vld [vmem:[#allocation2 + $0xe0] sm:$0xff]
      %v5110 = vld [vmem:[#allocation2 + $0xe8] sm:$0xff]
      %v5111 = vld [vmem:[#allocation2 + $0xf0] sm:$0xff]
      %v5112 = vld [vmem:[#allocation2 + $0xf8] sm:$0xff]
      %s5113 = scalar_lea.vmem %s2, 32
      %v5114 = vld [vmem:[%s5113] sm:$0xff]
      %v5115 = vld [vmem:[%s5113 + $0x8] sm:$0xf]
      %v5117 = vsel %vm1140, %v5081, 0
      %v5120 = vsel %vm1140, %v5082, 0
      %v5123 = vsel %vm1140, %v5083, 0
      %v5126 = vsel %vm1140, %v5084, 0
      %v5129 = vsel %vm1140, %v5085, 0
      %v5132 = vsel %vm1140, %v5086, 0
      %v5135 = vsel %vm1140, %v5087, 0
      %v5138 = vsel %vm1140, %v5088, 0
      %v5141 = vsel %vm1140, %v5089, 0
      %v5144 = vsel %vm1140, %v5090, 0
      %v5147 = vsel %vm1140, %v5091, 0
      %v5150 = vsel %vm1140, %v5092, 0
      %v5153 = vsel %vm1140, %v5093, 0
      %v5156 = vsel %vm1140, %v5094, 0
      %v5159 = vsel %vm1140, %v5095, 0
      %v5162 = vsel %vm1140, %v5096, 0
      %v5165 = vsel %vm1140, %v5097, 0
      %v5168 = vsel %vm1140, %v5098, 0
      %v5171 = vsel %vm1140, %v5099, 0
      %v5174 = vsel %vm1140, %v5100, 0
      %v5177 = vsel %vm1140, %v5101, 0
      %v5180 = vsel %vm1140, %v5102, 0
      %v5183 = vsel %vm1140, %v5103, 0
      %v5186 = vsel %vm1140, %v5104, 0
      %v5189 = vsel %vm1140, %v5105, 0
      %v5192 = vsel %vm1140, %v5106, 0
      %v5195 = vsel %vm1140, %v5107, 0
      %v5198 = vsel %vm1140, %v5108, 0
      %v5201 = vsel %vm1140, %v5109, 0
      %v5204 = vsel %vm1140, %v5110, 0
      %v5207 = vsel %vm1140, %v5111, 0
      %v5210 = vsel %vm1140, %v5112, 0
      %v5213 = vsel %vm1237, %v5115, 0
      %5215 = vmatprep.subr.mxu0 0.0
      %5216 = vmatpush1.msra.mxu0 0.0
      %5217 = vmatprep.subr.mxu0 0.0
      %5218 = vmatpush1.msra.mxu0 0.0
      %5219 = vmatprep.subr.mxu0 0.0
      %5220 = vmatpush1.msra.mxu0 0.0
      %5221 = vmatprep.subr.mxu0 0.0
      %5222 = vmatpush1.msra.mxu0 0.0
      %5223 = vmatprep.subr.mxu0 0.0
      %5224 = vmatpush1.msra.mxu0 0.0
      %5225 = vmatprep.subr.mxu0 0.0
      %5226 = vmatpush1.msra.mxu0 0.0
      %5227 = vmatprep.subr.mxu0 0.0
      %5228 = vmatpush1.msra.mxu0 0.0
      %5229 = vmatprep.subr.mxu0 0.0
      %5230 = vmatpush1.msra.mxu0 0.0
      %5231 = vmatprep.subr.mxu0 0.0
      %5232 = vmatpush1.msra.mxu0 0.0
      %5233 = vmatprep.subr.mxu0 0.0
      %5234 = vmatpush1.msra.mxu0 0.0
      %5235 = vmatprep.subr.mxu0 0.0
      %5236 = vmatpush1.msra.mxu0 0.0
      %5237 = vmatprep.subr.mxu0 0.0
      %5238 = vmatpush1.msra.mxu0 0.0
      %5239 = vmatprep.subr.mxu0 0.0
      %5240 = vmatpush1.msra.mxu0 0.0
      %5241 = vmatprep.subr.mxu0 0.0
      %5242 = vmatpush1.msra.mxu0 0.0
      %5243 = vmatprep.subr.mxu0 0.0
      %5244 = vmatpush1.msra.mxu0 %v5213
      %5245 = vmatprep.subr.mxu0 0.0
      %5246 = vmatpush1.msra.mxu0 %v5114
      %5247 = vmatprep.subr.mxu0 0.0
      %5248 = vmatpush2.msra.mxu0 0.0
      %5249 = vmatprep.subr.mxu0 0.0
      %5250 = vmatpush2.msra.mxu0 0.0
      %5251 = vmatprep.subr.mxu0 0.0
      %5252 = vmatpush2.msra.mxu0 0.0
      %5253 = vmatprep.subr.mxu0 0.0
      %5254 = vmatpush2.msra.mxu0 0.0
      %5255 = vmatprep.subr.mxu0 0.0
      %5256 = vmatpush2.msra.mxu0 0.0
      %5257 = vmatprep.subr.mxu0 0.0
      %5258 = vmatpush2.msra.mxu0 0.0
      %5259 = vmatprep.subr.mxu0 0.0
      %5260 = vmatpush2.msra.mxu0 0.0
      %5261 = vmatprep.subr.mxu0 0.0
      %5262 = vmatpush2.msra.mxu0 0.0
      %5263 = vmatprep.subr.mxu0 0.0
      %5264 = vmatpush2.msra.mxu0 0.0
      %5265 = vmatprep.subr.mxu0 0.0
      %5266 = vmatpush2.msra.mxu0 0.0
      %5267 = vmatprep.subr.mxu0 0.0
      %5268 = vmatpush2.msra.mxu0 0.0
      %5269 = vmatprep.subr.mxu0 0.0
      %5270 = vmatpush2.msra.mxu0 0.0
      %5271 = vmatprep.subr.mxu0 0.0
      %5272 = vmatpush2.msra.mxu0 0.0
      %5273 = vmatprep.subr.mxu0 0.0
      %5274 = vmatpush2.msra.mxu0 0.0
      %5275 = vmatprep.subr.mxu0 0.0
      %5276 = vmatpush2.msra.mxu0 0.0
      %5277 = vmatprep.subr.mxu0 0.0
      %5278 = vmatpush2.msra.mxu0 0.0
      %5279 = vmatprep.mubr.f32.mxu0 0.0
      %5280 = vmatmul.mubr.f32.gmra.mxu0 %v5117
      %v5281 = vpop.f32.mrf.mxu0
      %v5282 = vadd.f32 0.0, %v5281
      %v5283 = vpop.f32.mrf.mxu0
      %5284 = vmatprep.mubr.f32.mxu0 0.0
      %5285 = vmatmul.mubr.f32.gmra.mxu0 %v5120
      %v5286 = vpop.f32.mrf.mxu0
      %v5287 = vadd.f32 0.0, %v5286
      %v5288 = vpop.f32.mrf.mxu0
      %5289 = vmatprep.mubr.f32.mxu0 0.0
      %5290 = vmatmul.mubr.f32.gmra.mxu0 %v5123
      %v5291 = vpop.f32.mrf.mxu0
      %v5292 = vadd.f32 0.0, %v5291
      %v5293 = vpop.f32.mrf.mxu0
      %5294 = vmatprep.mubr.f32.mxu0 0.0
      %5295 = vmatmul.mubr.f32.gmra.mxu0 %v5126
      %v5296 = vpop.f32.mrf.mxu0
      %v5297 = vadd.f32 0.0, %v5296
      %v5298 = vpop.f32.mrf.mxu0
      %5299 = vmatprep.mubr.f32.mxu0 0.0
      %5300 = vmatmul.mubr.f32.gmra.mxu0 %v5129
      %v5301 = vpop.f32.mrf.mxu0
      %v5302 = vadd.f32 0.0, %v5301
      %v5303 = vpop.f32.mrf.mxu0
      %5304 = vmatprep.mubr.f32.mxu0 0.0
      %5305 = vmatmul.mubr.f32.gmra.mxu0 %v5132
      %v5306 = vpop.f32.mrf.mxu0
      %v5307 = vadd.f32 0.0, %v5306
      %v5308 = vpop.f32.mrf.mxu0
      %5309 = vmatprep.mubr.f32.mxu0 0.0
      %5310 = vmatmul.mubr.f32.gmra.mxu0 %v5135
      %v5311 = vpop.f32.mrf.mxu0
      %v5312 = vadd.f32 0.0, %v5311
      %v5313 = vpop.f32.mrf.mxu0
      %5314 = vmatprep.mubr.f32.mxu0 0.0
      %5315 = vmatmul.mubr.f32.gmra.mxu0 %v5138
      %v5316 = vpop.f32.mrf.mxu0
      %v5317 = vadd.f32 0.0, %v5316
      %v5318 = vpop.f32.mrf.mxu0
      %5319 = vmatprep.mubr.f32.mxu0 0.0
      %5320 = vmatmul.mubr.f32.gmra.mxu0 %v5141
      %v5321 = vpop.f32.mrf.mxu0
      %v5322 = vadd.f32 0.0, %v5321
      %v5323 = vpop.f32.mrf.mxu0
      %5324 = vmatprep.mubr.f32.mxu0 0.0
      %5325 = vmatmul.mubr.f32.gmra.mxu0 %v5144
      %v5326 = vpop.f32.mrf.mxu0
      %v5327 = vadd.f32 0.0, %v5326
      %v5328 = vpop.f32.mrf.mxu0
      %5329 = vmatprep.mubr.f32.mxu0 0.0
      %5330 = vmatmul.mubr.f32.gmra.mxu0 %v5147
      %v5331 = vpop.f32.mrf.mxu0
      %v5332 = vadd.f32 0.0, %v5331
      %v5333 = vpop.f32.mrf.mxu0
      %5334 = vmatprep.mubr.f32.mxu0 0.0
      %5335 = vmatmul.mubr.f32.gmra.mxu0 %v5150
      %v5336 = vpop.f32.mrf.mxu0
      %v5337 = vadd.f32 0.0, %v5336
      %v5338 = vpop.f32.mrf.mxu0
      %5339 = vmatprep.mubr.f32.mxu0 0.0
      %5340 = vmatmul.mubr.f32.gmra.mxu0 %v5153
      %v5341 = vpop.f32.mrf.mxu0
      %v5342 = vadd.f32 0.0, %v5341
      %v5343 = vpop.f32.mrf.mxu0
      %5344 = vmatprep.mubr.f32.mxu0 0.0
      %5345 = vmatmul.mubr.f32.gmra.mxu0 %v5156
      %v5346 = vpop.f32.mrf.mxu0
      %v5347 = vadd.f32 0.0, %v5346
      %v5348 = vpop.f32.mrf.mxu0
      %5349 = vmatprep.mubr.f32.mxu0 0.0
      %5350 = vmatmul.mubr.f32.gmra.mxu0 %v5159
      %v5351 = vpop.f32.mrf.mxu0
      %v5352 = vadd.f32 0.0, %v5351
      %v5353 = vpop.f32.mrf.mxu0
      %5354 = vmatprep.mubr.f32.mxu0 0.0
      %5355 = vmatmul.mubr.f32.gmra.mxu0 %v5162
      %v5356 = vpop.f32.mrf.mxu0
      %v5357 = vadd.f32 0.0, %v5356
      %v5358 = vpop.f32.mrf.mxu0
      %5359 = vmatprep.mubr.f32.mxu0 0.0
      %5360 = vmatmul.mubr.f32.gmra.mxu0 %v5165
      %v5361 = vpop.f32.mrf.mxu0
      %v5362 = vadd.f32 0.0, %v5361
      %v5363 = vpop.f32.mrf.mxu0
      %5364 = vmatprep.mubr.f32.mxu0 0.0
      %5365 = vmatmul.mubr.f32.gmra.mxu0 %v5168
      %v5366 = vpop.f32.mrf.mxu0
      %v5367 = vadd.f32 0.0, %v5366
      %v5368 = vpop.f32.mrf.mxu0
      %5369 = vmatprep.mubr.f32.mxu0 0.0
      %5370 = vmatmul.mubr.f32.gmra.mxu0 %v5171
      %v5371 = vpop.f32.mrf.mxu0
      %v5372 = vadd.f32 0.0, %v5371
      %v5373 = vpop.f32.mrf.mxu0
      %5374 = vmatprep.mubr.f32.mxu0 0.0
      %5375 = vmatmul.mubr.f32.gmra.mxu0 %v5174
      %v5376 = vpop.f32.mrf.mxu0
      %v5377 = vadd.f32 0.0, %v5376
      %v5378 = vpop.f32.mrf.mxu0
      %5379 = vmatprep.mubr.f32.mxu0 0.0
      %5380 = vmatmul.mubr.f32.gmra.mxu0 %v5177
      %v5381 = vpop.f32.mrf.mxu0
      %v5382 = vadd.f32 0.0, %v5381
      %v5383 = vpop.f32.mrf.mxu0
      %5384 = vmatprep.mubr.f32.mxu0 0.0
      %5385 = vmatmul.mubr.f32.gmra.mxu0 %v5180
      %v5386 = vpop.f32.mrf.mxu0
      %v5387 = vadd.f32 0.0, %v5386
      %v5388 = vpop.f32.mrf.mxu0
      %5389 = vmatprep.mubr.f32.mxu0 0.0
      %5390 = vmatmul.mubr.f32.gmra.mxu0 %v5183
      %v5391 = vpop.f32.mrf.mxu0
      %v5392 = vadd.f32 0.0, %v5391
      %v5393 = vpop.f32.mrf.mxu0
      %5394 = vmatprep.mubr.f32.mxu0 0.0
      %5395 = vmatmul.mubr.f32.gmra.mxu0 %v5186
      %v5396 = vpop.f32.mrf.mxu0
      %v5397 = vadd.f32 0.0, %v5396
      %v5398 = vpop.f32.mrf.mxu0
      %5399 = vmatprep.mubr.f32.mxu0 0.0
      %5400 = vmatmul.mubr.f32.gmra.mxu0 %v5189
      %v5401 = vpop.f32.mrf.mxu0
      %v5402 = vadd.f32 0.0, %v5401
      %v5403 = vpop.f32.mrf.mxu0
      %5404 = vmatprep.mubr.f32.mxu0 0.0
      %5405 = vmatmul.mubr.f32.gmra.mxu0 %v5192
      %v5406 = vpop.f32.mrf.mxu0
      %v5407 = vadd.f32 0.0, %v5406
      %v5408 = vpop.f32.mrf.mxu0
      %5409 = vmatprep.mubr.f32.mxu0 0.0
      %5410 = vmatmul.mubr.f32.gmra.mxu0 %v5195
      %v5411 = vpop.f32.mrf.mxu0
      %v5412 = vadd.f32 0.0, %v5411
      %v5413 = vpop.f32.mrf.mxu0
      %5414 = vmatprep.mubr.f32.mxu0 0.0
      %5415 = vmatmul.mubr.f32.gmra.mxu0 %v5198
      %v5416 = vpop.f32.mrf.mxu0
      %v5417 = vadd.f32 0.0, %v5416
      %v5418 = vpop.f32.mrf.mxu0
      %5419 = vmatprep.mubr.f32.mxu0 0.0
      %5420 = vmatmul.mubr.f32.gmra.mxu0 %v5201
      %v5421 = vpop.f32.mrf.mxu0
      %v5422 = vadd.f32 0.0, %v5421
      %v5423 = vpop.f32.mrf.mxu0
      %5424 = vmatprep.mubr.f32.mxu0 0.0
      %5425 = vmatmul.mubr.f32.gmra.mxu0 %v5204
      %v5426 = vpop.f32.mrf.mxu0
      %v5427 = vadd.f32 0.0, %v5426
      %v5428 = vpop.f32.mrf.mxu0
      %5429 = vmatprep.mubr.f32.mxu0 0.0
      %5430 = vmatmul.mubr.f32.gmra.mxu0 %v5207
      %v5431 = vpop.f32.mrf.mxu0
      %v5432 = vadd.f32 0.0, %v5431
      %v5433 = vpop.f32.mrf.mxu0
      %5434 = vmatprep.mubr.f32.mxu0 0.0
      %5435 = vmatmul.mubr.f32.gmra.mxu0 %v5210
      %v5436 = vpop.f32.mrf.mxu0
      %v5437 = vadd.f32 0.0, %v5436
      %v5438 = vpop.f32.mrf.mxu0
      %5439 = vdwg.mxu0
      %v5440 = vadd.f32 %v4475, %v5282
      %v5441 = vadd.f32 %v4480, %v5287
      %v5442 = vadd.f32 %v4485, %v5292
      %v5443 = vadd.f32 %v4490, %v5297
      %v5444 = vadd.f32 %v4495, %v5302
      %v5445 = vadd.f32 %v4500, %v5307
      %v5446 = vadd.f32 %v4505, %v5312
      %v5447 = vadd.f32 %v4510, %v5317
      %v5448 = vadd.f32 %v4515, %v5322
      %v5449 = vadd.f32 %v4520, %v5327
      %v5450 = vadd.f32 %v4525, %v5332
      %v5451 = vadd.f32 %v4530, %v5337
      %v5452 = vadd.f32 %v4535, %v5342
      %v5453 = vadd.f32 %v4540, %v5347
      %v5454 = vadd.f32 %v4545, %v5352
      %v5455 = vadd.f32 %v4550, %v5357
      %v5456 = vadd.f32 %v4555, %v5362
      %v5457 = vadd.f32 %v4560, %v5367
      %v5458 = vadd.f32 %v4565, %v5372
      %v5459 = vadd.f32 %v4570, %v5377
      %v5460 = vadd.f32 %v4575, %v5382
      %v5461 = vadd.f32 %v4580, %v5387
      %v5462 = vadd.f32 %v4585, %v5392
      %v5463 = vadd.f32 %v4590, %v5397
      %v5464 = vadd.f32 %v4595, %v5402
      %v5465 = vadd.f32 %v4600, %v5407
      %v5466 = vadd.f32 %v4605, %v5412
      %v5467 = vadd.f32 %v4610, %v5417
      %v5468 = vadd.f32 %v4615, %v5422
      %v5469 = vadd.f32 %v4620, %v5427
      %v5470 = vadd.f32 %v4625, %v5432
      %v5471 = vadd.f32 %v4630, %v5437
      %v5472 = vsel %vm203, %v5440, 0.0
      %v5473 = vsel %vm203, %v5441, 0.0
      %v5474 = vadd.f32 %v5472, %v5473
      %v5475 = vsel %vm203, %v5442, 0.0
      %v5476 = vadd.f32 %v5474, %v5475
      %v5477 = vsel %vm203, %v5443, 0.0
      %v5478 = vadd.f32 %v5476, %v5477
      %v5479 = vsel %vm203, %v5444, 0.0
      %v5480 = vadd.f32 %v5478, %v5479
      %v5481 = vsel %vm203, %v5445, 0.0
      %v5482 = vadd.f32 %v5480, %v5481
      %v5483 = vsel %vm203, %v5446, 0.0
      %v5484 = vadd.f32 %v5482, %v5483
      %v5485 = vsel %vm203, %v5447, 0.0
      %v5486 = vadd.f32 %v5484, %v5485
      %v5487 = vsel %vm203, %v5448, 0.0
      %v5488 = vadd.f32 %v5486, %v5487
      %v5489 = vsel %vm203, %v5449, 0.0
      %v5490 = vadd.f32 %v5488, %v5489
      %v5491 = vsel %vm203, %v5450, 0.0
      %v5492 = vadd.f32 %v5490, %v5491
      %v5493 = vsel %vm203, %v5451, 0.0
      %v5494 = vadd.f32 %v5492, %v5493
      %v5495 = vsel %vm203, %v5452, 0.0
      %v5496 = vadd.f32 %v5494, %v5495
      %v5497 = vsel %vm203, %v5453, 0.0
      %v5498 = vadd.f32 %v5496, %v5497
      %v5499 = vsel %vm203, %v5454, 0.0
      %v5500 = vadd.f32 %v5498, %v5499
      %v5501 = vsel %vm203, %v5455, 0.0
      %v5502 = vadd.f32 %v5500, %v5501
      %v5503 = vsel %vm203, %v5456, 0.0
      %v5504 = vadd.f32 %v5502, %v5503
      %v5505 = vsel %vm203, %v5457, 0.0
      %v5506 = vadd.f32 %v5504, %v5505
      %v5507 = vsel %vm203, %v5458, 0.0
      %v5508 = vadd.f32 %v5506, %v5507
      %v5509 = vsel %vm203, %v5459, 0.0
      %v5510 = vadd.f32 %v5508, %v5509
      %v5511 = vsel %vm203, %v5460, 0.0
      %v5512 = vadd.f32 %v5510, %v5511
      %v5513 = vsel %vm203, %v5461, 0.0
      %v5514 = vadd.f32 %v5512, %v5513
      %v5515 = vsel %vm203, %v5462, 0.0
      %v5516 = vadd.f32 %v5514, %v5515
      %v5517 = vsel %vm203, %v5463, 0.0
      %v5518 = vadd.f32 %v5516, %v5517
      %v5519 = vsel %vm203, %v5464, 0.0
      %v5520 = vadd.f32 %v5518, %v5519
      %v5521 = vsel %vm203, %v5465, 0.0
      %v5522 = vadd.f32 %v5520, %v5521
      %v5523 = vsel %vm203, %v5466, 0.0
      %v5524 = vadd.f32 %v5522, %v5523
      %v5525 = vsel %vm203, %v5467, 0.0
      %v5526 = vadd.f32 %v5524, %v5525
      %v5527 = vsel %vm203, %v5468, 0.0
      %v5528 = vadd.f32 %v5526, %v5527
      %v5529 = vsel %vm203, %v5469, 0.0
      %v5530 = vadd.f32 %v5528, %v5529
      %v5531 = vsel %vm203, %v5470, 0.0
      %v5532 = vadd.f32 %v5530, %v5531
      %v5533 = vsel %vm203, %v5471, 0.0
      %v5534 = vadd.f32 %v5532, %v5533
      %v5535 = vrot.slane %v5534, 4
      %v5536 = vadd.f32 %v5534, %v5535
      %v5537 = vrot.slane %v5536, 2
      %v5538 = vadd.f32 %v5536, %v5537
      %v5539 = vrot.slane %v5538, 1
      %v5540 = vadd.f32 %v5538, %v5539
      %v5541 = vmul.f32 %v5440, %v5440
      %v5542 = vmul.f32 %v5441, %v5441
      %v5543 = vmul.f32 %v5442, %v5442
      %v5544 = vmul.f32 %v5443, %v5443
      %v5545 = vmul.f32 %v5444, %v5444
      %v5546 = vmul.f32 %v5445, %v5445
      %v5547 = vmul.f32 %v5446, %v5446
      %v5548 = vmul.f32 %v5447, %v5447
      %v5549 = vmul.f32 %v5448, %v5448
      %v5550 = vmul.f32 %v5449, %v5449
      %v5551 = vmul.f32 %v5450, %v5450
      %v5552 = vmul.f32 %v5451, %v5451
      %v5553 = vmul.f32 %v5452, %v5452
      %v5554 = vmul.f32 %v5453, %v5453
      %v5555 = vmul.f32 %v5454, %v5454
      %v5556 = vmul.f32 %v5455, %v5455
      %v5557 = vmul.f32 %v5456, %v5456
      %v5558 = vmul.f32 %v5457, %v5457
      %v5559 = vmul.f32 %v5458, %v5458
      %v5560 = vmul.f32 %v5459, %v5459
      %v5561 = vmul.f32 %v5460, %v5460
      %v5562 = vmul.f32 %v5461, %v5461
      %v5563 = vmul.f32 %v5462, %v5462
      %v5564 = vmul.f32 %v5463, %v5463
      %v5565 = vmul.f32 %v5464, %v5464
      %v5566 = vmul.f32 %v5465, %v5465
      %v5567 = vmul.f32 %v5466, %v5466
      %v5568 = vmul.f32 %v5467, %v5467
      %v5569 = vmul.f32 %v5468, %v5468
      %v5570 = vmul.f32 %v5469, %v5469
      %v5571 = vmul.f32 %v5470, %v5470
      %v5572 = vmul.f32 %v5471, %v5471
      %v5573 = vsel %vm203, %v5541, 0.0
      %v5574 = vsel %vm203, %v5542, 0.0
      %v5575 = vadd.f32 %v5573, %v5574
      %v5576 = vsel %vm203, %v5543, 0.0
      %v5577 = vadd.f32 %v5575, %v5576
      %v5578 = vsel %vm203, %v5544, 0.0
      %v5579 = vadd.f32 %v5577, %v5578
      %v5580 = vsel %vm203, %v5545, 0.0
      %v5581 = vadd.f32 %v5579, %v5580
      %v5582 = vsel %vm203, %v5546, 0.0
      %v5583 = vadd.f32 %v5581, %v5582
      %v5584 = vsel %vm203, %v5547, 0.0
      %v5585 = vadd.f32 %v5583, %v5584
      %v5586 = vsel %vm203, %v5548, 0.0
      %v5587 = vadd.f32 %v5585, %v5586
      %v5588 = vsel %vm203, %v5549, 0.0
      %v5589 = vadd.f32 %v5587, %v5588
      %v5590 = vsel %vm203, %v5550, 0.0
      %v5591 = vadd.f32 %v5589, %v5590
      %v5592 = vsel %vm203, %v5551, 0.0
      %v5593 = vadd.f32 %v5591, %v5592
      %v5594 = vsel %vm203, %v5552, 0.0
      %v5595 = vadd.f32 %v5593, %v5594
      %v5596 = vsel %vm203, %v5553, 0.0
      %v5597 = vadd.f32 %v5595, %v5596
      %v5598 = vsel %vm203, %v5554, 0.0
      %v5599 = vadd.f32 %v5597, %v5598
      %v5600 = vsel %vm203, %v5555, 0.0
      %v5601 = vadd.f32 %v5599, %v5600
      %v5602 = vsel %vm203, %v5556, 0.0
      %v5603 = vadd.f32 %v5601, %v5602
      %v5604 = vsel %vm203, %v5557, 0.0
      %v5605 = vadd.f32 %v5603, %v5604
      %v5606 = vsel %vm203, %v5558, 0.0
      %v5607 = vadd.f32 %v5605, %v5606
      %v5608 = vsel %vm203, %v5559, 0.0
      %v5609 = vadd.f32 %v5607, %v5608
      %v5610 = vsel %vm203, %v5560, 0.0
      %v5611 = vadd.f32 %v5609, %v5610
      %v5612 = vsel %vm203, %v5561, 0.0
      %v5613 = vadd.f32 %v5611, %v5612
      %v5614 = vsel %vm203, %v5562, 0.0
      %v5615 = vadd.f32 %v5613, %v5614
      %v5616 = vsel %vm203, %v5563, 0.0
      %v5617 = vadd.f32 %v5615, %v5616
      %v5618 = vsel %vm203, %v5564, 0.0
      %v5619 = vadd.f32 %v5617, %v5618
      %v5620 = vsel %vm203, %v5565, 0.0
      %v5621 = vadd.f32 %v5619, %v5620
      %v5622 = vsel %vm203, %v5566, 0.0
      %v5623 = vadd.f32 %v5621, %v5622
      %v5624 = vsel %vm203, %v5567, 0.0
      %v5625 = vadd.f32 %v5623, %v5624
      %v5626 = vsel %vm203, %v5568, 0.0
      %v5627 = vadd.f32 %v5625, %v5626
      %v5628 = vsel %vm203, %v5569, 0.0
      %v5629 = vadd.f32 %v5627, %v5628
      %v5630 = vsel %vm203, %v5570, 0.0
      %v5631 = vadd.f32 %v5629, %v5630
      %v5632 = vsel %vm203, %v5571, 0.0
      %v5633 = vadd.f32 %v5631, %v5632
      %v5634 = vsel %vm203, %v5572, 0.0
      %v5635 = vadd.f32 %v5633, %v5634
      %v5636 = vrot.slane %v5635, 4
      %v5637 = vadd.f32 %v5635, %v5636
      %v5638 = vrot.slane %v5637, 2
      %v5639 = vadd.f32 %v5637, %v5638
      %v5640 = vrot.slane %v5639, 1
      %v5641 = vadd.f32 %v5639, %v5640
      %v5642 = vmul.f32 %v5540, 0.00390625
      %v5643 = vmul.f32 %v5641, 0.00390625
      %v5644 = vmul.f32 %v5642, %v5642
      %v5645 = vsub.f32 %v5643, %v5644
      %v5646 = vmax.f32 %v5645, 0.0
      %v5647 = vsub.f32 %v5440, %v5642
      %v5648 = vsub.f32 %v5441, %v5642
      %v5649 = vsub.f32 %v5442, %v5642
      %v5650 = vsub.f32 %v5443, %v5642
      %v5651 = vsub.f32 %v5444, %v5642
      %v5652 = vsub.f32 %v5445, %v5642
      %v5653 = vsub.f32 %v5446, %v5642
      %v5654 = vsub.f32 %v5447, %v5642
      %v5655 = vsub.f32 %v5448, %v5642
      %v5656 = vsub.f32 %v5449, %v5642
      %v5657 = vsub.f32 %v5450, %v5642
      %v5658 = vsub.f32 %v5451, %v5642
      %v5659 = vsub.f32 %v5452, %v5642
      %v5660 = vsub.f32 %v5453, %v5642
      %v5661 = vsub.f32 %v5454, %v5642
      %v5662 = vsub.f32 %v5455, %v5642
      %v5663 = vsub.f32 %v5456, %v5642
      %v5664 = vsub.f32 %v5457, %v5642
      %v5665 = vsub.f32 %v5458, %v5642
      %v5666 = vsub.f32 %v5459, %v5642
      %v5667 = vsub.f32 %v5460, %v5642
      %v5668 = vsub.f32 %v5461, %v5642
      %v5669 = vsub.f32 %v5462, %v5642
      %v5670 = vsub.f32 %v5463, %v5642
      %v5671 = vsub.f32 %v5464, %v5642
      %v5672 = vsub.f32 %v5465, %v5642
      %v5673 = vsub.f32 %v5466, %v5642
      %v5674 = vsub.f32 %v5467, %v5642
      %v5675 = vsub.f32 %v5468, %v5642
      %v5676 = vsub.f32 %v5469, %v5642
      %v5677 = vsub.f32 %v5470, %v5642
      %v5678 = vsub.f32 %v5471, %v5642
      %v5679 = vadd.f32 %v5646, 1e-05
      %v5680 = vrsqrt.pop %v5679
      %v5681 = vmul.f32 %v5647, %v5680
      %v5682 = vmul.f32 %v5648, %v5680
      %v5683 = vmul.f32 %v5649, %v5680
      %v5684 = vmul.f32 %v5650, %v5680
      %v5685 = vmul.f32 %v5651, %v5680
      %v5686 = vmul.f32 %v5652, %v5680
      %v5687 = vmul.f32 %v5653, %v5680
      %v5688 = vmul.f32 %v5654, %v5680
      %v5689 = vmul.f32 %v5655, %v5680
      %v5690 = vmul.f32 %v5656, %v5680
      %v5691 = vmul.f32 %v5657, %v5680
      %v5692 = vmul.f32 %v5658, %v5680
      %v5693 = vmul.f32 %v5659, %v5680
      %v5694 = vmul.f32 %v5660, %v5680
      %v5695 = vmul.f32 %v5661, %v5680
      %v5696 = vmul.f32 %v5662, %v5680
      %v5697 = vmul.f32 %v5663, %v5680
      %v5698 = vmul.f32 %v5664, %v5680
      %v5699 = vmul.f32 %v5665, %v5680
      %v5700 = vmul.f32 %v5666, %v5680
      %v5701 = vmul.f32 %v5667, %v5680
      %v5702 = vmul.f32 %v5668, %v5680
      %v5703 = vmul.f32 %v5669, %v5680
      %v5704 = vmul.f32 %v5670, %v5680
      %v5705 = vmul.f32 %v5671, %v5680
      %v5706 = vmul.f32 %v5672, %v5680
      %v5707 = vmul.f32 %v5673, %v5680
      %v5708 = vmul.f32 %v5674, %v5680
      %v5709 = vmul.f32 %v5675, %v5680
      %v5710 = vmul.f32 %v5676, %v5680
      %v5711 = vmul.f32 %v5677, %v5680
      %v5712 = vmul.f32 %v5678, %v5680
      %v5713 = vld [vmem:[%s656 + $0x1] sm:$0xff]
      %v5714 = vld [vmem:[%s656 + $0x9] sm:$0xff]
      %v5715 = vld [vmem:[%s656 + $0x19] sm:$0xff]
      %v5716 = vld [vmem:[%s656 + $0x21] sm:$0xff]
      %v5717 = vld [vmem:[%s656 + $0x31] sm:$0xff]
      %v5718 = vld [vmem:[%s656 + $0x39] sm:$0xff]
      %v5719 = vld [vmem:[%s656 + $0x49] sm:$0xff]
      %v5720 = vld [vmem:[%s656 + $0x51] sm:$0xff]
      %v5721 = vld [vmem:[%s656 + $0x61] sm:$0xff]
      %v5722 = vld [vmem:[%s656 + $0x69] sm:$0xff]
      %v5723 = vld [vmem:[%s656 + $0x79] sm:$0xff]
      %v5724 = vld [vmem:[%s656 + $0x81] sm:$0xff]
      %v5725 = vld [vmem:[%s656 + $0x91] sm:$0xff]
      %v5726 = vld [vmem:[%s656 + $0x99] sm:$0xff]
      %v5727 = vld [vmem:[%s656 + $0xa9] sm:$0xff]
      %v5728 = vld [vmem:[%s656 + $0xb1] sm:$0xff]
      %v5729 = vld [vmem:[%s656 + $0xc1] sm:$0xff]
      %v5730 = vld [vmem:[%s656 + $0xc9] sm:$0xff]
      %v5731 = vld [vmem:[%s656 + $0xd9] sm:$0xff]
      %v5732 = vld [vmem:[%s656 + $0xe1] sm:$0xff]
      %v5733 = vld [vmem:[%s656 + $0xf1] sm:$0xff]
      %v5734 = vld [vmem:[%s656 + $0xf9] sm:$0xff]
      %v5735 = vld [vmem:[%s656 + $0x109] sm:$0xff]
      %v5736 = vld [vmem:[%s656 + $0x111] sm:$0xff]
      %v5737 = vld [vmem:[%s656 + $0x121] sm:$0xff]
      %v5738 = vld [vmem:[%s656 + $0x129] sm:$0xff]
      %v5739 = vld [vmem:[%s656 + $0x139] sm:$0xff]
      %v5740 = vld [vmem:[%s656 + $0x141] sm:$0xff]
      %v5741 = vld [vmem:[%s656 + $0x151] sm:$0xff]
      %v5742 = vld [vmem:[%s656 + $0x159] sm:$0xff]
      %v5743 = vld [vmem:[%s656 + $0x169] sm:$0xff]
      %v5744 = vld [vmem:[%s656 + $0x171] sm:$0xff]
      %v5745 = vadd.f32 %v5713, %v5681
      %v5746 = vadd.f32 %v5714, %v5682
      %v5747 = vadd.f32 %v5715, %v5683
      %v5748 = vadd.f32 %v5716, %v5684
      %v5749 = vadd.f32 %v5717, %v5685
      %v5750 = vadd.f32 %v5718, %v5686
      %v5751 = vadd.f32 %v5719, %v5687
      %v5752 = vadd.f32 %v5720, %v5688
      %v5753 = vadd.f32 %v5721, %v5689
      %v5754 = vadd.f32 %v5722, %v5690
      %v5755 = vadd.f32 %v5723, %v5691
      %v5756 = vadd.f32 %v5724, %v5692
      %v5757 = vadd.f32 %v5725, %v5693
      %v5758 = vadd.f32 %v5726, %v5694
      %v5759 = vadd.f32 %v5727, %v5695
      %v5760 = vadd.f32 %v5728, %v5696
      %v5761 = vadd.f32 %v5729, %v5697
      %v5762 = vadd.f32 %v5730, %v5698
      %v5763 = vadd.f32 %v5731, %v5699
      %v5764 = vadd.f32 %v5732, %v5700
      %v5765 = vadd.f32 %v5733, %v5701
      %v5766 = vadd.f32 %v5734, %v5702
      %v5767 = vadd.f32 %v5735, %v5703
      %v5768 = vadd.f32 %v5736, %v5704
      %v5769 = vadd.f32 %v5737, %v5705
      %v5770 = vadd.f32 %v5738, %v5706
      %v5771 = vadd.f32 %v5739, %v5707
      %v5772 = vadd.f32 %v5740, %v5708
      %v5773 = vadd.f32 %v5741, %v5709
      %v5774 = vadd.f32 %v5742, %v5710
      %v5775 = vadd.f32 %v5743, %v5711
      %v5776 = vadd.f32 %v5744, %v5712
      %5777 = vst.msk [vmem:[%s170] sm:$0xff] %vm203, %v5745
      %5778 = vst.msk [vmem:[%s170 + $0x8] sm:$0xff] %vm203, %v5746
      %5779 = vst.msk [vmem:[%s170 + $0x10] sm:$0xff] %vm203, %v5747
      %5780 = vst.msk [vmem:[%s170 + $0x18] sm:$0xff] %vm203, %v5748
      %5781 = vst.msk [vmem:[%s170 + $0x20] sm:$0xff] %vm203, %v5749
      %5782 = vst.msk [vmem:[%s170 + $0x28] sm:$0xff] %vm203, %v5750
      %5783 = vst.msk [vmem:[%s170 + $0x30] sm:$0xff] %vm203, %v5751
      %5784 = vst.msk [vmem:[%s170 + $0x38] sm:$0xff] %vm203, %v5752
      %5785 = vst.msk [vmem:[%s170 + $0x40] sm:$0xff] %vm203, %v5753
      %5786 = vst.msk [vmem:[%s170 + $0x48] sm:$0xff] %vm203, %v5754
      %5787 = vst.msk [vmem:[%s170 + $0x50] sm:$0xff] %vm203, %v5755
      %5788 = vst.msk [vmem:[%s170 + $0x58] sm:$0xff] %vm203, %v5756
      %5789 = vst.msk [vmem:[%s170 + $0x60] sm:$0xff] %vm203, %v5757
      %5790 = vst.msk [vmem:[%s170 + $0x68] sm:$0xff] %vm203, %v5758
      %5791 = vst.msk [vmem:[%s170 + $0x70] sm:$0xff] %vm203, %v5759
      %5792 = vst.msk [vmem:[%s170 + $0x78] sm:$0xff] %vm203, %v5760
      %5793 = vst.msk [vmem:[%s170 + $0x80] sm:$0xff] %vm203, %v5761
      %5794 = vst.msk [vmem:[%s170 + $0x88] sm:$0xff] %vm203, %v5762
      %5795 = vst.msk [vmem:[%s170 + $0x90] sm:$0xff] %vm203, %v5763
      %5796 = vst.msk [vmem:[%s170 + $0x98] sm:$0xff] %vm203, %v5764
      %5797 = vst.msk [vmem:[%s170 + $0xa0] sm:$0xff] %vm203, %v5765
      %5798 = vst.msk [vmem:[%s170 + $0xa8] sm:$0xff] %vm203, %v5766
      %5799 = vst.msk [vmem:[%s170 + $0xb0] sm:$0xff] %vm203, %v5767
      %5800 = vst.msk [vmem:[%s170 + $0xb8] sm:$0xff] %vm203, %v5768
      %5801 = vst.msk [vmem:[%s170 + $0xc0] sm:$0xff] %vm203, %v5769
      %5802 = vst.msk [vmem:[%s170 + $0xc8] sm:$0xff] %vm203, %v5770
      %5803 = vst.msk [vmem:[%s170 + $0xd0] sm:$0xff] %vm203, %v5771
      %5804 = vst.msk [vmem:[%s170 + $0xd8] sm:$0xff] %vm203, %v5772
      %5805 = vst.msk [vmem:[%s170 + $0xe0] sm:$0xff] %vm203, %v5773
      %5806 = vst.msk [vmem:[%s170 + $0xe8] sm:$0xff] %vm203, %v5774
      %5807 = vst.msk [vmem:[%s170 + $0xf0] sm:$0xff] %vm203, %v5775
      %5808 = vst.msk [vmem:[%s170 + $0xf8] sm:$0xff] %vm203, %v5776
      %p5809 = scmp.lt.s32.totalorder %s14, 1
      %s5810 = scalar_select %p5809, %s14, 1
      %s5811 = smul.addr %s5810, 32
      %s5812 = smul.addr %s5811, 8
      %s5813 = scalar_lea.vmem %s3, %s5812
      // Predicated region
      $region33: #{tpu_custom_call.1} parent=31 // pred_check
        %p5814 = pneg %p100
      $region34: #{tpu_custom_call.1} parent=31 // pred_check_branch
        %5816 = sbr.rel (%p5814) target = $region36
      $region35: #{tpu_custom_call.1} parent=31 // pred_region
        _
      $region36: #{tpu_custom_call.1} parent=31 // pred_fallthru
        _
    $region32: #{tpu_custom_call.1} parent=5 // pred_fallthru
      _
    %p5817 = scmp.le.s32.totalorder 2, %s9
    // Predicated region
    $region37: #{tpu_custom_call.1} parent=5 // pred_check
      %p5818 = pneg %p5817
    $region38: #{tpu_custom_call.1} parent=5 // pred_check_branch
      %5820 = sbr.rel (%p5818) target = $region40
    $region39: #{tpu_custom_call.1} parent=5 // pred_region
      %s5821 = ssub.s32 %s9, 2
      // Predicated region
      $region41: #{tpu_custom_call.1} parent=39 // pred_check
        %p5822 = pneg %p106
      $region42: #{tpu_custom_call.1} parent=39 // pred_check_branch
        %5824 = sbr.rel (%p5822) target = $region44
      $region43: #{tpu_custom_call.1} parent=39 // pred_region
        %p5825 = scmp.lt.s32.totalorder %s15, 1
        %s5826 = scalar_select %p5825, %s15, 1
        %s5827 = smul.addr %s5826, 32
        %s5828 = smul.addr %s5827, 8
        %s5829 = scalar_lea.vmem %s3, %s5828
      $region44: #{tpu_custom_call.1} parent=39 // pred_fallthru
        _
    $region40: #{tpu_custom_call.1} parent=5 // pred_fallthru
      _
  $region6: #{tpu_custom_call.1} parent=0 // loop_footer
    %s13 = sadd.s32 1, %s9
  $region7: #{tpu_custom_call.1} parent=0 // loop_footer_branch
    %8 = sbr.rel target = $region3
  $region8: #{tpu_custom_call.1} parent=0 // loop_exit
    _

</llo_original>
